<compile_context>
chip_gen: v6e
topology: v6e:2x2x1
jax: 0.10.0
libtpu: 0.0.40
codegen_flags: <defaults>
</compile_context>

<pallas_src>
import functools

import jax
import jax.numpy as jnp
from jax.experimental import pallas as pl
from jax.experimental.pallas import tpu as pltpu

LEAKY_SLOPE = 0.2
IN_EPS = 1e-5


# ---------------------------------------------------------------------------
# Fused kernel: conv3x3 + noise + bias + LeakyReLU + InstanceNorm
# ---------------------------------------------------------------------------
def _sg_layer_kernel(xpad_ref, w_ref, noise_ref, nw_ref, b_ref, o_ref, act_ref,
                     *, fold_taps):
    """Grid = (N, Cout tiles, spatial tiles); spatial tiles innermost ("arbitrary").

    xpad_ref:  (1, H+2, W+2, Cin) bf16   zero-padded image, resident per batch
    w_ref:     (CT, 9*Cin) bf16 if fold_taps else (9, CT, Cin) bf16
    noise_ref: (1, 1, P)          f32    noise for this spatial tile (P = TH*W)
    nw_ref:    (CT, 1)            f32    per-channel noise scale
    b_ref:     (CT, 1)            f32    conv bias
    o_ref:     (1, CT, HW)        f32    resident output block (written on last tile)
    act_ref:   (n_tiles, CT, P)   f32    VMEM scratch: pre-norm activations
    """
    _, _, Wp2, Cin = xpad_ref.shape
    W = Wp2 - 2
    CT = nw_ref.shape[0]
    n_tiles, _, P = act_ref.shape
    TH = P // W
    HW = o_ref.shape[-1]
    inv_hw = 1.0 / HW

    t = pl.program_id(2)

    r0 = t * TH
    if TH % 8 == 0:
        r0 = pl.multiple_of(r0, 8)            # aligned sublane loads for the taps

    # Nine shifted views of the VMEM-resident padded image (no HBM im2col).
    taps = []
    for kh in range(3):
        for kw in range(3):
            xk = xpad_ref[:, pl.ds(r0 + kh, TH), pl.ds(kw, W), :]
            taps.append(xk.reshape(P, Cin))   # (P, Cin) bf16

    if fold_taps:
        # Single MXU matmul with contraction depth K = 9*Cin (review opt 1).
        # Concatenate in f32 (native 32-bit lane layout), cast back for the MXU.
        x_cat = jnp.concatenate([tp.astype(jnp.float32) for tp in taps], axis=1)
        x_cat = x_cat.astype(jnp.bfloat16)                      # (P, 9*Cin)
        acc = jax.lax.dot_general(
            w_ref[...], x_cat,
            dimension_numbers=(((1,), (1,)), ((), ())),
            preferred_element_type=jnp.float32)                 # (CT, P) f32
    else:
        # Review's "at minimum" fallback: 9 accumulated matmuls with K = Cin.
        acc = jnp.zeros((CT, P), jnp.float32)
        for k in range(9):
            acc = acc + jax.lax.dot_general(
                w_ref[k], taps[k],
                dimension_numbers=(((1,), (1,)), ((), ())),
                preferred_element_type=jnp.float32)

    # Noise injection, bias, LeakyReLU(0.2) -- all in f32.
    x = acc + nw_ref[...] * noise_ref[0] + b_ref[...]           # (CT,1)*(1,P)->(CT,P)
    x = jnp.where(x > 0, x, LEAKY_SLOPE * x)
    act_ref[t] = x                                              # stays in VMEM

    # Last spatial tile: InstanceNorm over the resident activations and write
    # the lane-dense (CT, HW) output block.  Stats never touch HBM, and the
    # variance is centered (no E[x^2]-mean^2 cancellation).
    @pl.when(t == n_tiles - 1)
    def _finalize():
        s = act_ref[0]
        for ti in range(1, n_tiles):
            s = s + act_ref[ti]
        mean = jnp.sum(s, axis=-1, keepdims=True) * inv_hw      # (CT, 1)
        ssq = jnp.zeros((CT, 1), jnp.float32)
        for ti in range(n_tiles):
            d = act_ref[ti] - mean
            ssq = ssq + jnp.sum(d * d, axis=-1, keepdims=True)
        scale = jax.lax.rsqrt(ssq * inv_hw + IN_EPS)            # (CT, 1), EUP
        for ti in range(n_tiles):                               # static, 128-aligned
            o_ref[0, :, ti * P:(ti + 1) * P] = (act_ref[ti] - mean) * scale


# ---------------------------------------------------------------------------
# Tiling / VMEM helpers
# ---------------------------------------------------------------------------
def _pick_tile_rows(H, W, max_tile_elems):
    """Largest TH dividing H with TH*W <= max_tile_elems, preferring tiles that
    are multiples of 256 (v6e/v7x MXU width), then 128; falls back to full H."""
    cap = max(1, max_tile_elems // max(W, 1))
    for align in (256, 128):
        for th in range(min(H, cap), 0, -1):
            if H % th == 0 and (th * W) % align == 0:
                return th
    return H


def _pick_cout_tile(Cout, max_ct):
    """Largest divisor of Cout <= max_ct (multiple of 8 whenever it tiles Cout)."""
    if Cout <= max_ct:
        return Cout
    for ct in range(max_ct, 7, -1):
        if Cout % ct == 0 and ct % 8 == 0:
            return ct
    return Cout


def _vmem_bytes(shape, itemsize):
    """Crude padded-VMEM footprint of one block (lanes -> 128, sublanes -> 8)."""
    s = list(shape)
    s[-1] = -(-s[-1] // 128) * 128
    if len(s) >= 2:
        s[-2] = -(-s[-2] // 8) * 8
    n = itemsize
    for d in s:
        n *= d
    return n


def _vmem_limit(need_bytes):
    """Generation-aware VMEM limit: leave 16 MiB of headroom under the per-core
    capacity (~48 MiB cap on v7x, up to 112 MiB on v5e/v6e)."""
    try:
        cap = pltpu.get_tpu_info().vmem_capacity_bytes
    except Exception:
        cap = 64 << 20                       # conservative (v7x per-core) default
    limit = max(need_bytes + (8 << 20), 32 << 20)
    limit = min(limit, cap - (16 << 20))
    return int(max(limit, 16 << 20))


# ---------------------------------------------------------------------------
# Wrapper
# ---------------------------------------------------------------------------
def sg_layer(image_nchw, style, noise_nchw, weight_hwio, noise_weight, bias,
             *, max_tile_elems=2048, max_cout_tile=256):
    """SGLayer forward.  image_nchw: (N, Cin, H, W), noise_nchw: (N, 1, H, W),
    weight_hwio: (3, 3, Cin, Cout).  Returns (N, Cout, H, W) f32.  `style` unused."""
    del style                                 # unused by this forward pass
    N, Cin, H, W = image_nchw.shape
    Cout = weight_hwio.shape[3]
    HW = H * W

    TH = _pick_tile_rows(H, W, max_tile_elems)
    P = TH * W                                # pixels per spatial tile
    n_tiles = H // TH
    CT = _pick_cout_tile(Cout, max_cout_tile)
    n_ct = Cout // CT

    # ---- glue: layout only (pad / transpose / cast); no HBM im2col ----
    x_nhwc = jnp.transpose(image_nchw, (0, 2, 3, 1))
    xpad = jnp.pad(x_nhwc, ((0, 0), (1, 1), (1, 1), (0, 0))).astype(jnp.bfloat16)
    # Weight in two tiny layouts: folded (Cout, 9*Cin) for the K=9*Cin matmul,
    # and per-tap (9, Cout, Cin) for the fallback path.
    w_fold = weight_hwio.reshape(9 * Cin, Cout).T.astype(jnp.bfloat16)
    w_taps = jnp.transpose(weight_hwio.reshape(9, Cin, Cout),
                           (0, 2, 1)).astype(jnp.bfloat16)
    noise = noise_nchw.astype(jnp.float32).reshape(N, 1, HW)
    nw_col = noise_weight.reshape(Cout, 1).astype(jnp.float32)
    b_col = bias.reshape(Cout, 1).astype(jnp.float32)

    need = (2 * _vmem_bytes((1, H + 2, W + 2, Cin), 2)   # resident padded image (x2 buf)
            + 2 * _vmem_bytes((CT, 9 * Cin), 2)          # weight tile
            + 2 * _vmem_bytes((1, 1, P), 4)              # noise tile
            + 4 * _vmem_bytes((CT, 1), 4)                # noise scale + bias
            + 2 * _vmem_bytes((1, CT, HW), 4)            # resident output block
            + _vmem_bytes((n_tiles, CT, P), 4)           # activation scratch
            + _vmem_bytes((P, 9 * Cin), 4)               # concatenated tap operand
            + 4 * _vmem_bytes((CT, P), 4))               # f32 temporaries
    vmem_limit = _vmem_limit(need)

    cost = pl.CostEstimate(
        flops=2 * N * HW * 9 * Cin * Cout + 8 * N * HW * Cout,
        transcendentals=N * Cout,
        bytes_accessed=(xpad.size * 2 + w_fold.size * 2 + noise.size * 4
                        + (nw_col.size + b_col.size) * 4 + N * Cout * HW * 4))

    def run(fold_taps):
        if fold_taps:
            w_arr = w_fold
            w_spec = pl.BlockSpec((CT, 9 * Cin), lambda n, c, t: (c, 0))
        else:
            w_arr = w_taps
            w_spec = pl.BlockSpec((9, CT, Cin), lambda n, c, t: (0, c, 0))
        grid_spec = pltpu.PrefetchScalarGridSpec(
            num_scalar_prefetch=0,
            grid=(N, n_ct, n_tiles),
            in_specs=[
                # Padded image resident per batch (index constant across c, t).
                pl.BlockSpec((1, H + 2, W + 2, Cin), lambda n, c, t: (n, 0, 0, 0)),
                w_spec,
                pl.BlockSpec((1, 1, P), lambda n, c, t: (n, 0, t)),
                pl.BlockSpec((CT, 1), lambda n, c, t: (c, 0)),
                pl.BlockSpec((CT, 1), lambda n, c, t: (c, 0)),
            ],
            out_specs=pl.BlockSpec((1, CT, HW), lambda n, c, t: (n, c, 0)),
            scratch_shapes=[pltpu.VMEM((n_tiles, CT, P), jnp.float32)],
        )
        return pl.pallas_call(
            functools.partial(_sg_layer_kernel, fold_taps=fold_taps),
            out_shape=jax.ShapeDtypeStruct((N, Cout, HW), jnp.float32),
            grid_spec=grid_spec,
            compiler_params=pltpu.CompilerParams(
                dimension_semantics=("parallel", "parallel", "arbitrary"),
                vmem_limit_bytes=vmem_limit),
            cost_estimate=cost,
        )(xpad, w_arr, noise, nw_col, b_col)

    # Prefer the single K=9*Cin matmul; the two paths are mathematically
    # identical, so this only guards against Mosaic builds lacking unaligned
    # lane concatenation (numerics are independently checked in __main__).
    try:
        out_flat = run(fold_taps=True)
        out_flat.block_until_ready()
    except Exception:
        out_flat = run(fold_taps=False)

    return out_flat.reshape(N, Cout, H, W)    # already NCHW order: no transpose


# ---------------------------------------------------------------------------
# Pure-JAX reference (f32) for correctness checking
# ---------------------------------------------------------------------------
def sg_layer_reference(image_nchw, noise_nchw, weight_hwio, noise_weight, bias):
    x = jax.lax.conv_general_dilated(
        image_nchw.astype(jnp.float32), weight_hwio.astype(jnp.float32),
        window_strides=(1, 1), padding="SAME",
        dimension_numbers=("NCHW", "HWIO", "NCHW"))
    C = weight_hwio.shape[3]
    x = x + noise_weight.reshape(1, C, 1, 1) * noise_nchw
    x = x + bias.reshape(1, C, 1, 1)
    x = jnp.where(x > 0, x, LEAKY_SLOPE * x)
    mean = jnp.mean(x, axis=(2, 3), keepdims=True)
    var = jnp.mean((x - mean) ** 2, axis=(2, 3), keepdims=True)
    return (x - mean) * jax.lax.rsqrt(var + IN_EPS)


if __name__ == "__main__":
    key = jax.random.PRNGKey(0)
    k_img, k_sty, k_nz, k_w, k_nw, k_b = jax.random.split(key, 6)

    N, Cin, Cout, H, W = 2, 4, 16, 16, 16

    image = jax.random.normal(k_img, (N, Cin, H, W), jnp.float32)
    style = jax.random.normal(k_sty, (N, 8), jnp.float32)        # unused in forward
    noise = jax.random.normal(k_nz, (N, 1, H, W), jnp.float32)

    weight = 0.2 * jax.random.normal(k_w, (3, 3, Cin, Cout), jnp.float32)   # HWIO
    noise_weight = 0.1 * jax.random.normal(k_nw, (Cout,), jnp.float32)
    bias = 0.1 * jax.random.normal(k_b, (Cout,), jnp.float32)

    # max_tile_elems=128 -> TH=8 (2 spatial tiles); max_cout_tile=8 -> 2 Cout
    # tiles: exercises the resident-input, Cout-tiled, VMEM-resident-activation
    # and last-tile InstanceNorm paths.
    out = sg_layer(image, style, noise, weight, noise_weight, bias,
                   max_tile_elems=128, max_cout_tile=8)
    out = jax.block_until_ready(out)

    ref = sg_layer_reference(image, noise, weight, noise_weight, bias)
    ref = jax.block_until_ready(ref)

    assert out.shape == (N, Cout, H, W), out.shape
    err = jnp.max(jnp.abs(out - ref))
    # conv operands are bf16 (MXU native); accumulation and norm are f32.
    assert err < 5e-2, f"max abs error too large: {err}"

    print("KERNEL_OK")
</pallas_src>

<mosaic_0001>
module attributes {stable_mosaic.version = 11 : i64} {
  func.func @_sg_layer_kernel(%arg0: i32, %arg1: i32, %arg2: i32, %arg3: memref<1x18x18x4xbf16, #tpu.memory_space<vmem>>, %arg4: memref<8x36xbf16, #tpu.memory_space<vmem>>, %arg5: memref<1x1x128xf32, #tpu.memory_space<vmem>>, %arg6: memref<8x1xf32, #tpu.memory_space<vmem>>, %arg7: memref<8x1xf32, #tpu.memory_space<vmem>>, %arg8: memref<1x8x256xf32, #tpu.memory_space<vmem>>, %arg9: memref<2x8x128xf32, #tpu.memory_space<vmem>>) attributes {dimension_semantics = [#tpu.dimension_semantics<parallel>, #tpu.dimension_semantics<parallel>, #tpu.dimension_semantics<arbitrary>], iteration_bounds = array<i64: 2, 2, 2>, scalar_prefetch = 0 : i64, scratch_operands = 1 : i64, tpu.core_type = #tpu.core_type<tc>, window_params = [{transform_indices = @transform_0, window_bounds = array<i64: 1, 18, 18, 4>}, {transform_indices = @transform_1, window_bounds = array<i64: 8, 36>}, {transform_indices = @transform_2, window_bounds = array<i64: 1, 1, 128>}, {transform_indices = @transform_3, window_bounds = array<i64: 8, 1>}, {transform_indices = @transform_4, window_bounds = array<i64: 8, 1>}, {transform_indices = @transform_5, window_bounds = array<i64: 1, 8, 256>}]} {
    %c8_i32 = arith.constant 8 : i32
    %0 = arith.muli %arg2, %c8_i32 : i32
    %1 = tpu.assume_multiple %0, 8 : i32
    %c0_i32 = arith.constant 0 : i32
    %2 = arith.addi %1, %c0_i32 : i32
    %c0 = arith.constant 0 : index
    %3 = arith.index_cast %2 : i32 to index
    %c0_0 = arith.constant 0 : index
    %c0_1 = arith.constant 0 : index
    %4 = vector.load %arg3[%c0, %3, %c0_0, %c0_1] : memref<1x18x18x4xbf16, #tpu.memory_space<vmem>>, vector<1x8x16x4xbf16>
    %5 = vector.shape_cast %4 : vector<1x8x16x4xbf16> to vector<128x4xbf16>
    %c0_i32_2 = arith.constant 0 : i32
    %6 = arith.addi %1, %c0_i32_2 : i32
    %c0_3 = arith.constant 0 : index
    %7 = arith.index_cast %6 : i32 to index
    %c1 = arith.constant 1 : index
    %c0_4 = arith.constant 0 : index
    %8 = vector.load %arg3[%c0_3, %7, %c1, %c0_4] : memref<1x18x18x4xbf16, #tpu.memory_space<vmem>>, vector<1x8x16x4xbf16>
    %9 = vector.shape_cast %8 : vector<1x8x16x4xbf16> to vector<128x4xbf16>
    %c0_i32_5 = arith.constant 0 : i32
    %10 = arith.addi %1, %c0_i32_5 : i32
    %c0_6 = arith.constant 0 : index
    %11 = arith.index_cast %10 : i32 to index
    %c2 = arith.constant 2 : index
    %c0_7 = arith.constant 0 : index
    %12 = vector.load %arg3[%c0_6, %11, %c2, %c0_7] : memref<1x18x18x4xbf16, #tpu.memory_space<vmem>>, vector<1x8x16x4xbf16>
    %13 = vector.shape_cast %12 : vector<1x8x16x4xbf16> to vector<128x4xbf16>
    %c1_i32 = arith.constant 1 : i32
    %14 = arith.addi %1, %c1_i32 : i32
    %c0_8 = arith.constant 0 : index
    %15 = arith.index_cast %14 : i32 to index
    %c0_9 = arith.constant 0 : index
    %c0_10 = arith.constant 0 : index
    %16 = vector.load %arg3[%c0_8, %15, %c0_9, %c0_10] : memref<1x18x18x4xbf16, #tpu.memory_space<vmem>>, vector<1x8x16x4xbf16>
    %17 = vector.shape_cast %16 : vector<1x8x16x4xbf16> to vector<128x4xbf16>
    %c1_i32_11 = arith.constant 1 : i32
    %18 = arith.addi %1, %c1_i32_11 : i32
    %c0_12 = arith.constant 0 : index
    %19 = arith.index_cast %18 : i32 to index
    %c1_13 = arith.constant 1 : index
    %c0_14 = arith.constant 0 : index
    %20 = vector.load %arg3[%c0_12, %19, %c1_13, %c0_14] : memref<1x18x18x4xbf16, #tpu.memory_space<vmem>>, vector<1x8x16x4xbf16>
    %21 = vector.shape_cast %20 : vector<1x8x16x4xbf16> to vector<128x4xbf16>
    %c1_i32_15 = arith.constant 1 : i32
    %22 = arith.addi %1, %c1_i32_15 : i32
    %c0_16 = arith.constant 0 : index
    %23 = arith.index_cast %22 : i32 to index
    %c2_17 = arith.constant 2 : index
    %c0_18 = arith.constant 0 : index
    %24 = vector.load %arg3[%c0_16, %23, %c2_17, %c0_18] : memref<1x18x18x4xbf16, #tpu.memory_space<vmem>>, vector<1x8x16x4xbf16>
    %25 = vector.shape_cast %24 : vector<1x8x16x4xbf16> to vector<128x4xbf16>
    %c2_i32 = arith.constant 2 : i32
    %26 = arith.addi %1, %c2_i32 : i32
    %c0_19 = arith.constant 0 : index
    %27 = arith.index_cast %26 : i32 to index
    %c0_20 = arith.constant 0 : index
    %c0_21 = arith.constant 0 : index
    %28 = vector.load %arg3[%c0_19, %27, %c0_20, %c0_21] : memref<1x18x18x4xbf16, #tpu.memory_space<vmem>>, vector<1x8x16x4xbf16>
    %29 = vector.shape_cast %28 : vector<1x8x16x4xbf16> to vector<128x4xbf16>
    %c2_i32_22 = arith.constant 2 : i32
    %30 = arith.addi %1, %c2_i32_22 : i32
    %c0_23 = arith.constant 0 : index
    %31 = arith.index_cast %30 : i32 to index
    %c1_24 = arith.constant 1 : index
    %c0_25 = arith.constant 0 : index
    %32 = vector.load %arg3[%c0_23, %31, %c1_24, %c0_25] : memref<1x18x18x4xbf16, #tpu.memory_space<vmem>>, vector<1x8x16x4xbf16>
    %33 = vector.shape_cast %32 : vector<1x8x16x4xbf16> to vector<128x4xbf16>
    %c2_i32_26 = arith.constant 2 : i32
    %34 = arith.addi %1, %c2_i32_26 : i32
    %c0_27 = arith.constant 0 : index
    %35 = arith.index_cast %34 : i32 to index
    %c2_28 = arith.constant 2 : index
    %c0_29 = arith.constant 0 : index
    %36 = vector.load %arg3[%c0_27, %35, %c2_28, %c0_29] : memref<1x18x18x4xbf16, #tpu.memory_space<vmem>>, vector<1x8x16x4xbf16>
    %37 = vector.shape_cast %36 : vector<1x8x16x4xbf16> to vector<128x4xbf16>
    %38 = arith.extf %5 : vector<128x4xbf16> to vector<128x4xf32>
    %39 = arith.extf %9 : vector<128x4xbf16> to vector<128x4xf32>
    %40 = arith.extf %13 : vector<128x4xbf16> to vector<128x4xf32>
    %41 = arith.extf %17 : vector<128x4xbf16> to vector<128x4xf32>
    %42 = arith.extf %21 : vector<128x4xbf16> to vector<128x4xf32>
    %43 = arith.extf %25 : vector<128x4xbf16> to vector<128x4xf32>
    %44 = arith.extf %29 : vector<128x4xbf16> to vector<128x4xf32>
    %45 = arith.extf %33 : vector<128x4xbf16> to vector<128x4xf32>
    %46 = arith.extf %37 : vector<128x4xbf16> to vector<128x4xf32>
    %47 = tpu.concatenate %38, %39, %40, %41, %42, %43, %44, %45, %46 in 1 : vector<128x4xf32>, vector<128x4xf32>, vector<128x4xf32>, vector<128x4xf32>, vector<128x4xf32>, vector<128x4xf32>, vector<128x4xf32>, vector<128x4xf32>, vector<128x4xf32> -> vector<128x36xf32>
    %48 = arith.truncf %47 : vector<128x36xf32> to vector<128x36xbf16>
    %c0_30 = arith.constant 0 : index
    %c0_31 = arith.constant 0 : index
    %49 = vector.load %arg4[%c0_30, %c0_31] : memref<8x36xbf16, #tpu.memory_space<vmem>>, vector<8x36xbf16>
    %cst = arith.constant dense<0.000000e+00> : vector<8x128xf32>
    %50 = tpu.matmul %49, %48, %cst {dimension_numbers = #tpu.dot_dimension_numbers<[1], [1], [0], [0], [0, 0, 1, 0], [], []>} : vector<8x36xbf16>, vector<128x36xbf16>, vector<8x128xf32> -> vector<8x128xf32>
    %c0_32 = arith.constant 0 : index
    %c0_33 = arith.constant 0 : index
    %51 = vector.load %arg6[%c0_32, %c0_33] : memref<8x1xf32, #tpu.memory_space<vmem>>, vector<8x1xf32>
    %c0_34 = arith.constant 0 : index
    %c0_35 = arith.constant 0 : index
    %c0_36 = arith.constant 0 : index
    %52 = vector.load %arg5[%c0_34, %c0_35, %c0_36] : memref<1x1x128xf32, #tpu.memory_space<vmem>>, vector<1x1x128xf32>
    %53 = vector.shape_cast %52 : vector<1x1x128xf32> to vector<1x128xf32>
    %54 = vector.broadcast %51 : vector<8x1xf32> to vector<8x128xf32>
    %55 = vector.broadcast %53 : vector<1x128xf32> to vector<8x128xf32>
    %56 = arith.mulf %54, %55 : vector<8x128xf32>
    %57 = arith.addf %50, %56 : vector<8x128xf32>
    %c0_37 = arith.constant 0 : index
    %c0_38 = arith.constant 0 : index
    %58 = vector.load %arg7[%c0_37, %c0_38] : memref<8x1xf32, #tpu.memory_space<vmem>>, vector<8x1xf32>
    %59 = vector.broadcast %58 : vector<8x1xf32> to vector<8x128xf32>
    %60 = arith.addf %57, %59 : vector<8x128xf32>
    %cst_39 = arith.constant 0.000000e+00 : f32
    %61 = vector.broadcast %cst_39 : f32 to vector<8x128xf32>
    %62 = arith.cmpf ogt, %60, %61 : vector<8x128xf32>
    %cst_40 = arith.constant 2.000000e-01 : f32
    %63 = vector.broadcast %cst_40 : f32 to vector<8x128xf32>
    %64 = arith.mulf %63, %60 : vector<8x128xf32>
    %65 = arith.select %62, %60, %64 : vector<8x128xi1>, vector<8x128xf32>
    %66 = arith.index_cast %arg2 : i32 to index
    %c0_41 = arith.constant 0 : index
    %c0_42 = arith.constant 0 : index
    %67 = vector.load %arg9[%66, %c0_41, %c0_42] : memref<2x8x128xf32, #tpu.memory_space<vmem>>, vector<1x8x128xf32>
    %68 = vector.shape_cast %67 : vector<1x8x128xf32> to vector<8x128xf32>
    %69 = vector.shape_cast %65 : vector<8x128xf32> to vector<1x8x128xf32>
    tpu.vector_store %arg9[%66, %c0_41, %c0_42], %69 {strides = array<i32>} : memref<2x8x128xf32, #tpu.memory_space<vmem>>, vector<1x8x128xf32>,
    %c1_i32_43 = arith.constant 1 : i32
    %70 = arith.cmpi eq, %arg2, %c1_i32_43 : i32
    %71 = arith.extui %70 : i1 to i32
    %c0_i32_44 = arith.constant 0 : i32
    %72 = arith.cmpi ne, %71, %c0_i32_44 : i32
    scf.if %72 {
      %c0_45 = arith.constant 0 : index
      %c0_46 = arith.constant 0 : index
      %c0_47 = arith.constant 0 : index
      %73 = vector.load %arg9[%c0_45, %c0_46, %c0_47] : memref<2x8x128xf32, #tpu.memory_space<vmem>>, vector<1x8x128xf32>
      %74 = vector.shape_cast %73 : vector<1x8x128xf32> to vector<8x128xf32>
      %c1_48 = arith.constant 1 : index
      %c0_49 = arith.constant 0 : index
      %c0_50 = arith.constant 0 : index
      %75 = vector.load %arg9[%c1_48, %c0_49, %c0_50] : memref<2x8x128xf32, #tpu.memory_space<vmem>>, vector<1x8x128xf32>
      %76 = vector.shape_cast %75 : vector<1x8x128xf32> to vector<8x128xf32>
      %77 = arith.addf %74, %76 : vector<8x128xf32>
      %cst_51 = arith.constant dense<0.000000e+00> : vector<8xf32>
      %78 = vector.multi_reduction <add>, %77, %cst_51 [1] : vector<8x128xf32> to vector<8xf32>
      %79 = vector.shape_cast %78 : vector<8xf32> to vector<8x1xf32>
      %cst_52 = arith.constant 3.906250e-03 : f32
      %80 = vector.broadcast %cst_52 : f32 to vector<8x1xf32>
      %81 = arith.mulf %79, %80 : vector<8x1xf32>
      %cst_53 = arith.constant 0.000000e+00 : f32
      %82 = vector.broadcast %cst_53 : f32 to vector<8x1xf32>
      %c0_54 = arith.constant 0 : index
      %c0_55 = arith.constant 0 : index
      %c0_56 = arith.constant 0 : index
      %83 = vector.load %arg9[%c0_54, %c0_55, %c0_56] : memref<2x8x128xf32, #tpu.memory_space<vmem>>, vector<1x8x128xf32>
      %84 = vector.shape_cast %83 : vector<1x8x128xf32> to vector<8x128xf32>
      %85 = vector.broadcast %81 : vector<8x1xf32> to vector<8x128xf32>
      %86 = arith.subf %84, %85 : vector<8x128xf32>
      %87 = arith.mulf %86, %86 : vector<8x128xf32>
      %cst_57 = arith.constant dense<0.000000e+00> : vector<8xf32>
      %88 = vector.multi_reduction <add>, %87, %cst_57 [1] : vector<8x128xf32> to vector<8xf32>
      %89 = vector.shape_cast %88 : vector<8xf32> to vector<8x1xf32>
      %90 = arith.addf %82, %89 : vector<8x1xf32>
      %c1_58 = arith.constant 1 : index
      %c0_59 = arith.constant 0 : index
      %c0_60 = arith.constant 0 : index
      %91 = vector.load %arg9[%c1_58, %c0_59, %c0_60] : memref<2x8x128xf32, #tpu.memory_space<vmem>>, vector<1x8x128xf32>
      %92 = vector.shape_cast %91 : vector<1x8x128xf32> to vector<8x128xf32>
      %93 = vector.broadcast %81 : vector<8x1xf32> to vector<8x128xf32>
      %94 = arith.subf %92, %93 : vector<8x128xf32>
      %95 = arith.mulf %94, %94 : vector<8x128xf32>
      %cst_61 = arith.constant dense<0.000000e+00> : vector<8xf32>
      %96 = vector.multi_reduction <add>, %95, %cst_61 [1] : vector<8x128xf32> to vector<8xf32>
      %97 = vector.shape_cast %96 : vector<8xf32> to vector<8x1xf32>
      %98 = arith.addf %90, %97 : vector<8x1xf32>
      %cst_62 = arith.constant 3.906250e-03 : f32
      %99 = vector.broadcast %cst_62 : f32 to vector<8x1xf32>
      %100 = arith.mulf %98, %99 : vector<8x1xf32>
      %cst_63 = arith.constant 9.99999974E-6 : f32
      %101 = vector.broadcast %cst_63 : f32 to vector<8x1xf32>
      %102 = arith.addf %100, %101 : vector<8x1xf32>
      %103 = math.rsqrt %102 : vector<8x1xf32>
      %c0_64 = arith.constant 0 : index
      %c0_65 = arith.constant 0 : index
      %c0_66 = arith.constant 0 : index
      %104 = vector.load %arg9[%c0_64, %c0_65, %c0_66] : memref<2x8x128xf32, #tpu.memory_space<vmem>>, vector<1x8x128xf32>
      %105 = vector.shape_cast %104 : vector<1x8x128xf32> to vector<8x128xf32>
      %106 = vector.broadcast %81 : vector<8x1xf32> to vector<8x128xf32>
      %107 = arith.subf %105, %106 : vector<8x128xf32>
      %108 = vector.broadcast %103 : vector<8x1xf32> to vector<8x128xf32>
      %109 = arith.mulf %107, %108 : vector<8x128xf32>
      %c0_67 = arith.constant 0 : index
      %c0_68 = arith.constant 0 : index
      %c0_69 = arith.constant 0 : index
      %110 = vector.load %arg8[%c0_67, %c0_68, %c0_69] : memref<1x8x256xf32, #tpu.memory_space<vmem>>, vector<1x8x128xf32>
      %111 = vector.shape_cast %110 : vector<1x8x128xf32> to vector<8x128xf32>
      %112 = vector.shape_cast %109 : vector<8x128xf32> to vector<1x8x128xf32>
      tpu.vector_store %arg8[%c0_67, %c0_68, %c0_69], %112 {strides = array<i32>} : memref<1x8x256xf32, #tpu.memory_space<vmem>>, vector<1x8x128xf32>,
      %c1_70 = arith.constant 1 : index
      %c0_71 = arith.constant 0 : index
      %c0_72 = arith.constant 0 : index
      %113 = vector.load %arg9[%c1_70, %c0_71, %c0_72] : memref<2x8x128xf32, #tpu.memory_space<vmem>>, vector<1x8x128xf32>
      %114 = vector.shape_cast %113 : vector<1x8x128xf32> to vector<8x128xf32>
      %115 = vector.broadcast %81 : vector<8x1xf32> to vector<8x128xf32>
      %116 = arith.subf %114, %115 : vector<8x128xf32>
      %117 = vector.broadcast %103 : vector<8x1xf32> to vector<8x128xf32>
      %118 = arith.mulf %116, %117 : vector<8x128xf32>
      %c0_73 = arith.constant 0 : index
      %c0_74 = arith.constant 0 : index
      %c128 = arith.constant 128 : index
      %119 = vector.load %arg8[%c0_73, %c0_74, %c128] : memref<1x8x256xf32, #tpu.memory_space<vmem>>, vector<1x8x128xf32>
      %120 = vector.shape_cast %119 : vector<1x8x128xf32> to vector<8x128xf32>
      %121 = vector.shape_cast %118 : vector<8x128xf32> to vector<1x8x128xf32>
      tpu.vector_store %arg8[%c0_73, %c0_74, %c128], %121 {strides = array<i32>} : memref<1x8x256xf32, #tpu.memory_space<vmem>>, vector<1x8x128xf32>,
    } else {
    }
    return
  }
  func.func @transform_0(%arg0: i32, %arg1: i32, %arg2: i32) -> (i32, i32, i32, i32) {
    %c0_i32 = arith.constant 0 : i32
    %c0_i32_0 = arith.constant 0 : i32
    %c0_i32_1 = arith.constant 0 : i32
    %c0_i32_2 = arith.constant 0 : i32
    return %arg0, %c0_i32, %c0_i32_0, %c0_i32_1 : i32, i32, i32, i32
  }
  func.func @transform_1(%arg0: i32, %arg1: i32, %arg2: i32) -> (i32, i32) {
    %c0_i32 = arith.constant 0 : i32
    %c0_i32_0 = arith.constant 0 : i32
    return %arg1, %c0_i32 : i32, i32
  }
  func.func @transform_2(%arg0: i32, %arg1: i32, %arg2: i32) -> (i32, i32, i32) {
    %c0_i32 = arith.constant 0 : i32
    %c0_i32_0 = arith.constant 0 : i32
    return %arg0, %c0_i32, %arg2 : i32, i32, i32
  }
  func.func @transform_3(%arg0: i32, %arg1: i32, %arg2: i32) -> (i32, i32) {
    %c0_i32 = arith.constant 0 : i32
    %c0_i32_0 = arith.constant 0 : i32
    return %arg1, %c0_i32 : i32, i32
  }
  func.func @transform_4(%arg0: i32, %arg1: i32, %arg2: i32) -> (i32, i32) {
    %c0_i32 = arith.constant 0 : i32
    %c0_i32_0 = arith.constant 0 : i32
    return %arg1, %c0_i32 : i32, i32
  }
  func.func @transform_5(%arg0: i32, %arg1: i32, %arg2: i32) -> (i32, i32, i32) {
    %c0_i32 = arith.constant 0 : i32
    %c0_i32_0 = arith.constant 0 : i32
    return %arg0, %arg1, %c0_i32 : i32, i32, i32
  }
}

module attributes {stable_mosaic.version = 11 : i64} {
  func.func @_sg_layer_kernel(%arg0: i32, %arg1: i32, %arg2: i32, %arg3: memref<1x18x18x4xbf16, #tpu.memory_space<vmem>>, %arg4: memref<9x8x4xbf16, #tpu.memory_space<vmem>>, %arg5: memref<1x1x128xf32, #tpu.memory_space<vmem>>, %arg6: memref<8x1xf32, #tpu.memory_space<vmem>>, %arg7: memref<8x1xf32, #tpu.memory_space<vmem>>, %arg8: memref<1x8x256xf32, #tpu.memory_space<vmem>>, %arg9: memref<2x8x128xf32, #tpu.memory_space<vmem>>) attributes {dimension_semantics = [#tpu.dimension_semantics<parallel>, #tpu.dimension_semantics<parallel>, #tpu.dimension_semantics<arbitrary>], iteration_bounds = array<i64: 2, 2, 2>, scalar_prefetch = 0 : i64, scratch_operands = 1 : i64, tpu.core_type = #tpu.core_type<tc>, window_params = [{transform_indices = @transform_0, window_bounds = array<i64: 1, 18, 18, 4>}, {transform_indices = @transform_1, window_bounds = array<i64: 9, 8, 4>}, {transform_indices = @transform_2, window_bounds = array<i64: 1, 1, 128>}, {transform_indices = @transform_3, window_bounds = array<i64: 8, 1>}, {transform_indices = @transform_4, window_bounds = array<i64: 8, 1>}, {transform_indices = @transform_5, window_bounds = array<i64: 1, 8, 256>}]} {
    %c8_i32 = arith.constant 8 : i32
    %0 = arith.muli %arg2, %c8_i32 : i32
    %1 = tpu.assume_multiple %0, 8 : i32
    %c0_i32 = arith.constant 0 : i32
    %2 = arith.addi %1, %c0_i32 : i32
    %c0 = arith.constant 0 : index
    %3 = arith.index_cast %2 : i32 to index
    %c0_0 = arith.constant 0 : index
    %c0_1 = arith.constant 0 : index
    %4 = vector.load %arg3[%c0, %3, %c0_0, %c0_1] : memref<1x18x18x4xbf16, #tpu.memory_space<vmem>>, vector<1x8x16x4xbf16>
    %5 = vector.shape_cast %4 : vector<1x8x16x4xbf16> to vector<128x4xbf16>
    %c0_i32_2 = arith.constant 0 : i32
    %6 = arith.addi %1, %c0_i32_2 : i32
    %c0_3 = arith.constant 0 : index
    %7 = arith.index_cast %6 : i32 to index
    %c1 = arith.constant 1 : index
    %c0_4 = arith.constant 0 : index
    %8 = vector.load %arg3[%c0_3, %7, %c1, %c0_4] : memref<1x18x18x4xbf16, #tpu.memory_space<vmem>>, vector<1x8x16x4xbf16>
    %9 = vector.shape_cast %8 : vector<1x8x16x4xbf16> to vector<128x4xbf16>
    %c0_i32_5 = arith.constant 0 : i32
    %10 = arith.addi %1, %c0_i32_5 : i32
    %c0_6 = arith.constant 0 : index
    %11 = arith.index_cast %10 : i32 to index
    %c2 = arith.constant 2 : index
    %c0_7 = arith.constant 0 : index
    %12 = vector.load %arg3[%c0_6, %11, %c2, %c0_7] : memref<1x18x18x4xbf16, #tpu.memory_space<vmem>>, vector<1x8x16x4xbf16>
    %13 = vector.shape_cast %12 : vector<1x8x16x4xbf16> to vector<128x4xbf16>
    %c1_i32 = arith.constant 1 : i32
    %14 = arith.addi %1, %c1_i32 : i32
    %c0_8 = arith.constant 0 : index
    %15 = arith.index_cast %14 : i32 to index
    %c0_9 = arith.constant 0 : index
    %c0_10 = arith.constant 0 : index
    %16 = vector.load %arg3[%c0_8, %15, %c0_9, %c0_10] : memref<1x18x18x4xbf16, #tpu.memory_space<vmem>>, vector<1x8x16x4xbf16>
    %17 = vector.shape_cast %16 : vector<1x8x16x4xbf16> to vector<128x4xbf16>
    %c1_i32_11 = arith.constant 1 : i32
    %18 = arith.addi %1, %c1_i32_11 : i32
    %c0_12 = arith.constant 0 : index
    %19 = arith.index_cast %18 : i32 to index
    %c1_13 = arith.constant 1 : index
    %c0_14 = arith.constant 0 : index
    %20 = vector.load %arg3[%c0_12, %19, %c1_13, %c0_14] : memref<1x18x18x4xbf16, #tpu.memory_space<vmem>>, vector<1x8x16x4xbf16>
    %21 = vector.shape_cast %20 : vector<1x8x16x4xbf16> to vector<128x4xbf16>
    %c1_i32_15 = arith.constant 1 : i32
    %22 = arith.addi %1, %c1_i32_15 : i32
    %c0_16 = arith.constant 0 : index
    %23 = arith.index_cast %22 : i32 to index
    %c2_17 = arith.constant 2 : index
    %c0_18 = arith.constant 0 : index
    %24 = vector.load %arg3[%c0_16, %23, %c2_17, %c0_18] : memref<1x18x18x4xbf16, #tpu.memory_space<vmem>>, vector<1x8x16x4xbf16>
    %25 = vector.shape_cast %24 : vector<1x8x16x4xbf16> to vector<128x4xbf16>
    %c2_i32 = arith.constant 2 : i32
    %26 = arith.addi %1, %c2_i32 : i32
    %c0_19 = arith.constant 0 : index
    %27 = arith.index_cast %26 : i32 to index
    %c0_20 = arith.constant 0 : index
    %c0_21 = arith.constant 0 : index
    %28 = vector.load %arg3[%c0_19, %27, %c0_20, %c0_21] : memref<1x18x18x4xbf16, #tpu.memory_space<vmem>>, vector<1x8x16x4xbf16>
    %29 = vector.shape_cast %28 : vector<1x8x16x4xbf16> to vector<128x4xbf16>
    %c2_i32_22 = arith.constant 2 : i32
    %30 = arith.addi %1, %c2_i32_22 : i32
    %c0_23 = arith.constant 0 : index
    %31 = arith.index_cast %30 : i32 to index
    %c1_24 = arith.constant 1 : index
    %c0_25 = arith.constant 0 : index
    %32 = vector.load %arg3[%c0_23, %31, %c1_24, %c0_25] : memref<1x18x18x4xbf16, #tpu.memory_space<vmem>>, vector<1x8x16x4xbf16>
    %33 = vector.shape_cast %32 : vector<1x8x16x4xbf16> to vector<128x4xbf16>
    %c2_i32_26 = arith.constant 2 : i32
    %34 = arith.addi %1, %c2_i32_26 : i32
    %c0_27 = arith.constant 0 : index
    %35 = arith.index_cast %34 : i32 to index
    %c2_28 = arith.constant 2 : index
    %c0_29 = arith.constant 0 : index
    %36 = vector.load %arg3[%c0_27, %35, %c2_28, %c0_29] : memref<1x18x18x4xbf16, #tpu.memory_space<vmem>>, vector<1x8x16x4xbf16>
    %37 = vector.shape_cast %36 : vector<1x8x16x4xbf16> to vector<128x4xbf16>
    %cst = arith.constant 0.000000e+00 : f32
    %38 = vector.broadcast %cst : f32 to vector<8x128xf32>
    %c0_30 = arith.constant 0 : index
    %c0_31 = arith.constant 0 : index
    %c0_32 = arith.constant 0 : index
    %39 = vector.load %arg4[%c0_30, %c0_31, %c0_32] : memref<9x8x4xbf16, #tpu.memory_space<vmem>>, vector<1x8x4xbf16>
    %40 = vector.shape_cast %39 : vector<1x8x4xbf16> to vector<8x4xbf16>
    %cst_33 = arith.constant dense<0.000000e+00> : vector<8x128xf32>
    %41 = tpu.matmul %40, %5, %cst_33 {dimension_numbers = #tpu.dot_dimension_numbers<[1], [1], [0], [0], [0, 0, 1, 0], [], []>} : vector<8x4xbf16>, vector<128x4xbf16>, vector<8x128xf32> -> vector<8x128xf32>
    %42 = arith.addf %38, %41 : vector<8x128xf32>
    %c1_34 = arith.constant 1 : index
    %c0_35 = arith.constant 0 : index
    %c0_36 = arith.constant 0 : index
    %43 = vector.load %arg4[%c1_34, %c0_35, %c0_36] : memref<9x8x4xbf16, #tpu.memory_space<vmem>>, vector<1x8x4xbf16>
    %44 = vector.shape_cast %43 : vector<1x8x4xbf16> to vector<8x4xbf16>
    %cst_37 = arith.constant dense<0.000000e+00> : vector<8x128xf32>
    %45 = tpu.matmul %44, %9, %cst_37 {dimension_numbers = #tpu.dot_dimension_numbers<[1], [1], [0], [0], [0, 0, 1, 0], [], []>} : vector<8x4xbf16>, vector<128x4xbf16>, vector<8x128xf32> -> vector<8x128xf32>
    %46 = arith.addf %42, %45 : vector<8x128xf32>
    %c2_38 = arith.constant 2 : index
    %c0_39 = arith.constant 0 : index
    %c0_40 = arith.constant 0 : index
    %47 = vector.load %arg4[%c2_38, %c0_39, %c0_40] : memref<9x8x4xbf16, #tpu.memory_space<vmem>>, vector<1x8x4xbf16>
    %48 = vector.shape_cast %47 : vector<1x8x4xbf16> to vector<8x4xbf16>
    %cst_41 = arith.constant dense<0.000000e+00> : vector<8x128xf32>
    %49 = tpu.matmul %48, %13, %cst_41 {dimension_numbers = #tpu.dot_dimension_numbers<[1], [1], [0], [0], [0, 0, 1, 0], [], []>} : vector<8x4xbf16>, vector<128x4xbf16>, vector<8x128xf32> -> vector<8x128xf32>
    %50 = arith.addf %46, %49 : vector<8x128xf32>
    %c3 = arith.constant 3 : index
    %c0_42 = arith.constant 0 : index
    %c0_43 = arith.constant 0 : index
    %51 = vector.load %arg4[%c3, %c0_42, %c0_43] : memref<9x8x4xbf16, #tpu.memory_space<vmem>>, vector<1x8x4xbf16>
    %52 = vector.shape_cast %51 : vector<1x8x4xbf16> to vector<8x4xbf16>
    %cst_44 = arith.constant dense<0.000000e+00> : vector<8x128xf32>
    %53 = tpu.matmul %52, %17, %cst_44 {dimension_numbers = #tpu.dot_dimension_numbers<[1], [1], [0], [0], [0, 0, 1, 0], [], []>} : vector<8x4xbf16>, vector<128x4xbf16>, vector<8x128xf32> -> vector<8x128xf32>
    %54 = arith.addf %50, %53 : vector<8x128xf32>
    %c4 = arith.constant 4 : index
    %c0_45 = arith.constant 0 : index
    %c0_46 = arith.constant 0 : index
    %55 = vector.load %arg4[%c4, %c0_45, %c0_46] : memref<9x8x4xbf16, #tpu.memory_space<vmem>>, vector<1x8x4xbf16>
    %56 = vector.shape_cast %55 : vector<1x8x4xbf16> to vector<8x4xbf16>
    %cst_47 = arith.constant dense<0.000000e+00> : vector<8x128xf32>
    %57 = tpu.matmul %56, %21, %cst_47 {dimension_numbers = #tpu.dot_dimension_numbers<[1], [1], [0], [0], [0, 0, 1, 0], [], []>} : vector<8x4xbf16>, vector<128x4xbf16>, vector<8x128xf32> -> vector<8x128xf32>
    %58 = arith.addf %54, %57 : vector<8x128xf32>
    %c5 = arith.constant 5 : index
    %c0_48 = arith.constant 0 : index
    %c0_49 = arith.constant 0 : index
    %59 = vector.load %arg4[%c5, %c0_48, %c0_49] : memref<9x8x4xbf16, #tpu.memory_space<vmem>>, vector<1x8x4xbf16>
    %60 = vector.shape_cast %59 : vector<1x8x4xbf16> to vector<8x4xbf16>
    %cst_50 = arith.constant dense<0.000000e+00> : vector<8x128xf32>
    %61 = tpu.matmul %60, %25, %cst_50 {dimension_numbers = #tpu.dot_dimension_numbers<[1], [1], [0], [0], [0, 0, 1, 0], [], []>} : vector<8x4xbf16>, vector<128x4xbf16>, vector<8x128xf32> -> vector<8x128xf32>
    %62 = arith.addf %58, %61 : vector<8x128xf32>
    %c6 = arith.constant 6 : index
    %c0_51 = arith.constant 0 : index
    %c0_52 = arith.constant 0 : index
    %63 = vector.load %arg4[%c6, %c0_51, %c0_52] : memref<9x8x4xbf16, #tpu.memory_space<vmem>>, vector<1x8x4xbf16>
    %64 = vector.shape_cast %63 : vector<1x8x4xbf16> to vector<8x4xbf16>
    %cst_53 = arith.constant dense<0.000000e+00> : vector<8x128xf32>
    %65 = tpu.matmul %64, %29, %cst_53 {dimension_numbers = #tpu.dot_dimension_numbers<[1], [1], [0], [0], [0, 0, 1, 0], [], []>} : vector<8x4xbf16>, vector<128x4xbf16>, vector<8x128xf32> -> vector<8x128xf32>
    %66 = arith.addf %62, %65 : vector<8x128xf32>
    %c7 = arith.constant 7 : index
    %c0_54 = arith.constant 0 : index
    %c0_55 = arith.constant 0 : index
    %67 = vector.load %arg4[%c7, %c0_54, %c0_55] : memref<9x8x4xbf16, #tpu.memory_space<vmem>>, vector<1x8x4xbf16>
    %68 = vector.shape_cast %67 : vector<1x8x4xbf16> to vector<8x4xbf16>
    %cst_56 = arith.constant dense<0.000000e+00> : vector<8x128xf32>
    %69 = tpu.matmul %68, %33, %cst_56 {dimension_numbers = #tpu.dot_dimension_numbers<[1], [1], [0], [0], [0, 0, 1, 0], [], []>} : vector<8x4xbf16>, vector<128x4xbf16>, vector<8x128xf32> -> vector<8x128xf32>
    %70 = arith.addf %66, %69 : vector<8x128xf32>
    %c8 = arith.constant 8 : index
    %c0_57 = arith.constant 0 : index
    %c0_58 = arith.constant 0 : index
    %71 = vector.load %arg4[%c8, %c0_57, %c0_58] : memref<9x8x4xbf16, #tpu.memory_space<vmem>>, vector<1x8x4xbf16>
    %72 = vector.shape_cast %71 : vector<1x8x4xbf16> to vector<8x4xbf16>
    %cst_59 = arith.constant dense<0.000000e+00> : vector<8x128xf32>
    %73 = tpu.matmul %72, %37, %cst_59 {dimension_numbers = #tpu.dot_dimension_numbers<[1], [1], [0], [0], [0, 0, 1, 0], [], []>} : vector<8x4xbf16>, vector<128x4xbf16>, vector<8x128xf32> -> vector<8x128xf32>
    %74 = arith.addf %70, %73 : vector<8x128xf32>
    %c0_60 = arith.constant 0 : index
    %c0_61 = arith.constant 0 : index
    %75 = vector.load %arg6[%c0_60, %c0_61] : memref<8x1xf32, #tpu.memory_space<vmem>>, vector<8x1xf32>
    %c0_62 = arith.constant 0 : index
    %c0_63 = arith.constant 0 : index
    %c0_64 = arith.constant 0 : index
    %76 = vector.load %arg5[%c0_62, %c0_63, %c0_64] : memref<1x1x128xf32, #tpu.memory_space<vmem>>, vector<1x1x128xf32>
    %77 = vector.shape_cast %76 : vector<1x1x128xf32> to vector<1x128xf32>
    %78 = vector.broadcast %75 : vector<8x1xf32> to vector<8x128xf32>
    %79 = vector.broadcast %77 : vector<1x128xf32> to vector<8x128xf32>
    %80 = arith.mulf %78, %79 : vector<8x128xf32>
    %81 = arith.addf %74, %80 : vector<8x128xf32>
    %c0_65 = arith.constant 0 : index
    %c0_66 = arith.constant 0 : index
    %82 = vector.load %arg7[%c0_65, %c0_66] : memref<8x1xf32, #tpu.memory_space<vmem>>, vector<8x1xf32>
    %83 = vector.broadcast %82 : vector<8x1xf32> to vector<8x128xf32>
    %84 = arith.addf %81, %83 : vector<8x128xf32>
    %cst_67 = arith.constant 0.000000e+00 : f32
    %85 = vector.broadcast %cst_67 : f32 to vector<8x128xf32>
    %86 = arith.cmpf ogt, %84, %85 : vector<8x128xf32>
    %cst_68 = arith.constant 2.000000e-01 : f32
    %87 = vector.broadcast %cst_68 : f32 to vector<8x128xf32>
    %88 = arith.mulf %87, %84 : vector<8x128xf32>
    %89 = arith.select %86, %84, %88 : vector<8x128xi1>, vector<8x128xf32>
    %90 = arith.index_cast %arg2 : i32 to index
    %c0_69 = arith.constant 0 : index
    %c0_70 = arith.constant 0 : index
    %91 = vector.load %arg9[%90, %c0_69, %c0_70] : memref<2x8x128xf32, #tpu.memory_space<vmem>>, vector<1x8x128xf32>
    %92 = vector.shape_cast %91 : vector<1x8x128xf32> to vector<8x128xf32>
    %93 = vector.shape_cast %89 : vector<8x128xf32> to vector<1x8x128xf32>
    tpu.vector_store %arg9[%90, %c0_69, %c0_70], %93 {strides = array<i32>} : memref<2x8x128xf32, #tpu.memory_space<vmem>>, vector<1x8x128xf32>,
    %c1_i32_71 = arith.constant 1 : i32
    %94 = arith.cmpi eq, %arg2, %c1_i32_71 : i32
    %95 = arith.extui %94 : i1 to i32
    %c0_i32_72 = arith.constant 0 : i32
    %96 = arith.cmpi ne, %95, %c0_i32_72 : i32
    scf.if %96 {
      %c0_73 = arith.constant 0 : index
      %c0_74 = arith.constant 0 : index
      %c0_75 = arith.constant 0 : index
      %97 = vector.load %arg9[%c0_73, %c0_74, %c0_75] : memref<2x8x128xf32, #tpu.memory_space<vmem>>, vector<1x8x128xf32>
      %98 = vector.shape_cast %97 : vector<1x8x128xf32> to vector<8x128xf32>
      %c1_76 = arith.constant 1 : index
      %c0_77 = arith.constant 0 : index
      %c0_78 = arith.constant 0 : index
      %99 = vector.load %arg9[%c1_76, %c0_77, %c0_78] : memref<2x8x128xf32, #tpu.memory_space<vmem>>, vector<1x8x128xf32>
      %100 = vector.shape_cast %99 : vector<1x8x128xf32> to vector<8x128xf32>
      %101 = arith.addf %98, %100 : vector<8x128xf32>
      %cst_79 = arith.constant dense<0.000000e+00> : vector<8xf32>
      %102 = vector.multi_reduction <add>, %101, %cst_79 [1] : vector<8x128xf32> to vector<8xf32>
      %103 = vector.shape_cast %102 : vector<8xf32> to vector<8x1xf32>
      %cst_80 = arith.constant 3.906250e-03 : f32
      %104 = vector.broadcast %cst_80 : f32 to vector<8x1xf32>
      %105 = arith.mulf %103, %104 : vector<8x1xf32>
      %cst_81 = arith.constant 0.000000e+00 : f32
      %106 = vector.broadcast %cst_81 : f32 to vector<8x1xf32>
      %c0_82 = arith.constant 0 : index
      %c0_83 = arith.constant 0 : index
      %c0_84 = arith.constant 0 : index
      %107 = vector.load %arg9[%c0_82, %c0_83, %c0_84] : memref<2x8x128xf32, #tpu.memory_space<vmem>>, vector<1x8x128xf32>
      %108 = vector.shape_cast %107 : vector<1x8x128xf32> to vector<8x128xf32>
      %109 = vector.broadcast %105 : vector<8x1xf32> to vector<8x128xf32>
      %110 = arith.subf %108, %109 : vector<8x128xf32>
      %111 = arith.mulf %110, %110 : vector<8x128xf32>
      %cst_85 = arith.constant dense<0.000000e+00> : vector<8xf32>
      %112 = vector.multi_reduction <add>, %111, %cst_85 [1] : vector<8x128xf32> to vector<8xf32>
      %113 = vector.shape_cast %112 : vector<8xf32> to vector<8x1xf32>
      %114 = arith.addf %106, %113 : vector<8x1xf32>
      %c1_86 = arith.constant 1 : index
      %c0_87 = arith.constant 0 : index
      %c0_88 = arith.constant 0 : index
      %115 = vector.load %arg9[%c1_86, %c0_87, %c0_88] : memref<2x8x128xf32, #tpu.memory_space<vmem>>, vector<1x8x128xf32>
      %116 = vector.shape_cast %115 : vector<1x8x128xf32> to vector<8x128xf32>
      %117 = vector.broadcast %105 : vector<8x1xf32> to vector<8x128xf32>
      %118 = arith.subf %116, %117 : vector<8x128xf32>
      %119 = arith.mulf %118, %118 : vector<8x128xf32>
      %cst_89 = arith.constant dense<0.000000e+00> : vector<8xf32>
      %120 = vector.multi_reduction <add>, %119, %cst_89 [1] : vector<8x128xf32> to vector<8xf32>
      %121 = vector.shape_cast %120 : vector<8xf32> to vector<8x1xf32>
      %122 = arith.addf %114, %121 : vector<8x1xf32>
      %cst_90 = arith.constant 3.906250e-03 : f32
      %123 = vector.broadcast %cst_90 : f32 to vector<8x1xf32>
      %124 = arith.mulf %122, %123 : vector<8x1xf32>
      %cst_91 = arith.constant 9.99999974E-6 : f32
      %125 = vector.broadcast %cst_91 : f32 to vector<8x1xf32>
      %126 = arith.addf %124, %125 : vector<8x1xf32>
      %127 = math.rsqrt %126 : vector<8x1xf32>
      %c0_92 = arith.constant 0 : index
      %c0_93 = arith.constant 0 : index
      %c0_94 = arith.constant 0 : index
      %128 = vector.load %arg9[%c0_92, %c0_93, %c0_94] : memref<2x8x128xf32, #tpu.memory_space<vmem>>, vector<1x8x128xf32>
      %129 = vector.shape_cast %128 : vector<1x8x128xf32> to vector<8x128xf32>
      %130 = vector.broadcast %105 : vector<8x1xf32> to vector<8x128xf32>
      %131 = arith.subf %129, %130 : vector<8x128xf32>
      %132 = vector.broadcast %127 : vector<8x1xf32> to vector<8x128xf32>
      %133 = arith.mulf %131, %132 : vector<8x128xf32>
      %c0_95 = arith.constant 0 : index
      %c0_96 = arith.constant 0 : index
      %c0_97 = arith.constant 0 : index
      %134 = vector.load %arg8[%c0_95, %c0_96, %c0_97] : memref<1x8x256xf32, #tpu.memory_space<vmem>>, vector<1x8x128xf32>
      %135 = vector.shape_cast %134 : vector<1x8x128xf32> to vector<8x128xf32>
      %136 = vector.shape_cast %133 : vector<8x128xf32> to vector<1x8x128xf32>
      tpu.vector_store %arg8[%c0_95, %c0_96, %c0_97], %136 {strides = array<i32>} : memref<1x8x256xf32, #tpu.memory_space<vmem>>, vector<1x8x128xf32>,
      %c1_98 = arith.constant 1 : index
      %c0_99 = arith.constant 0 : index
      %c0_100 = arith.constant 0 : index
      %137 = vector.load %arg9[%c1_98, %c0_99, %c0_100] : memref<2x8x128xf32, #tpu.memory_space<vmem>>, vector<1x8x128xf32>
      %138 = vector.shape_cast %137 : vector<1x8x128xf32> to vector<8x128xf32>
      %139 = vector.broadcast %105 : vector<8x1xf32> to vector<8x128xf32>
      %140 = arith.subf %138, %139 : vector<8x128xf32>
      %141 = vector.broadcast %127 : vector<8x1xf32> to vector<8x128xf32>
      %142 = arith.mulf %140, %141 : vector<8x128xf32>
      %c0_101 = arith.constant 0 : index
      %c0_102 = arith.constant 0 : index
      %c128 = arith.constant 128 : index
      %143 = vector.load %arg8[%c0_101, %c0_102, %c128] : memref<1x8x256xf32, #tpu.memory_space<vmem>>, vector<1x8x128xf32>
      %144 = vector.shape_cast %143 : vector<1x8x128xf32> to vector<8x128xf32>
      %145 = vector.shape_cast %142 : vector<8x128xf32> to vector<1x8x128xf32>
      tpu.vector_store %arg8[%c0_101, %c0_102, %c128], %145 {strides = array<i32>} : memref<1x8x256xf32, #tpu.memory_space<vmem>>, vector<1x8x128xf32>,
    } else {
    }
    return
  }
  func.func @transform_0(%arg0: i32, %arg1: i32, %arg2: i32) -> (i32, i32, i32, i32) {
    %c0_i32 = arith.constant 0 : i32
    %c0_i32_0 = arith.constant 0 : i32
    %c0_i32_1 = arith.constant 0 : i32
    %c0_i32_2 = arith.constant 0 : i32
    return %arg0, %c0_i32, %c0_i32_0, %c0_i32_1 : i32, i32, i32, i32
  }
  func.func @transform_1(%arg0: i32, %arg1: i32, %arg2: i32) -> (i32, i32, i32) {
    %c0_i32 = arith.constant 0 : i32
    %c0_i32_0 = arith.constant 0 : i32
    %c0_i32_1 = arith.constant 0 : i32
    return %c0_i32, %arg1, %c0_i32_0 : i32, i32, i32
  }
  func.func @transform_2(%arg0: i32, %arg1: i32, %arg2: i32) -> (i32, i32, i32) {
    %c0_i32 = arith.constant 0 : i32
    %c0_i32_0 = arith.constant 0 : i32
    return %arg0, %c0_i32, %arg2 : i32, i32, i32
  }
  func.func @transform_3(%arg0: i32, %arg1: i32, %arg2: i32) -> (i32, i32) {
    %c0_i32 = arith.constant 0 : i32
    %c0_i32_0 = arith.constant 0 : i32
    return %arg1, %c0_i32 : i32, i32
  }
  func.func @transform_4(%arg0: i32, %arg1: i32, %arg2: i32) -> (i32, i32) {
    %c0_i32 = arith.constant 0 : i32
    %c0_i32_0 = arith.constant 0 : i32
    return %arg1, %c0_i32 : i32, i32
  }
  func.func @transform_5(%arg0: i32, %arg1: i32, %arg2: i32) -> (i32, i32, i32) {
    %c0_i32 = arith.constant 0 : i32
    %c0_i32_0 = arith.constant 0 : i32
    return %arg0, %arg1, %c0_i32 : i32, i32, i32
  }
}

</mosaic_0001>

<llo_original>
// kernel: tpu_custom_call.1
$region0: #{tpu_custom_call.1}
  #allocation0 [shape = 'u32[]', space=smem, size = 0x4, offset = 0x4, fixed_abs, tag = 'smem constant byte address 0x4 - core index']
  #allocation1 [shape = 'u32[144,128]{1,0:T(1,128)}', space=vmem, size = 0x12000, scoped, tag = 'internal scratch']
  #allocation2 [shape = 'f32[2,8,128]{2,1,0:T(8,128)}', space=vmem, size = 0x2000, scoped, tag = 'scratch operand']
  %s0 = inlined_call_operand.vmem [shape: bf16[2,18,18,4], index: 0, kind: input, shape index: {}]
  %s1 = inlined_call_operand.vmem [shape: bf16[16,36], index: 1, kind: input, shape index: {}]
  %s2 = inlined_call_operand.vmem [shape: f32[2,1,256], index: 2, kind: input, shape index: {}]
  %s3 = inlined_call_operand.vmem [shape: f32[16,1], index: 3, kind: input, shape index: {}]
  %s4 = inlined_call_operand.vmem [shape: f32[16,1], index: 4, kind: input, shape index: {}]
  %s5 = inlined_call_operand.hbm [shape: f32[2,16,256], index: 5, kind: output, shape index: {}]
  %s6 = sld [smem:[#allocation0]]
  $region57: #{tpu_custom_call.1} parent=0
    _
  %s8 = ssub.s32 1, %s6
  %s9 = scalar_select 0, %s8, %s6
  $region1: #{tpu_custom_call.1} parent=0
    #allocation3 [shape = 'u8[16384]{0}', space=vmem, size = 0x4000, scoped, tag = 'output window, operand 0']
    #allocation4 [shape = 's32[2]{0}', space=sflag, size = 0x8, scoped, tag = 'scoped memory for tpu_custom_call.1']
    %10 = vsyncpa [#allocation4], 0
    %s11 = scalar_lea.sflag [#allocation4], 1
    %12 = vsyncpa %s11, 0
    loop: start=0, step=1, limit=10
    $region2: #{tpu_custom_call.1} parent=1 // loop_pre_header
      _
    $region3: #{tpu_custom_call.1} parent=1 // loop_header
      %s14 = sphi 0, %s18
      %p15 = scmp.ge.s32.totalorder %s14, 10
      %s21 = sphi 0, %s40
      %s22 = sphi 0, %s36
      %s23 = sphi 0, %s32
      %s24 = sphi 0, %s21
      %s25 = sphi 0, %s22
      %s26 = sphi 0, %s23
      %s27 = sphi 0, %s24
      %s28 = sphi 0, %s25
      %s29 = sphi 0, %s26
      %s43 = sphi 0, %s45
      %s46 = sphi 0, %s43
      %s47 = sphi 0, %s46
      %s63 = sphi 0, %s47
      %s69 = sphi 0, %s71
      %s72 = sphi 0, %s69
      %s73 = sphi 0, %s72
      %s89 = sphi 0, %s73
      %s97 = sphi 0, %s99
      %s100 = sphi 0, %s97
      %s101 = sphi 0, %s100
      %s117 = sphi 0, %s101
      %s123 = sphi 0, %s125
      %s126 = sphi 0, %s123
      %s127 = sphi 0, %s126
      %s143 = sphi 0, %s127
      %s149 = sphi 0, %s151
      %s152 = sphi 0, %s149
      %s153 = sphi 0, %s152
      %s169 = sphi 0, %s153
      %s177 = sphi 0, %s179
      %s180 = sphi 0, %s177
      %s181 = sphi 0, %s180
      %s197 = sphi 0, %s181
    $region4: #{tpu_custom_call.1} parent=1 // loop_header_branch
      %17 = sbr.rel (%p15) target = $region8
    $region5: #{tpu_custom_call.1} parent=1 // loop_body
      %s19 = ssub.s32 %s14, 1
      %s20 = ssub.s32 %s14, 2
      %s30 = sadd.s32 1, %s23
      %p31 = scmp.ge.s32.totalorder %s30, 2
      %s32 = scalar_select %p31, 0, %s30
      %s33 = sadd.s32 1, %s22
      %s34 = scalar_select %p31, %s33, %s22
      %p35 = scmp.ge.s32.totalorder %s34, 2
      %s36 = scalar_select %p35, 0, %s34
      %s37 = sadd.s32 1, %s21
      %s38 = scalar_select %p35, %s37, %s21
      %p39 = scmp.ge.s32.totalorder %s38, 2
      %s40 = scalar_select %p39, 0, %s38
      %s41 = ssub.s32 %s21, %s40
      %p42 = scmp.eq.s32.totalorder %s41, 0
      %s44 = sadd.s32 %s43, 1
      %s45 = scalar_select %p42, %s43, %s44
      %p48 = pneg %p42
      %p49 = scmp.eq.s32.totalorder %s14, 7
      %p50 = por %p48, %p49
      %p51 = scmp.ne.s32.totalorder %s43, %s46
      %p52 = scmp.eq.s32.totalorder %s14, 0
      %p53 = por %p51, %p52
      %p54 = scmp.ne.s32.totalorder %s43, %s46
      %p55 = scmp.eq.s32.totalorder %s19, 7
      %p56 = por %p54, %p55
      %p57 = scmp.ne.s32.totalorder %s46, %s47
      %p58 = scmp.eq.s32.totalorder %s19, 0
      %p59 = por %p57, %p58
      %p60 = scmp.ne.s32.totalorder %s46, %s47
      %p61 = scmp.eq.s32.totalorder %s20, 7
      %p62 = por %p60, %p61
      %p64 = scmp.ne.s32.totalorder %s47, %s63
      %p65 = scmp.eq.s32.totalorder %s20, 0
      %p66 = por %p64, %p65
      %s67 = ssub.s32 %s22, %s36
      %p68 = scmp.eq.s32.totalorder %s67, 0
      %s70 = sadd.s32 %s69, 1
      %s71 = scalar_select %p68, %s69, %s70
      %p74 = pneg %p68
      %p75 = scmp.eq.s32.totalorder %s14, 7
      %p76 = por %p74, %p75
      %p77 = scmp.ne.s32.totalorder %s69, %s72
      %p78 = scmp.eq.s32.totalorder %s14, 0
      %p79 = por %p77, %p78
      %p80 = scmp.ne.s32.totalorder %s69, %s72
      %p81 = scmp.eq.s32.totalorder %s19, 7
      %p82 = por %p80, %p81
      %p83 = scmp.ne.s32.totalorder %s72, %s73
      %p84 = scmp.eq.s32.totalorder %s19, 0
      %p85 = por %p83, %p84
      %p86 = scmp.ne.s32.totalorder %s72, %s73
      %p87 = scmp.eq.s32.totalorder %s20, 7
      %p88 = por %p86, %p87
      %p90 = scmp.ne.s32.totalorder %s73, %s89
      %p91 = scmp.eq.s32.totalorder %s20, 0
      %p92 = por %p90, %p91
      %s93 = ssub.s32 %s21, %s40
      %s94 = ssub.s32 %s23, %s32
      %s95 = sor.u32 %s93, %s94
      %p96 = scmp.eq.s32.totalorder %s95, 0
      %s98 = sadd.s32 %s97, 1
      %s99 = scalar_select %p96, %s97, %s98
      %p102 = pneg %p96
      %p103 = scmp.eq.s32.totalorder %s14, 7
      %p104 = por %p102, %p103
      %p105 = scmp.ne.s32.totalorder %s97, %s100
      %p106 = scmp.eq.s32.totalorder %s14, 0
      %p107 = por %p105, %p106
      %p108 = scmp.ne.s32.totalorder %s97, %s100
      %p109 = scmp.eq.s32.totalorder %s19, 7
      %p110 = por %p108, %p109
      %p111 = scmp.ne.s32.totalorder %s100, %s101
      %p112 = scmp.eq.s32.totalorder %s19, 0
      %p113 = por %p111, %p112
      %p114 = scmp.ne.s32.totalorder %s100, %s101
      %p115 = scmp.eq.s32.totalorder %s20, 7
      %p116 = por %p114, %p115
      %p118 = scmp.ne.s32.totalorder %s101, %s117
      %p119 = scmp.eq.s32.totalorder %s20, 0
      %p120 = por %p118, %p119
      %s121 = ssub.s32 %s22, %s36
      %p122 = scmp.eq.s32.totalorder %s121, 0
      %s124 = sadd.s32 %s123, 1
      %s125 = scalar_select %p122, %s123, %s124
      %p128 = pneg %p122
      %p129 = scmp.eq.s32.totalorder %s14, 7
      %p130 = por %p128, %p129
      %p131 = scmp.ne.s32.totalorder %s123, %s126
      %p132 = scmp.eq.s32.totalorder %s14, 0
      %p133 = por %p131, %p132
      %p134 = scmp.ne.s32.totalorder %s123, %s126
      %p135 = scmp.eq.s32.totalorder %s19, 7
      %p136 = por %p134, %p135
      %p137 = scmp.ne.s32.totalorder %s126, %s127
      %p138 = scmp.eq.s32.totalorder %s19, 0
      %p139 = por %p137, %p138
      %p140 = scmp.ne.s32.totalorder %s126, %s127
      %p141 = scmp.eq.s32.totalorder %s20, 7
      %p142 = por %p140, %p141
      %p144 = scmp.ne.s32.totalorder %s127, %s143
      %p145 = scmp.eq.s32.totalorder %s20, 0
      %p146 = por %p144, %p145
      %s147 = ssub.s32 %s22, %s36
      %p148 = scmp.eq.s32.totalorder %s147, 0
      %s150 = sadd.s32 %s149, 1
      %s151 = scalar_select %p148, %s149, %s150
      %p154 = pneg %p148
      %p155 = scmp.eq.s32.totalorder %s14, 7
      %p156 = por %p154, %p155
      %p157 = scmp.ne.s32.totalorder %s149, %s152
      %p158 = scmp.eq.s32.totalorder %s14, 0
      %p159 = por %p157, %p158
      %p160 = scmp.ne.s32.totalorder %s149, %s152
      %p161 = scmp.eq.s32.totalorder %s19, 7
      %p162 = por %p160, %p161
      %p163 = scmp.ne.s32.totalorder %s152, %s153
      %p164 = scmp.eq.s32.totalorder %s19, 0
      %p165 = por %p163, %p164
      %p166 = scmp.ne.s32.totalorder %s152, %s153
      %p167 = scmp.eq.s32.totalorder %s20, 7
      %p168 = por %p166, %p167
      %p170 = scmp.ne.s32.totalorder %s153, %s169
      %p171 = scmp.eq.s32.totalorder %s20, 0
      %p172 = por %p170, %p171
      %s173 = ssub.s32 %s21, %s40
      %s174 = ssub.s32 %s22, %s36
      %s175 = sor.u32 %s173, %s174
      %p176 = scmp.eq.s32.totalorder %s175, 0
      %s178 = sadd.s32 %s177, 1
      %s179 = scalar_select %p176, %s177, %s178
      %p182 = pneg %p176
      %p183 = scmp.eq.s32.totalorder %s14, 7
      %p184 = por %p182, %p183
      %p185 = scmp.ne.s32.totalorder %s177, %s180
      %p186 = scmp.eq.s32.totalorder %s14, 0
      %p187 = por %p185, %p186
      %p188 = scmp.ne.s32.totalorder %s177, %s180
      %p189 = scmp.eq.s32.totalorder %s19, 7
      %p190 = por %p188, %p189
      %p191 = scmp.ne.s32.totalorder %s180, %s181
      %p192 = scmp.eq.s32.totalorder %s19, 0
      %p193 = por %p191, %p192
      %p194 = scmp.ne.s32.totalorder %s180, %s181
      %p195 = scmp.eq.s32.totalorder %s20, 7
      %p196 = por %p194, %p195
      %p198 = scmp.ne.s32.totalorder %s181, %s197
      %p199 = scmp.eq.s32.totalorder %s20, 0
      %p200 = por %p198, %p199
      %p201 = scmp.le.s32.totalorder 1, %s14
      %p202 = scmp.lt.s32.totalorder %s14, 9
      %p203 = pnand %p201, %p202
      %p204 = pneg %p203
      // Predicated region
      $region9: #{tpu_custom_call.1} parent=5 // pred_check
        _
      $region10: #{tpu_custom_call.1} parent=5 // pred_check_branch
        %206 = sbr.rel (%p203) target = $region12
      $region11: #{tpu_custom_call.1} parent=5 // pred_region
        %s207 = ssub.s32 %s14, 1
      $region12: #{tpu_custom_call.1} parent=5 // pred_fallthru
        _
      %p208 = scmp.lt.s32.totalorder %s14, 8
      // Predicated region
      $region13: #{tpu_custom_call.1} parent=5 // pred_check
        %p209 = pneg %p208
      $region14: #{tpu_custom_call.1} parent=5 // pred_check_branch
        %211 = sbr.rel (%p209) target = $region16
      $region15: #{tpu_custom_call.1} parent=5 // pred_region
        // Predicated region
        $region17: #{tpu_custom_call.1} parent=15 // pred_check
          %p212 = pneg %p53
        $region18: #{tpu_custom_call.1} parent=15 // pred_check_branch
          %214 = sbr.rel (%p212) target = $region20
        $region19: #{tpu_custom_call.1} parent=15 // pred_region
          %p215 = scmp.lt.s32.totalorder %s21, 1
          %s216 = scalar_select %p215, %s21, 1
          %s217 = smul.addr %s216, 54
          %s218 = smul.addr %s217, 4
          %s219 = scalar_lea.vmem %s0, %s218
        $region20: #{tpu_custom_call.1} parent=15 // pred_fallthru
          _
        // Predicated region
        $region21: #{tpu_custom_call.1} parent=15 // pred_check
          %p220 = pneg %p79
        $region22: #{tpu_custom_call.1} parent=15 // pred_check_branch
          %222 = sbr.rel (%p220) target = $region24
        $region23: #{tpu_custom_call.1} parent=15 // pred_region
          %p223 = scmp.lt.s32.totalorder %s22, 1
          %s224 = scalar_select %p223, %s22, 1
          %s225 = smul.addr %s224, 4
          %s226 = scalar_lea.vmem %s1, %s225
        $region24: #{tpu_custom_call.1} parent=15 // pred_fallthru
          _
        // Predicated region
        $region25: #{tpu_custom_call.1} parent=15 // pred_check
          %p227 = pneg %p107
        $region26: #{tpu_custom_call.1} parent=15 // pred_check_branch
          %229 = sbr.rel (%p227) target = $region28
        $region27: #{tpu_custom_call.1} parent=15 // pred_region
          %p230 = scmp.lt.s32.totalorder %s21, 1
          %s231 = scalar_select %p230, %s21, 1
          %p232 = scmp.lt.s32.totalorder %s23, 1
          %s233 = scalar_select %p232, %s23, 1
          %s234 = smul.addr %s231, 2
          %s235 = sadd.s32 %s233, %s234
          %s236 = scalar_lea.vmem %s2, %s235
        $region28: #{tpu_custom_call.1} parent=15 // pred_fallthru
          _
        // Predicated region
        $region29: #{tpu_custom_call.1} parent=15 // pred_check
          %p237 = pneg %p133
        $region30: #{tpu_custom_call.1} parent=15 // pred_check_branch
          %239 = sbr.rel (%p237) target = $region32
        $region31: #{tpu_custom_call.1} parent=15 // pred_region
          %p240 = scmp.lt.s32.totalorder %s22, 1
          %s241 = scalar_select %p240, %s22, 1
          %s242 = smul.addr %s241, 8
          %s243 = scalar_lea.vmem %s3, %s242
        $region32: #{tpu_custom_call.1} parent=15 // pred_fallthru
          _
        // Predicated region
        $region33: #{tpu_custom_call.1} parent=15 // pred_check
          %p244 = pneg %p159
        $region34: #{tpu_custom_call.1} parent=15 // pred_check_branch
          %246 = sbr.rel (%p244) target = $region36
        $region35: #{tpu_custom_call.1} parent=15 // pred_region
          %p247 = scmp.lt.s32.totalorder %s22, 1
          %s248 = scalar_select %p247, %s22, 1
          %s249 = smul.addr %s248, 8
          %s250 = scalar_lea.vmem %s4, %s249
        $region36: #{tpu_custom_call.1} parent=15 // pred_fallthru
          _
      $region16: #{tpu_custom_call.1} parent=5 // pred_fallthru
        _
      %p251 = scmp.le.s32.totalorder 1, %s14
      %p252 = scmp.lt.s32.totalorder %s14, 9
      %p253 = pnand %p251, %p252
      %p254 = pneg %p253
      // Predicated region
      $region37: #{tpu_custom_call.1} parent=5 // pred_check
        _
      $region38: #{tpu_custom_call.1} parent=5 // pred_check_branch
        %256 = sbr.rel (%p253) target = $region40
      $region39: #{tpu_custom_call.1} parent=5 // pred_region
        %s257 = ssub.s32 %s14, 1
        %p258 = scmp.lt.s32.totalorder %s24, 1
        %s259 = scalar_select %p258, %s24, 1
        %s260 = smul.addr %s259, 54
        %s261 = smul.addr %s260, 4
        %s262 = scalar_lea.vmem %s0, %s261
        %p263 = pneg %p59
        %p264 = pneg %p56
        %p265 = scmp.lt.s32.totalorder %s25, 1
        %s266 = scalar_select %p265, %s25, 1
        %s267 = smul.addr %s266, 4
        %s268 = scalar_lea.vmem %s1, %s267
        %p269 = pneg %p85
        %p270 = pneg %p82
        %p271 = scmp.lt.s32.totalorder %s24, 1
        %s272 = scalar_select %p271, %s24, 1
        %p273 = scmp.lt.s32.totalorder %s26, 1
        %s274 = scalar_select %p273, %s26, 1
        %s275 = smul.addr %s272, 2
        %s276 = sadd.s32 %s274, %s275
        %s277 = scalar_lea.vmem %s2, %s276
        %p278 = pneg %p113
        %p279 = pneg %p110
        %p280 = scmp.lt.s32.totalorder %s25, 1
        %s281 = scalar_select %p280, %s25, 1
        %s282 = smul.addr %s281, 8
        %s283 = scalar_lea.vmem %s3, %s282
        %p284 = pneg %p139
        %p285 = pneg %p136
        %p286 = scmp.lt.s32.totalorder %s25, 1
        %s287 = scalar_select %p286, %s25, 1
        %s288 = smul.addr %s287, 8
        %s289 = scalar_lea.vmem %s4, %s288
        %p290 = pneg %p165
        %p291 = pneg %p162
        %p292 = pneg %p193
        %p293 = pneg %p190
        %s294 = sand.u32 %s180, 1
        %s295 = scalar_lea.sflag [#allocation4], %s294
        %s296 = sand.u32 %s180, 1
        %s297 = smul.addr %s296, 16
        %s298 = scalar_lea.vmem [#allocation3], %s297
        %p299 = scmp.lt.s32.totalorder %s24, 1
        %s300 = scalar_select %p299, %s24, 1
        %s301 = smul.addr %s300, 54
        %s302 = smul.addr %s301, 4
        %s303 = scalar_lea.vmem %s0, %s302
        %p304 = scmp.lt.s32.totalorder %s25, 1
        %s305 = scalar_select %p304, %s25, 1
        %s306 = smul.addr %s305, 4
        %s307 = scalar_lea.vmem %s1, %s306
        %p308 = scmp.lt.s32.totalorder %s24, 1
        %s309 = scalar_select %p308, %s24, 1
        %p310 = scmp.lt.s32.totalorder %s26, 1
        %s311 = scalar_select %p310, %s26, 1
        %s312 = smul.addr %s309, 2
        %s313 = sadd.s32 %s311, %s312
        %s314 = scalar_lea.vmem %s2, %s313
        %p315 = scmp.lt.s32.totalorder %s25, 1
        %s316 = scalar_select %p315, %s25, 1
        %s317 = smul.addr %s316, 8
        %s318 = scalar_lea.vmem %s3, %s317
        %p319 = scmp.lt.s32.totalorder %s25, 1
        %s320 = scalar_select %p319, %s25, 1
        %s321 = smul.addr %s320, 8
        %s322 = scalar_lea.vmem %s4, %s321
        %s324 = smul.u32 %s26, 8
        %s325 = smul.u32 %s324, 3
        %s326 = smul.addr %s325, 4
        %s327 = scalar_lea.vmem %s303, %s326
        %v328 = vld [vmem:[%s327] sm:$0xf]
        %v329 = vld [vmem:[%s327 + $0x4] sm:$0xf]
        %v330 = vld [vmem:[%s327 + $0xc] sm:$0xf]
        %v331 = vld [vmem:[%s327 + $0x10] sm:$0xf]
        %v332 = vld [vmem:[%s327 + $0x18] sm:$0xf]
        %v333 = vld [vmem:[%s327 + $0x1c] sm:$0xf]
        %v334 = vld [vmem:[%s327 + $0x24] sm:$0xf]
        %v335 = vld [vmem:[%s327 + $0x28] sm:$0xf]
        %v336 = vld [vmem:[%s327 + $0x30] sm:$0xf]
        %v337 = vld [vmem:[%s327 + $0x34] sm:$0xf]
        %v338 = vld [vmem:[%s327 + $0x3c] sm:$0xf]
        %v339 = vld [vmem:[%s327 + $0x40] sm:$0xf]
        %v340 = vld [vmem:[%s327 + $0x48] sm:$0xf]
        %v341 = vld [vmem:[%s327 + $0x4c] sm:$0xf]
        %v342 = vld [vmem:[%s327 + $0x54] sm:$0xf]
        %v343 = vld [vmem:[%s327 + $0x58] sm:$0xf]
        %v344 = vld [vmem:[%s327 + $0x8] sm:$0x1]
        %v345 = vld [vmem:[%s327 + $0x14] sm:$0x1]
        %v346 = vld [vmem:[%s327 + $0x20] sm:$0x1]
        %v347 = vld [vmem:[%s327 + $0x2c] sm:$0x1]
        %v348 = vld [vmem:[%s327 + $0x38] sm:$0x1]
        %v349 = vld [vmem:[%s327 + $0x44] sm:$0x1]
        %v350 = vld [vmem:[%s327 + $0x50] sm:$0x1]
        %v351 = vld [vmem:[%s327 + $0x5c] sm:$0x1]
        %vm352 = vsmask.f32 3328
        %vm353 = vsmask.f32 7440
        %vm354 = vmor %vm352, %vm353
        %v356 = vshrl.u32 %v328, 16
        %v358 = vrot.slane %v356, 4
        %v359 = vshll.u32 %v328, 16
        %v361 = vrot.slane %v359, 5
        %v362 = vor.u32 %v358, %v361
        %v363 = vrot.slane %v362, 4
        %v365 = vshll.u32 %v329, 16
        %v367 = vrot.slane %v365, 5
        %v368 = vsel %vm354, %v363, %v367
        %v369 = vshrl.u32 %v329, 16
        %v371 = vrot.slane %v369, 4
        %v372 = vor.u32 %v371, %v367
        %v373 = vrot.slane %v372, 4
        %v375 = vshll.u32 %v344, 16
        %v377 = vrot.slane %v375, 5
        %v378 = vsel %vm354, %v373, %v377
        %v380 = vshrl.u32 %v330, 16
        %v382 = vrot.slane %v380, 4
        %v383 = vshll.u32 %v330, 16
        %v385 = vrot.slane %v383, 5
        %v386 = vor.u32 %v382, %v385
        %v387 = vrot.slane %v386, 4
        %v389 = vshll.u32 %v331, 16
        %v391 = vrot.slane %v389, 5
        %v392 = vsel %vm354, %v387, %v391
        %v393 = vshrl.u32 %v331, 16
        %v395 = vrot.slane %v393, 4
        %v396 = vor.u32 %v395, %v391
        %v397 = vrot.slane %v396, 4
        %v399 = vshll.u32 %v345, 16
        %v401 = vrot.slane %v399, 5
        %v402 = vsel %vm354, %v397, %v401
        %v404 = vshrl.u32 %v332, 16
        %v406 = vrot.slane %v404, 4
        %v407 = vshll.u32 %v332, 16
        %v409 = vrot.slane %v407, 5
        %v410 = vor.u32 %v406, %v409
        %v411 = vrot.slane %v410, 4
        %v413 = vshll.u32 %v333, 16
        %v415 = vrot.slane %v413, 5
        %v416 = vsel %vm354, %v411, %v415
        %v417 = vshrl.u32 %v333, 16
        %v419 = vrot.slane %v417, 4
        %v420 = vor.u32 %v419, %v415
        %v421 = vrot.slane %v420, 4
        %v423 = vshll.u32 %v346, 16
        %v425 = vrot.slane %v423, 5
        %v426 = vsel %vm354, %v421, %v425
        %v428 = vshrl.u32 %v334, 16
        %v430 = vrot.slane %v428, 4
        %v431 = vshll.u32 %v334, 16
        %v433 = vrot.slane %v431, 5
        %v434 = vor.u32 %v430, %v433
        %v435 = vrot.slane %v434, 4
        %v437 = vshll.u32 %v335, 16
        %v439 = vrot.slane %v437, 5
        %v440 = vsel %vm354, %v435, %v439
        %v441 = vshrl.u32 %v335, 16
        %v443 = vrot.slane %v441, 4
        %v444 = vor.u32 %v443, %v439
        %v445 = vrot.slane %v444, 4
        %v447 = vshll.u32 %v347, 16
        %v449 = vrot.slane %v447, 5
        %v450 = vsel %vm354, %v445, %v449
        %v452 = vshrl.u32 %v336, 16
        %v454 = vrot.slane %v452, 4
        %v455 = vshll.u32 %v336, 16
        %v457 = vrot.slane %v455, 5
        %v458 = vor.u32 %v454, %v457
        %v459 = vrot.slane %v458, 4
        %v461 = vshll.u32 %v337, 16
        %v463 = vrot.slane %v461, 5
        %v464 = vsel %vm354, %v459, %v463
        %v465 = vshrl.u32 %v337, 16
        %v467 = vrot.slane %v465, 4
        %v468 = vor.u32 %v467, %v463
        %v469 = vrot.slane %v468, 4
        %v471 = vshll.u32 %v348, 16
        %v473 = vrot.slane %v471, 5
        %v474 = vsel %vm354, %v469, %v473
        %v476 = vshrl.u32 %v338, 16
        %v478 = vrot.slane %v476, 4
        %v479 = vshll.u32 %v338, 16
        %v481 = vrot.slane %v479, 5
        %v482 = vor.u32 %v478, %v481
        %v483 = vrot.slane %v482, 4
        %v485 = vshll.u32 %v339, 16
        %v487 = vrot.slane %v485, 5
        %v488 = vsel %vm354, %v483, %v487
        %v489 = vshrl.u32 %v339, 16
        %v491 = vrot.slane %v489, 4
        %v492 = vor.u32 %v491, %v487
        %v493 = vrot.slane %v492, 4
        %v495 = vshll.u32 %v349, 16
        %v497 = vrot.slane %v495, 5
        %v498 = vsel %vm354, %v493, %v497
        %v500 = vshrl.u32 %v340, 16
        %v502 = vrot.slane %v500, 4
        %v503 = vshll.u32 %v340, 16
        %v505 = vrot.slane %v503, 5
        %v506 = vor.u32 %v502, %v505
        %v507 = vrot.slane %v506, 4
        %v509 = vshll.u32 %v341, 16
        %v511 = vrot.slane %v509, 5
        %v512 = vsel %vm354, %v507, %v511
        %v513 = vshrl.u32 %v341, 16
        %v515 = vrot.slane %v513, 4
        %v516 = vor.u32 %v515, %v511
        %v517 = vrot.slane %v516, 4
        %v519 = vshll.u32 %v350, 16
        %v521 = vrot.slane %v519, 5
        %v522 = vsel %vm354, %v517, %v521
        %v524 = vshrl.u32 %v342, 16
        %v526 = vrot.slane %v524, 4
        %v527 = vshll.u32 %v342, 16
        %v529 = vrot.slane %v527, 5
        %v530 = vor.u32 %v526, %v529
        %v531 = vrot.slane %v530, 4
        %v533 = vshll.u32 %v343, 16
        %v535 = vrot.slane %v533, 5
        %v536 = vsel %vm354, %v531, %v535
        %v537 = vshrl.u32 %v343, 16
        %v539 = vrot.slane %v537, 4
        %v540 = vor.u32 %v539, %v535
        %v541 = vrot.slane %v540, 4
        %v543 = vshll.u32 %v351, 16
        %v545 = vrot.slane %v543, 5
        %v546 = vsel %vm354, %v541, %v545
        %v563 = vld [vmem:[%s327] sm:$0xe]
        %v564 = vld [vmem:[%s327 + $0xc] sm:$0xe]
        %v565 = vld [vmem:[%s327 + $0x18] sm:$0xe]
        %v566 = vld [vmem:[%s327 + $0x24] sm:$0xe]
        %v567 = vld [vmem:[%s327 + $0x30] sm:$0xe]
        %v568 = vld [vmem:[%s327 + $0x3c] sm:$0xe]
        %v569 = vld [vmem:[%s327 + $0x48] sm:$0xe]
        %v570 = vld [vmem:[%s327 + $0x54] sm:$0xe]
        %vm595 = vcmask 1042432
        %vm596 = vcmask 1046532
        %vm597 = vmor %vm595, %vm596
        %v598 = vrot.slane %v563, 5
        %v599 = vrot.slane %v598, 4
        %v600 = vrot.slane %v329, 5
        %v601 = vsel %vm597, %v599, %v600
        %v602 = vrot.slane %v600, 4
        %v603 = vrot.slane %v344, 5
        %v604 = vsel %vm597, %v602, %v603
        %v605 = vrot.slane %v564, 5
        %v606 = vrot.slane %v605, 4
        %v607 = vrot.slane %v331, 5
        %v608 = vsel %vm597, %v606, %v607
        %v609 = vrot.slane %v607, 4
        %v610 = vrot.slane %v345, 5
        %v611 = vsel %vm597, %v609, %v610
        %v612 = vrot.slane %v565, 5
        %v613 = vrot.slane %v612, 4
        %v614 = vrot.slane %v333, 5
        %v615 = vsel %vm597, %v613, %v614
        %v616 = vrot.slane %v614, 4
        %v617 = vrot.slane %v346, 5
        %v618 = vsel %vm597, %v616, %v617
        %v619 = vrot.slane %v566, 5
        %v620 = vrot.slane %v619, 4
        %v621 = vrot.slane %v335, 5
        %v622 = vsel %vm597, %v620, %v621
        %v623 = vrot.slane %v621, 4
        %v624 = vrot.slane %v347, 5
        %v625 = vsel %vm597, %v623, %v624
        %v626 = vrot.slane %v567, 5
        %v627 = vrot.slane %v626, 4
        %v628 = vrot.slane %v337, 5
        %v629 = vsel %vm597, %v627, %v628
        %v630 = vrot.slane %v628, 4
        %v631 = vrot.slane %v348, 5
        %v632 = vsel %vm597, %v630, %v631
        %v633 = vrot.slane %v568, 5
        %v634 = vrot.slane %v633, 4
        %v635 = vrot.slane %v339, 5
        %v636 = vsel %vm597, %v634, %v635
        %v637 = vrot.slane %v635, 4
        %v638 = vrot.slane %v349, 5
        %v639 = vsel %vm597, %v637, %v638
        %v640 = vrot.slane %v569, 5
        %v641 = vrot.slane %v640, 4
        %v642 = vrot.slane %v341, 5
        %v643 = vsel %vm597, %v641, %v642
        %v644 = vrot.slane %v642, 4
        %v645 = vrot.slane %v350, 5
        %v646 = vsel %vm597, %v644, %v645
        %v647 = vrot.slane %v570, 5
        %v648 = vrot.slane %v647, 4
        %v649 = vrot.slane %v343, 5
        %v650 = vsel %vm597, %v648, %v649
        %v651 = vrot.slane %v649, 4
        %v652 = vrot.slane %v351, 5
        %v653 = vsel %vm597, %v651, %v652
        %s670 = sadd.s32 %s324, 1
        %s671 = smul.u32 %s670, 3
        %s672 = smul.addr %s671, 4
        %s673 = scalar_lea.vmem %s303, %s672
        %v674 = vld [vmem:[%s673] sm:$0xf]
        %v675 = vld [vmem:[%s673 + $0x4] sm:$0xf]
        %v676 = vld [vmem:[%s673 + $0xc] sm:$0xf]
        %v677 = vld [vmem:[%s673 + $0x10] sm:$0xf]
        %v678 = vld [vmem:[%s673 + $0x18] sm:$0xf]
        %v679 = vld [vmem:[%s673 + $0x1c] sm:$0xf]
        %v680 = vld [vmem:[%s673 + $0x24] sm:$0xf]
        %v681 = vld [vmem:[%s673 + $0x28] sm:$0xf]
        %v682 = vld [vmem:[%s673 + $0x30] sm:$0xf]
        %v683 = vld [vmem:[%s673 + $0x34] sm:$0xf]
        %v684 = vld [vmem:[%s673 + $0x3c] sm:$0xf]
        %v685 = vld [vmem:[%s673 + $0x40] sm:$0xf]
        %v686 = vld [vmem:[%s673 + $0x48] sm:$0xf]
        %v687 = vld [vmem:[%s673 + $0x4c] sm:$0xf]
        %v688 = vld [vmem:[%s673 + $0x54] sm:$0xf]
        %v689 = vld [vmem:[%s673 + $0x58] sm:$0xf]
        %v690 = vld [vmem:[%s673 + $0x8] sm:$0x1]
        %v691 = vld [vmem:[%s673 + $0x14] sm:$0x1]
        %v692 = vld [vmem:[%s673 + $0x20] sm:$0x1]
        %v693 = vld [vmem:[%s673 + $0x2c] sm:$0x1]
        %v694 = vld [vmem:[%s673 + $0x38] sm:$0x1]
        %v695 = vld [vmem:[%s673 + $0x44] sm:$0x1]
        %v696 = vld [vmem:[%s673 + $0x50] sm:$0x1]
        %v697 = vld [vmem:[%s673 + $0x5c] sm:$0x1]
        %v699 = vshrl.u32 %v674, 16
        %v701 = vrot.slane %v699, 4
        %v702 = vshll.u32 %v674, 16
        %v704 = vrot.slane %v702, 5
        %v705 = vor.u32 %v701, %v704
        %v706 = vrot.slane %v705, 4
        %v708 = vshll.u32 %v675, 16
        %v710 = vrot.slane %v708, 5
        %v711 = vsel %vm354, %v706, %v710
        %v712 = vshrl.u32 %v675, 16
        %v714 = vrot.slane %v712, 4
        %v715 = vor.u32 %v714, %v710
        %v716 = vrot.slane %v715, 4
        %v718 = vshll.u32 %v690, 16
        %v720 = vrot.slane %v718, 5
        %v721 = vsel %vm354, %v716, %v720
        %v723 = vshrl.u32 %v676, 16
        %v725 = vrot.slane %v723, 4
        %v726 = vshll.u32 %v676, 16
        %v728 = vrot.slane %v726, 5
        %v729 = vor.u32 %v725, %v728
        %v730 = vrot.slane %v729, 4
        %v732 = vshll.u32 %v677, 16
        %v734 = vrot.slane %v732, 5
        %v735 = vsel %vm354, %v730, %v734
        %v736 = vshrl.u32 %v677, 16
        %v738 = vrot.slane %v736, 4
        %v739 = vor.u32 %v738, %v734
        %v740 = vrot.slane %v739, 4
        %v742 = vshll.u32 %v691, 16
        %v744 = vrot.slane %v742, 5
        %v745 = vsel %vm354, %v740, %v744
        %v747 = vshrl.u32 %v678, 16
        %v749 = vrot.slane %v747, 4
        %v750 = vshll.u32 %v678, 16
        %v752 = vrot.slane %v750, 5
        %v753 = vor.u32 %v749, %v752
        %v754 = vrot.slane %v753, 4
        %v756 = vshll.u32 %v679, 16
        %v758 = vrot.slane %v756, 5
        %v759 = vsel %vm354, %v754, %v758
        %v760 = vshrl.u32 %v679, 16
        %v762 = vrot.slane %v760, 4
        %v763 = vor.u32 %v762, %v758
        %v764 = vrot.slane %v763, 4
        %v766 = vshll.u32 %v692, 16
        %v768 = vrot.slane %v766, 5
        %v769 = vsel %vm354, %v764, %v768
        %v771 = vshrl.u32 %v680, 16
        %v773 = vrot.slane %v771, 4
        %v774 = vshll.u32 %v680, 16
        %v776 = vrot.slane %v774, 5
        %v777 = vor.u32 %v773, %v776
        %v778 = vrot.slane %v777, 4
        %v780 = vshll.u32 %v681, 16
        %v782 = vrot.slane %v780, 5
        %v783 = vsel %vm354, %v778, %v782
        %v784 = vshrl.u32 %v681, 16
        %v786 = vrot.slane %v784, 4
        %v787 = vor.u32 %v786, %v782
        %v788 = vrot.slane %v787, 4
        %v790 = vshll.u32 %v693, 16
        %v792 = vrot.slane %v790, 5
        %v793 = vsel %vm354, %v788, %v792
        %v795 = vshrl.u32 %v682, 16
        %v797 = vrot.slane %v795, 4
        %v798 = vshll.u32 %v682, 16
        %v800 = vrot.slane %v798, 5
        %v801 = vor.u32 %v797, %v800
        %v802 = vrot.slane %v801, 4
        %v804 = vshll.u32 %v683, 16
        %v806 = vrot.slane %v804, 5
        %v807 = vsel %vm354, %v802, %v806
        %v808 = vshrl.u32 %v683, 16
        %v810 = vrot.slane %v808, 4
        %v811 = vor.u32 %v810, %v806
        %v812 = vrot.slane %v811, 4
        %v814 = vshll.u32 %v694, 16
        %v816 = vrot.slane %v814, 5
        %v817 = vsel %vm354, %v812, %v816
        %v819 = vshrl.u32 %v684, 16
        %v821 = vrot.slane %v819, 4
        %v822 = vshll.u32 %v684, 16
        %v824 = vrot.slane %v822, 5
        %v825 = vor.u32 %v821, %v824
        %v826 = vrot.slane %v825, 4
        %v828 = vshll.u32 %v685, 16
        %v830 = vrot.slane %v828, 5
        %v831 = vsel %vm354, %v826, %v830
        %v832 = vshrl.u32 %v685, 16
        %v834 = vrot.slane %v832, 4
        %v835 = vor.u32 %v834, %v830
        %v836 = vrot.slane %v835, 4
        %v838 = vshll.u32 %v695, 16
        %v840 = vrot.slane %v838, 5
        %v841 = vsel %vm354, %v836, %v840
        %v843 = vshrl.u32 %v686, 16
        %v845 = vrot.slane %v843, 4
        %v846 = vshll.u32 %v686, 16
        %v848 = vrot.slane %v846, 5
        %v849 = vor.u32 %v845, %v848
        %v850 = vrot.slane %v849, 4
        %v852 = vshll.u32 %v687, 16
        %v854 = vrot.slane %v852, 5
        %v855 = vsel %vm354, %v850, %v854
        %v856 = vshrl.u32 %v687, 16
        %v858 = vrot.slane %v856, 4
        %v859 = vor.u32 %v858, %v854
        %v860 = vrot.slane %v859, 4
        %v862 = vshll.u32 %v696, 16
        %v864 = vrot.slane %v862, 5
        %v865 = vsel %vm354, %v860, %v864
        %v867 = vshrl.u32 %v688, 16
        %v869 = vrot.slane %v867, 4
        %v870 = vshll.u32 %v688, 16
        %v872 = vrot.slane %v870, 5
        %v873 = vor.u32 %v869, %v872
        %v874 = vrot.slane %v873, 4
        %v876 = vshll.u32 %v689, 16
        %v878 = vrot.slane %v876, 5
        %v879 = vsel %vm354, %v874, %v878
        %v880 = vshrl.u32 %v689, 16
        %v882 = vrot.slane %v880, 4
        %v883 = vor.u32 %v882, %v878
        %v884 = vrot.slane %v883, 4
        %v886 = vshll.u32 %v697, 16
        %v888 = vrot.slane %v886, 5
        %v889 = vsel %vm354, %v884, %v888
        %v906 = vld [vmem:[%s673] sm:$0xe]
        %v907 = vld [vmem:[%s673 + $0xc] sm:$0xe]
        %v908 = vld [vmem:[%s673 + $0x18] sm:$0xe]
        %v909 = vld [vmem:[%s673 + $0x24] sm:$0xe]
        %v910 = vld [vmem:[%s673 + $0x30] sm:$0xe]
        %v911 = vld [vmem:[%s673 + $0x3c] sm:$0xe]
        %v912 = vld [vmem:[%s673 + $0x48] sm:$0xe]
        %v913 = vld [vmem:[%s673 + $0x54] sm:$0xe]
        %v938 = vrot.slane %v906, 5
        %v939 = vrot.slane %v938, 4
        %v940 = vrot.slane %v675, 5
        %v941 = vsel %vm597, %v939, %v940
        %v942 = vrot.slane %v940, 4
        %v943 = vrot.slane %v690, 5
        %v944 = vsel %vm597, %v942, %v943
        %v945 = vrot.slane %v907, 5
        %v946 = vrot.slane %v945, 4
        %v947 = vrot.slane %v677, 5
        %v948 = vsel %vm597, %v946, %v947
        %v949 = vrot.slane %v947, 4
        %v950 = vrot.slane %v691, 5
        %v951 = vsel %vm597, %v949, %v950
        %v952 = vrot.slane %v908, 5
        %v953 = vrot.slane %v952, 4
        %v954 = vrot.slane %v679, 5
        %v955 = vsel %vm597, %v953, %v954
        %v956 = vrot.slane %v954, 4
        %v957 = vrot.slane %v692, 5
        %v958 = vsel %vm597, %v956, %v957
        %v959 = vrot.slane %v909, 5
        %v960 = vrot.slane %v959, 4
        %v961 = vrot.slane %v681, 5
        %v962 = vsel %vm597, %v960, %v961
        %v963 = vrot.slane %v961, 4
        %v964 = vrot.slane %v693, 5
        %v965 = vsel %vm597, %v963, %v964
        %v966 = vrot.slane %v910, 5
        %v967 = vrot.slane %v966, 4
        %v968 = vrot.slane %v683, 5
        %v969 = vsel %vm597, %v967, %v968
        %v970 = vrot.slane %v968, 4
        %v971 = vrot.slane %v694, 5
        %v972 = vsel %vm597, %v970, %v971
        %v973 = vrot.slane %v911, 5
        %v974 = vrot.slane %v973, 4
        %v975 = vrot.slane %v685, 5
        %v976 = vsel %vm597, %v974, %v975
        %v977 = vrot.slane %v975, 4
        %v978 = vrot.slane %v695, 5
        %v979 = vsel %vm597, %v977, %v978
        %v980 = vrot.slane %v912, 5
        %v981 = vrot.slane %v980, 4
        %v982 = vrot.slane %v687, 5
        %v983 = vsel %vm597, %v981, %v982
        %v984 = vrot.slane %v982, 4
        %v985 = vrot.slane %v696, 5
        %v986 = vsel %vm597, %v984, %v985
        %v987 = vrot.slane %v913, 5
        %v988 = vrot.slane %v987, 4
        %v989 = vrot.slane %v689, 5
        %v990 = vsel %vm597, %v988, %v989
        %v991 = vrot.slane %v989, 4
        %v992 = vrot.slane %v697, 5
        %v993 = vsel %vm597, %v991, %v992
        %s1010 = sadd.s32 %s324, 2
        %s1011 = smul.u32 %s1010, 3
        %s1012 = smul.addr %s1011, 4
        %s1013 = scalar_lea.vmem %s303, %s1012
        %v1014 = vld [vmem:[%s1013] sm:$0xf]
        %v1015 = vld [vmem:[%s1013 + $0x4] sm:$0xf]
        %v1016 = vld [vmem:[%s1013 + $0xc] sm:$0xf]
        %v1017 = vld [vmem:[%s1013 + $0x10] sm:$0xf]
        %v1018 = vld [vmem:[%s1013 + $0x18] sm:$0xf]
        %v1019 = vld [vmem:[%s1013 + $0x1c] sm:$0xf]
        %v1020 = vld [vmem:[%s1013 + $0x24] sm:$0xf]
        %v1021 = vld [vmem:[%s1013 + $0x28] sm:$0xf]
        %v1022 = vld [vmem:[%s1013 + $0x30] sm:$0xf]
        %v1023 = vld [vmem:[%s1013 + $0x34] sm:$0xf]
        %v1024 = vld [vmem:[%s1013 + $0x3c] sm:$0xf]
        %v1025 = vld [vmem:[%s1013 + $0x40] sm:$0xf]
        %v1026 = vld [vmem:[%s1013 + $0x48] sm:$0xf]
        %v1027 = vld [vmem:[%s1013 + $0x4c] sm:$0xf]
        %v1028 = vld [vmem:[%s1013 + $0x54] sm:$0xf]
        %v1029 = vld [vmem:[%s1013 + $0x58] sm:$0xf]
        %v1030 = vld [vmem:[%s1013 + $0x8] sm:$0x1]
        %v1031 = vld [vmem:[%s1013 + $0x14] sm:$0x1]
        %v1032 = vld [vmem:[%s1013 + $0x20] sm:$0x1]
        %v1033 = vld [vmem:[%s1013 + $0x2c] sm:$0x1]
        %v1034 = vld [vmem:[%s1013 + $0x38] sm:$0x1]
        %v1035 = vld [vmem:[%s1013 + $0x44] sm:$0x1]
        %v1036 = vld [vmem:[%s1013 + $0x50] sm:$0x1]
        %v1037 = vld [vmem:[%s1013 + $0x5c] sm:$0x1]
        %v1039 = vshrl.u32 %v1014, 16
        %v1041 = vrot.slane %v1039, 4
        %v1042 = vshll.u32 %v1014, 16
        %v1044 = vrot.slane %v1042, 5
        %v1045 = vor.u32 %v1041, %v1044
        %v1046 = vrot.slane %v1045, 4
        %v1048 = vshll.u32 %v1015, 16
        %v1050 = vrot.slane %v1048, 5
        %v1051 = vsel %vm354, %v1046, %v1050
        %v1052 = vshrl.u32 %v1015, 16
        %v1054 = vrot.slane %v1052, 4
        %v1055 = vor.u32 %v1054, %v1050
        %v1056 = vrot.slane %v1055, 4
        %v1058 = vshll.u32 %v1030, 16
        %v1060 = vrot.slane %v1058, 5
        %v1061 = vsel %vm354, %v1056, %v1060
        %v1063 = vshrl.u32 %v1016, 16
        %v1065 = vrot.slane %v1063, 4
        %v1066 = vshll.u32 %v1016, 16
        %v1068 = vrot.slane %v1066, 5
        %v1069 = vor.u32 %v1065, %v1068
        %v1070 = vrot.slane %v1069, 4
        %v1072 = vshll.u32 %v1017, 16
        %v1074 = vrot.slane %v1072, 5
        %v1075 = vsel %vm354, %v1070, %v1074
        %v1076 = vshrl.u32 %v1017, 16
        %v1078 = vrot.slane %v1076, 4
        %v1079 = vor.u32 %v1078, %v1074
        %v1080 = vrot.slane %v1079, 4
        %v1082 = vshll.u32 %v1031, 16
        %v1084 = vrot.slane %v1082, 5
        %v1085 = vsel %vm354, %v1080, %v1084
        %v1087 = vshrl.u32 %v1018, 16
        %v1089 = vrot.slane %v1087, 4
        %v1090 = vshll.u32 %v1018, 16
        %v1092 = vrot.slane %v1090, 5
        %v1093 = vor.u32 %v1089, %v1092
        %v1094 = vrot.slane %v1093, 4
        %v1096 = vshll.u32 %v1019, 16
        %v1098 = vrot.slane %v1096, 5
        %v1099 = vsel %vm354, %v1094, %v1098
        %v1100 = vshrl.u32 %v1019, 16
        %v1102 = vrot.slane %v1100, 4
        %v1103 = vor.u32 %v1102, %v1098
        %v1104 = vrot.slane %v1103, 4
        %v1106 = vshll.u32 %v1032, 16
        %v1108 = vrot.slane %v1106, 5
        %v1109 = vsel %vm354, %v1104, %v1108
        %v1111 = vshrl.u32 %v1020, 16
        %v1113 = vrot.slane %v1111, 4
        %v1114 = vshll.u32 %v1020, 16
        %v1116 = vrot.slane %v1114, 5
        %v1117 = vor.u32 %v1113, %v1116
        %v1118 = vrot.slane %v1117, 4
        %v1120 = vshll.u32 %v1021, 16
        %v1122 = vrot.slane %v1120, 5
        %v1123 = vsel %vm354, %v1118, %v1122
        %v1124 = vshrl.u32 %v1021, 16
        %v1126 = vrot.slane %v1124, 4
        %v1127 = vor.u32 %v1126, %v1122
        %v1128 = vrot.slane %v1127, 4
        %v1130 = vshll.u32 %v1033, 16
        %v1132 = vrot.slane %v1130, 5
        %v1133 = vsel %vm354, %v1128, %v1132
        %v1135 = vshrl.u32 %v1022, 16
        %v1137 = vrot.slane %v1135, 4
        %v1138 = vshll.u32 %v1022, 16
        %v1140 = vrot.slane %v1138, 5
        %v1141 = vor.u32 %v1137, %v1140
        %v1142 = vrot.slane %v1141, 4
        %v1144 = vshll.u32 %v1023, 16
        %v1146 = vrot.slane %v1144, 5
        %v1147 = vsel %vm354, %v1142, %v1146
        %v1148 = vshrl.u32 %v1023, 16
        %v1150 = vrot.slane %v1148, 4
        %v1151 = vor.u32 %v1150, %v1146
        %v1152 = vrot.slane %v1151, 4
        %v1154 = vshll.u32 %v1034, 16
        %v1156 = vrot.slane %v1154, 5
        %v1157 = vsel %vm354, %v1152, %v1156
        %v1159 = vshrl.u32 %v1024, 16
        %v1161 = vrot.slane %v1159, 4
        %v1162 = vshll.u32 %v1024, 16
        %v1164 = vrot.slane %v1162, 5
        %v1165 = vor.u32 %v1161, %v1164
        %v1166 = vrot.slane %v1165, 4
        %v1168 = vshll.u32 %v1025, 16
        %v1170 = vrot.slane %v1168, 5
        %v1171 = vsel %vm354, %v1166, %v1170
        %v1172 = vshrl.u32 %v1025, 16
        %v1174 = vrot.slane %v1172, 4
        %v1175 = vor.u32 %v1174, %v1170
        %v1176 = vrot.slane %v1175, 4
        %v1178 = vshll.u32 %v1035, 16
        %v1180 = vrot.slane %v1178, 5
        %v1181 = vsel %vm354, %v1176, %v1180
        %v1183 = vshrl.u32 %v1026, 16
        %v1185 = vrot.slane %v1183, 4
        %v1186 = vshll.u32 %v1026, 16
        %v1188 = vrot.slane %v1186, 5
        %v1189 = vor.u32 %v1185, %v1188
        %v1190 = vrot.slane %v1189, 4
        %v1192 = vshll.u32 %v1027, 16
        %v1194 = vrot.slane %v1192, 5
        %v1195 = vsel %vm354, %v1190, %v1194
        %v1196 = vshrl.u32 %v1027, 16
        %v1198 = vrot.slane %v1196, 4
        %v1199 = vor.u32 %v1198, %v1194
        %v1200 = vrot.slane %v1199, 4
        %v1202 = vshll.u32 %v1036, 16
        %v1204 = vrot.slane %v1202, 5
        %v1205 = vsel %vm354, %v1200, %v1204
        %v1207 = vshrl.u32 %v1028, 16
        %v1209 = vrot.slane %v1207, 4
        %v1210 = vshll.u32 %v1028, 16
        %v1212 = vrot.slane %v1210, 5
        %v1213 = vor.u32 %v1209, %v1212
        %v1214 = vrot.slane %v1213, 4
        %v1216 = vshll.u32 %v1029, 16
        %v1218 = vrot.slane %v1216, 5
        %v1219 = vsel %vm354, %v1214, %v1218
        %v1220 = vshrl.u32 %v1029, 16
        %v1222 = vrot.slane %v1220, 4
        %v1223 = vor.u32 %v1222, %v1218
        %v1224 = vrot.slane %v1223, 4
        %v1226 = vshll.u32 %v1037, 16
        %v1228 = vrot.slane %v1226, 5
        %v1229 = vsel %vm354, %v1224, %v1228
        %v1246 = vld [vmem:[%s1013] sm:$0xe]
        %v1247 = vld [vmem:[%s1013 + $0xc] sm:$0xe]
        %v1248 = vld [vmem:[%s1013 + $0x18] sm:$0xe]
        %v1249 = vld [vmem:[%s1013 + $0x24] sm:$0xe]
        %v1250 = vld [vmem:[%s1013 + $0x30] sm:$0xe]
        %v1251 = vld [vmem:[%s1013 + $0x3c] sm:$0xe]
        %v1252 = vld [vmem:[%s1013 + $0x48] sm:$0xe]
        %v1253 = vld [vmem:[%s1013 + $0x54] sm:$0xe]
        %v1278 = vrot.slane %v1246, 5
        %v1279 = vrot.slane %v1278, 4
        %v1280 = vrot.slane %v1015, 5
        %v1281 = vsel %vm597, %v1279, %v1280
        %v1282 = vrot.slane %v1280, 4
        %v1283 = vrot.slane %v1030, 5
        %v1284 = vsel %vm597, %v1282, %v1283
        %v1285 = vrot.slane %v1247, 5
        %v1286 = vrot.slane %v1285, 4
        %v1287 = vrot.slane %v1017, 5
        %v1288 = vsel %vm597, %v1286, %v1287
        %v1289 = vrot.slane %v1287, 4
        %v1290 = vrot.slane %v1031, 5
        %v1291 = vsel %vm597, %v1289, %v1290
        %v1292 = vrot.slane %v1248, 5
        %v1293 = vrot.slane %v1292, 4
        %v1294 = vrot.slane %v1019, 5
        %v1295 = vsel %vm597, %v1293, %v1294
        %v1296 = vrot.slane %v1294, 4
        %v1297 = vrot.slane %v1032, 5
        %v1298 = vsel %vm597, %v1296, %v1297
        %v1299 = vrot.slane %v1249, 5
        %v1300 = vrot.slane %v1299, 4
        %v1301 = vrot.slane %v1021, 5
        %v1302 = vsel %vm597, %v1300, %v1301
        %v1303 = vrot.slane %v1301, 4
        %v1304 = vrot.slane %v1033, 5
        %v1305 = vsel %vm597, %v1303, %v1304
        %v1306 = vrot.slane %v1250, 5
        %v1307 = vrot.slane %v1306, 4
        %v1308 = vrot.slane %v1023, 5
        %v1309 = vsel %vm597, %v1307, %v1308
        %v1310 = vrot.slane %v1308, 4
        %v1311 = vrot.slane %v1034, 5
        %v1312 = vsel %vm597, %v1310, %v1311
        %v1313 = vrot.slane %v1251, 5
        %v1314 = vrot.slane %v1313, 4
        %v1315 = vrot.slane %v1025, 5
        %v1316 = vsel %vm597, %v1314, %v1315
        %v1317 = vrot.slane %v1315, 4
        %v1318 = vrot.slane %v1035, 5
        %v1319 = vsel %vm597, %v1317, %v1318
        %v1320 = vrot.slane %v1252, 5
        %v1321 = vrot.slane %v1320, 4
        %v1322 = vrot.slane %v1027, 5
        %v1323 = vsel %vm597, %v1321, %v1322
        %v1324 = vrot.slane %v1322, 4
        %v1325 = vrot.slane %v1036, 5
        %v1326 = vsel %vm597, %v1324, %v1325
        %v1327 = vrot.slane %v1253, 5
        %v1328 = vrot.slane %v1327, 4
        %v1329 = vrot.slane %v1029, 5
        %v1330 = vsel %vm597, %v1328, %v1329
        %v1331 = vrot.slane %v1329, 4
        %v1332 = vrot.slane %v1037, 5
        %v1333 = vsel %vm597, %v1331, %v1332
        %v1350 = vunpack.c.l.bf16 %v328
        %v1351 = vunpack.c.l.bf16 %v329
        %v1352 = vunpack.c.l.bf16 %v330
        %v1353 = vunpack.c.l.bf16 %v331
        %v1354 = vunpack.c.l.bf16 %v332
        %v1355 = vunpack.c.l.bf16 %v333
        %v1356 = vunpack.c.l.bf16 %v334
        %v1357 = vunpack.c.l.bf16 %v335
        %v1358 = vunpack.c.l.bf16 %v336
        %v1359 = vunpack.c.l.bf16 %v337
        %v1360 = vunpack.c.l.bf16 %v338
        %v1361 = vunpack.c.l.bf16 %v339
        %v1362 = vunpack.c.l.bf16 %v340
        %v1363 = vunpack.c.l.bf16 %v341
        %v1364 = vunpack.c.l.bf16 %v342
        %v1365 = vunpack.c.l.bf16 %v343
        %v1366 = vunpack.c.l.bf16 %v368
        %v1367 = vunpack.c.l.bf16 %v378
        %v1368 = vunpack.c.l.bf16 %v392
        %v1369 = vunpack.c.l.bf16 %v402
        %v1370 = vunpack.c.l.bf16 %v416
        %v1371 = vunpack.c.l.bf16 %v426
        %v1372 = vunpack.c.l.bf16 %v440
        %v1373 = vunpack.c.l.bf16 %v450
        %v1374 = vunpack.c.l.bf16 %v464
        %v1375 = vunpack.c.l.bf16 %v474
        %v1376 = vunpack.c.l.bf16 %v488
        %v1377 = vunpack.c.l.bf16 %v498
        %v1378 = vunpack.c.l.bf16 %v512
        %v1379 = vunpack.c.l.bf16 %v522
        %v1380 = vunpack.c.l.bf16 %v536
        %v1381 = vunpack.c.l.bf16 %v546
        %v1382 = vunpack.c.l.bf16 %v601
        %v1383 = vunpack.c.l.bf16 %v604
        %v1384 = vunpack.c.l.bf16 %v608
        %v1385 = vunpack.c.l.bf16 %v611
        %v1386 = vunpack.c.l.bf16 %v615
        %v1387 = vunpack.c.l.bf16 %v618
        %v1388 = vunpack.c.l.bf16 %v622
        %v1389 = vunpack.c.l.bf16 %v625
        %v1390 = vunpack.c.l.bf16 %v629
        %v1391 = vunpack.c.l.bf16 %v632
        %v1392 = vunpack.c.l.bf16 %v636
        %v1393 = vunpack.c.l.bf16 %v639
        %v1394 = vunpack.c.l.bf16 %v643
        %v1395 = vunpack.c.l.bf16 %v646
        %v1396 = vunpack.c.l.bf16 %v650
        %v1397 = vunpack.c.l.bf16 %v653
        %v1398 = vunpack.c.l.bf16 %v674
        %v1399 = vunpack.c.l.bf16 %v675
        %v1400 = vunpack.c.l.bf16 %v676
        %v1401 = vunpack.c.l.bf16 %v677
        %v1402 = vunpack.c.l.bf16 %v678
        %v1403 = vunpack.c.l.bf16 %v679
        %v1404 = vunpack.c.l.bf16 %v680
        %v1405 = vunpack.c.l.bf16 %v681
        %v1406 = vunpack.c.l.bf16 %v682
        %v1407 = vunpack.c.l.bf16 %v683
        %v1408 = vunpack.c.l.bf16 %v684
        %v1409 = vunpack.c.l.bf16 %v685
        %v1410 = vunpack.c.l.bf16 %v686
        %v1411 = vunpack.c.l.bf16 %v687
        %v1412 = vunpack.c.l.bf16 %v688
        %v1413 = vunpack.c.l.bf16 %v689
        %v1414 = vunpack.c.l.bf16 %v711
        %v1415 = vunpack.c.l.bf16 %v721
        %v1416 = vunpack.c.l.bf16 %v735
        %v1417 = vunpack.c.l.bf16 %v745
        %v1418 = vunpack.c.l.bf16 %v759
        %v1419 = vunpack.c.l.bf16 %v769
        %v1420 = vunpack.c.l.bf16 %v783
        %v1421 = vunpack.c.l.bf16 %v793
        %v1422 = vunpack.c.l.bf16 %v807
        %v1423 = vunpack.c.l.bf16 %v817
        %v1424 = vunpack.c.l.bf16 %v831
        %v1425 = vunpack.c.l.bf16 %v841
        %v1426 = vunpack.c.l.bf16 %v855
        %v1427 = vunpack.c.l.bf16 %v865
        %v1428 = vunpack.c.l.bf16 %v879
        %v1429 = vunpack.c.l.bf16 %v889
        %v1430 = vunpack.c.l.bf16 %v941
        %v1431 = vunpack.c.l.bf16 %v944
        %v1432 = vunpack.c.l.bf16 %v948
        %v1433 = vunpack.c.l.bf16 %v951
        %v1434 = vunpack.c.l.bf16 %v955
        %v1435 = vunpack.c.l.bf16 %v958
        %v1436 = vunpack.c.l.bf16 %v962
        %v1437 = vunpack.c.l.bf16 %v965
        %v1438 = vunpack.c.l.bf16 %v969
        %v1439 = vunpack.c.l.bf16 %v972
        %v1440 = vunpack.c.l.bf16 %v976
        %v1441 = vunpack.c.l.bf16 %v979
        %v1442 = vunpack.c.l.bf16 %v983
        %v1443 = vunpack.c.l.bf16 %v986
        %v1444 = vunpack.c.l.bf16 %v990
        %v1445 = vunpack.c.l.bf16 %v993
        %v1446 = vunpack.c.l.bf16 %v1014
        %v1447 = vunpack.c.l.bf16 %v1015
        %v1448 = vunpack.c.l.bf16 %v1016
        %v1449 = vunpack.c.l.bf16 %v1017
        %v1450 = vunpack.c.l.bf16 %v1018
        %v1451 = vunpack.c.l.bf16 %v1019
        %v1452 = vunpack.c.l.bf16 %v1020
        %v1453 = vunpack.c.l.bf16 %v1021
        %v1454 = vunpack.c.l.bf16 %v1022
        %v1455 = vunpack.c.l.bf16 %v1023
        %v1456 = vunpack.c.l.bf16 %v1024
        %v1457 = vunpack.c.l.bf16 %v1025
        %v1458 = vunpack.c.l.bf16 %v1026
        %v1459 = vunpack.c.l.bf16 %v1027
        %v1460 = vunpack.c.l.bf16 %v1028
        %v1461 = vunpack.c.l.bf16 %v1029
        %v1462 = vunpack.c.l.bf16 %v1051
        %v1463 = vunpack.c.l.bf16 %v1061
        %v1464 = vunpack.c.l.bf16 %v1075
        %v1465 = vunpack.c.l.bf16 %v1085
        %v1466 = vunpack.c.l.bf16 %v1099
        %v1467 = vunpack.c.l.bf16 %v1109
        %v1468 = vunpack.c.l.bf16 %v1123
        %v1469 = vunpack.c.l.bf16 %v1133
        %v1470 = vunpack.c.l.bf16 %v1147
        %v1471 = vunpack.c.l.bf16 %v1157
        %v1472 = vunpack.c.l.bf16 %v1171
        %v1473 = vunpack.c.l.bf16 %v1181
        %v1474 = vunpack.c.l.bf16 %v1195
        %v1475 = vunpack.c.l.bf16 %v1205
        %v1476 = vunpack.c.l.bf16 %v1219
        %v1477 = vunpack.c.l.bf16 %v1229
        %v1478 = vunpack.c.l.bf16 %v1281
        %v1479 = vunpack.c.l.bf16 %v1284
        %v1480 = vunpack.c.l.bf16 %v1288
        %v1481 = vunpack.c.l.bf16 %v1291
        %v1482 = vunpack.c.l.bf16 %v1295
        %v1483 = vunpack.c.l.bf16 %v1298
        %v1484 = vunpack.c.l.bf16 %v1302
        %v1485 = vunpack.c.l.bf16 %v1305
        %v1486 = vunpack.c.l.bf16 %v1309
        %v1487 = vunpack.c.l.bf16 %v1312
        %v1488 = vunpack.c.l.bf16 %v1316
        %v1489 = vunpack.c.l.bf16 %v1319
        %v1490 = vunpack.c.l.bf16 %v1323
        %v1491 = vunpack.c.l.bf16 %v1326
        %v1492 = vunpack.c.l.bf16 %v1330
        %v1493 = vunpack.c.l.bf16 %v1333
        %1510 = vrot.lane.b32.xlu0 %v1366, 4
        %v1511 = vpop.permute.xlu0 %1510
        %1512 = vrot.lane.b32.xlu0 %v1367, 4
        %v1513 = vpop.permute.xlu0 %1512
        %1514 = vrot.lane.b32.xlu0 %v1368, 4
        %v1515 = vpop.permute.xlu0 %1514
        %1516 = vrot.lane.b32.xlu0 %v1369, 4
        %v1517 = vpop.permute.xlu0 %1516
        %1518 = vrot.lane.b32.xlu0 %v1370, 4
        %v1519 = vpop.permute.xlu0 %1518
        %1520 = vrot.lane.b32.xlu0 %v1371, 4
        %v1521 = vpop.permute.xlu0 %1520
        %1522 = vrot.lane.b32.xlu0 %v1372, 4
        %v1523 = vpop.permute.xlu0 %1522
        %1524 = vrot.lane.b32.xlu0 %v1373, 4
        %v1525 = vpop.permute.xlu0 %1524
        %1526 = vrot.lane.b32.xlu0 %v1374, 4
        %v1527 = vpop.permute.xlu0 %1526
        %1528 = vrot.lane.b32.xlu0 %v1375, 4
        %v1529 = vpop.permute.xlu0 %1528
        %1530 = vrot.lane.b32.xlu0 %v1376, 4
        %v1531 = vpop.permute.xlu0 %1530
        %1532 = vrot.lane.b32.xlu0 %v1377, 4
        %v1533 = vpop.permute.xlu0 %1532
        %1534 = vrot.lane.b32.xlu0 %v1378, 4
        %v1535 = vpop.permute.xlu0 %1534
        %1536 = vrot.lane.b32.xlu0 %v1379, 4
        %v1537 = vpop.permute.xlu0 %1536
        %1538 = vrot.lane.b32.xlu0 %v1380, 4
        %v1539 = vpop.permute.xlu0 %1538
        %1540 = vrot.lane.b32.xlu0 %v1381, 4
        %v1541 = vpop.permute.xlu0 %1540
        %1574 = vrot.lane.b32.xlu0 %v1382, 8
        %v1575 = vpop.permute.xlu0 %1574
        %1576 = vrot.lane.b32.xlu0 %v1383, 8
        %v1577 = vpop.permute.xlu0 %1576
        %1578 = vrot.lane.b32.xlu0 %v1384, 8
        %v1579 = vpop.permute.xlu0 %1578
        %1580 = vrot.lane.b32.xlu0 %v1385, 8
        %v1581 = vpop.permute.xlu0 %1580
        %1582 = vrot.lane.b32.xlu0 %v1386, 8
        %v1583 = vpop.permute.xlu0 %1582
        %1584 = vrot.lane.b32.xlu0 %v1387, 8
        %v1585 = vpop.permute.xlu0 %1584
        %1586 = vrot.lane.b32.xlu0 %v1388, 8
        %v1587 = vpop.permute.xlu0 %1586
        %1588 = vrot.lane.b32.xlu0 %v1389, 8
        %v1589 = vpop.permute.xlu0 %1588
        %1590 = vrot.lane.b32.xlu0 %v1390, 8
        %v1591 = vpop.permute.xlu0 %1590
        %1592 = vrot.lane.b32.xlu0 %v1391, 8
        %v1593 = vpop.permute.xlu0 %1592
        %1594 = vrot.lane.b32.xlu0 %v1392, 8
        %v1595 = vpop.permute.xlu0 %1594
        %1596 = vrot.lane.b32.xlu0 %v1393, 8
        %v1597 = vpop.permute.xlu0 %1596
        %1598 = vrot.lane.b32.xlu0 %v1394, 8
        %v1599 = vpop.permute.xlu0 %1598
        %1600 = vrot.lane.b32.xlu0 %v1395, 8
        %v1601 = vpop.permute.xlu0 %1600
        %1602 = vrot.lane.b32.xlu0 %v1396, 8
        %v1603 = vpop.permute.xlu0 %1602
        %1604 = vrot.lane.b32.xlu0 %v1397, 8
        %v1605 = vpop.permute.xlu0 %1604
        %1638 = vrot.lane.b32.xlu0 %v1398, 12
        %v1639 = vpop.permute.xlu0 %1638
        %1640 = vrot.lane.b32.xlu0 %v1399, 12
        %v1641 = vpop.permute.xlu0 %1640
        %1642 = vrot.lane.b32.xlu0 %v1400, 12
        %v1643 = vpop.permute.xlu0 %1642
        %1644 = vrot.lane.b32.xlu0 %v1401, 12
        %v1645 = vpop.permute.xlu0 %1644
        %1646 = vrot.lane.b32.xlu0 %v1402, 12
        %v1647 = vpop.permute.xlu0 %1646
        %1648 = vrot.lane.b32.xlu0 %v1403, 12
        %v1649 = vpop.permute.xlu0 %1648
        %1650 = vrot.lane.b32.xlu0 %v1404, 12
        %v1651 = vpop.permute.xlu0 %1650
        %1652 = vrot.lane.b32.xlu0 %v1405, 12
        %v1653 = vpop.permute.xlu0 %1652
        %1654 = vrot.lane.b32.xlu0 %v1406, 12
        %v1655 = vpop.permute.xlu0 %1654
        %1656 = vrot.lane.b32.xlu0 %v1407, 12
        %v1657 = vpop.permute.xlu0 %1656
        %1658 = vrot.lane.b32.xlu0 %v1408, 12
        %v1659 = vpop.permute.xlu0 %1658
        %1660 = vrot.lane.b32.xlu0 %v1409, 12
        %v1661 = vpop.permute.xlu0 %1660
        %1662 = vrot.lane.b32.xlu0 %v1410, 12
        %v1663 = vpop.permute.xlu0 %1662
        %1664 = vrot.lane.b32.xlu0 %v1411, 12
        %v1665 = vpop.permute.xlu0 %1664
        %1666 = vrot.lane.b32.xlu0 %v1412, 12
        %v1667 = vpop.permute.xlu0 %1666
        %1668 = vrot.lane.b32.xlu0 %v1413, 12
        %v1669 = vpop.permute.xlu0 %1668
        %1702 = vrot.lane.b32.xlu0 %v1414, 16
        %v1703 = vpop.permute.xlu0 %1702
        %1704 = vrot.lane.b32.xlu0 %v1415, 16
        %v1705 = vpop.permute.xlu0 %1704
        %1706 = vrot.lane.b32.xlu0 %v1416, 16
        %v1707 = vpop.permute.xlu0 %1706
        %1708 = vrot.lane.b32.xlu0 %v1417, 16
        %v1709 = vpop.permute.xlu0 %1708
        %1710 = vrot.lane.b32.xlu0 %v1418, 16
        %v1711 = vpop.permute.xlu0 %1710
        %1712 = vrot.lane.b32.xlu0 %v1419, 16
        %v1713 = vpop.permute.xlu0 %1712
        %1714 = vrot.lane.b32.xlu0 %v1420, 16
        %v1715 = vpop.permute.xlu0 %1714
        %1716 = vrot.lane.b32.xlu0 %v1421, 16
        %v1717 = vpop.permute.xlu0 %1716
        %1718 = vrot.lane.b32.xlu0 %v1422, 16
        %v1719 = vpop.permute.xlu0 %1718
        %1720 = vrot.lane.b32.xlu0 %v1423, 16
        %v1721 = vpop.permute.xlu0 %1720
        %1722 = vrot.lane.b32.xlu0 %v1424, 16
        %v1723 = vpop.permute.xlu0 %1722
        %1724 = vrot.lane.b32.xlu0 %v1425, 16
        %v1725 = vpop.permute.xlu0 %1724
        %1726 = vrot.lane.b32.xlu0 %v1426, 16
        %v1727 = vpop.permute.xlu0 %1726
        %1728 = vrot.lane.b32.xlu0 %v1427, 16
        %v1729 = vpop.permute.xlu0 %1728
        %1730 = vrot.lane.b32.xlu0 %v1428, 16
        %v1731 = vpop.permute.xlu0 %1730
        %1732 = vrot.lane.b32.xlu0 %v1429, 16
        %v1733 = vpop.permute.xlu0 %1732
        %1766 = vrot.lane.b32.xlu0 %v1430, 20
        %v1767 = vpop.permute.xlu0 %1766
        %1768 = vrot.lane.b32.xlu0 %v1431, 20
        %v1769 = vpop.permute.xlu0 %1768
        %1770 = vrot.lane.b32.xlu0 %v1432, 20
        %v1771 = vpop.permute.xlu0 %1770
        %1772 = vrot.lane.b32.xlu0 %v1433, 20
        %v1773 = vpop.permute.xlu0 %1772
        %1774 = vrot.lane.b32.xlu0 %v1434, 20
        %v1775 = vpop.permute.xlu0 %1774
        %1776 = vrot.lane.b32.xlu0 %v1435, 20
        %v1777 = vpop.permute.xlu0 %1776
        %1778 = vrot.lane.b32.xlu0 %v1436, 20
        %v1779 = vpop.permute.xlu0 %1778
        %1780 = vrot.lane.b32.xlu0 %v1437, 20
        %v1781 = vpop.permute.xlu0 %1780
        %1782 = vrot.lane.b32.xlu0 %v1438, 20
        %v1783 = vpop.permute.xlu0 %1782
        %1784 = vrot.lane.b32.xlu0 %v1439, 20
        %v1785 = vpop.permute.xlu0 %1784
        %1786 = vrot.lane.b32.xlu0 %v1440, 20
        %v1787 = vpop.permute.xlu0 %1786
        %1788 = vrot.lane.b32.xlu0 %v1441, 20
        %v1789 = vpop.permute.xlu0 %1788
        %1790 = vrot.lane.b32.xlu0 %v1442, 20
        %v1791 = vpop.permute.xlu0 %1790
        %1792 = vrot.lane.b32.xlu0 %v1443, 20
        %v1793 = vpop.permute.xlu0 %1792
        %1794 = vrot.lane.b32.xlu0 %v1444, 20
        %v1795 = vpop.permute.xlu0 %1794
        %1796 = vrot.lane.b32.xlu0 %v1445, 20
        %v1797 = vpop.permute.xlu0 %1796
        %1830 = vrot.lane.b32.xlu0 %v1446, 24
        %v1831 = vpop.permute.xlu0 %1830
        %1832 = vrot.lane.b32.xlu0 %v1447, 24
        %v1833 = vpop.permute.xlu0 %1832
        %1834 = vrot.lane.b32.xlu0 %v1448, 24
        %v1835 = vpop.permute.xlu0 %1834
        %1836 = vrot.lane.b32.xlu0 %v1449, 24
        %v1837 = vpop.permute.xlu0 %1836
        %1838 = vrot.lane.b32.xlu0 %v1450, 24
        %v1839 = vpop.permute.xlu0 %1838
        %1840 = vrot.lane.b32.xlu0 %v1451, 24
        %v1841 = vpop.permute.xlu0 %1840
        %1842 = vrot.lane.b32.xlu0 %v1452, 24
        %v1843 = vpop.permute.xlu0 %1842
        %1844 = vrot.lane.b32.xlu0 %v1453, 24
        %v1845 = vpop.permute.xlu0 %1844
        %1846 = vrot.lane.b32.xlu0 %v1454, 24
        %v1847 = vpop.permute.xlu0 %1846
        %1848 = vrot.lane.b32.xlu0 %v1455, 24
        %v1849 = vpop.permute.xlu0 %1848
        %1850 = vrot.lane.b32.xlu0 %v1456, 24
        %v1851 = vpop.permute.xlu0 %1850
        %1852 = vrot.lane.b32.xlu0 %v1457, 24
        %v1853 = vpop.permute.xlu0 %1852
        %1854 = vrot.lane.b32.xlu0 %v1458, 24
        %v1855 = vpop.permute.xlu0 %1854
        %1856 = vrot.lane.b32.xlu0 %v1459, 24
        %v1857 = vpop.permute.xlu0 %1856
        %1858 = vrot.lane.b32.xlu0 %v1460, 24
        %v1859 = vpop.permute.xlu0 %1858
        %1860 = vrot.lane.b32.xlu0 %v1461, 24
        %v1861 = vpop.permute.xlu0 %1860
        %1894 = vrot.lane.b32.xlu0 %v1462, 28
        %v1895 = vpop.permute.xlu0 %1894
        %1896 = vrot.lane.b32.xlu0 %v1463, 28
        %v1897 = vpop.permute.xlu0 %1896
        %1898 = vrot.lane.b32.xlu0 %v1464, 28
        %v1899 = vpop.permute.xlu0 %1898
        %1900 = vrot.lane.b32.xlu0 %v1465, 28
        %v1901 = vpop.permute.xlu0 %1900
        %1902 = vrot.lane.b32.xlu0 %v1466, 28
        %v1903 = vpop.permute.xlu0 %1902
        %1904 = vrot.lane.b32.xlu0 %v1467, 28
        %v1905 = vpop.permute.xlu0 %1904
        %1906 = vrot.lane.b32.xlu0 %v1468, 28
        %v1907 = vpop.permute.xlu0 %1906
        %1908 = vrot.lane.b32.xlu0 %v1469, 28
        %v1909 = vpop.permute.xlu0 %1908
        %1910 = vrot.lane.b32.xlu0 %v1470, 28
        %v1911 = vpop.permute.xlu0 %1910
        %1912 = vrot.lane.b32.xlu0 %v1471, 28
        %v1913 = vpop.permute.xlu0 %1912
        %1914 = vrot.lane.b32.xlu0 %v1472, 28
        %v1915 = vpop.permute.xlu0 %1914
        %1916 = vrot.lane.b32.xlu0 %v1473, 28
        %v1917 = vpop.permute.xlu0 %1916
        %1918 = vrot.lane.b32.xlu0 %v1474, 28
        %v1919 = vpop.permute.xlu0 %1918
        %1920 = vrot.lane.b32.xlu0 %v1475, 28
        %v1921 = vpop.permute.xlu0 %1920
        %1922 = vrot.lane.b32.xlu0 %v1476, 28
        %v1923 = vpop.permute.xlu0 %1922
        %1924 = vrot.lane.b32.xlu0 %v1477, 28
        %v1925 = vpop.permute.xlu0 %1924
        %1958 = vrot.lane.b32.xlu0 %v1478, 32
        %v1959 = vpop.permute.xlu0 %1958
        %1960 = vrot.lane.b32.xlu0 %v1479, 32
        %v1961 = vpop.permute.xlu0 %1960
        %1962 = vrot.lane.b32.xlu0 %v1480, 32
        %v1963 = vpop.permute.xlu0 %1962
        %1964 = vrot.lane.b32.xlu0 %v1481, 32
        %v1965 = vpop.permute.xlu0 %1964
        %1966 = vrot.lane.b32.xlu0 %v1482, 32
        %v1967 = vpop.permute.xlu0 %1966
        %1968 = vrot.lane.b32.xlu0 %v1483, 32
        %v1969 = vpop.permute.xlu0 %1968
        %1970 = vrot.lane.b32.xlu0 %v1484, 32
        %v1971 = vpop.permute.xlu0 %1970
        %1972 = vrot.lane.b32.xlu0 %v1485, 32
        %v1973 = vpop.permute.xlu0 %1972
        %1974 = vrot.lane.b32.xlu0 %v1486, 32
        %v1975 = vpop.permute.xlu0 %1974
        %1976 = vrot.lane.b32.xlu0 %v1487, 32
        %v1977 = vpop.permute.xlu0 %1976
        %1978 = vrot.lane.b32.xlu0 %v1488, 32
        %v1979 = vpop.permute.xlu0 %1978
        %1980 = vrot.lane.b32.xlu0 %v1489, 32
        %v1981 = vpop.permute.xlu0 %1980
        %1982 = vrot.lane.b32.xlu0 %v1490, 32
        %v1983 = vpop.permute.xlu0 %1982
        %1984 = vrot.lane.b32.xlu0 %v1491, 32
        %v1985 = vpop.permute.xlu0 %1984
        %1986 = vrot.lane.b32.xlu0 %v1492, 32
        %v1987 = vpop.permute.xlu0 %1986
        %1988 = vrot.lane.b32.xlu0 %v1493, 32
        %v1989 = vpop.permute.xlu0 %1988
        %vm2006 = vcmask 31744
        %v2007 = vsel %vm2006, %v1350, %v1511
        %v2008 = vsel %vm2006, %v1351, %v1513
        %v2009 = vsel %vm2006, %v1352, %v1515
        %v2010 = vsel %vm2006, %v1353, %v1517
        %v2011 = vsel %vm2006, %v1354, %v1519
        %v2012 = vsel %vm2006, %v1355, %v1521
        %v2013 = vsel %vm2006, %v1356, %v1523
        %v2014 = vsel %vm2006, %v1357, %v1525
        %v2015 = vsel %vm2006, %v1358, %v1527
        %v2016 = vsel %vm2006, %v1359, %v1529
        %v2017 = vsel %vm2006, %v1360, %v1531
        %v2018 = vsel %vm2006, %v1361, %v1533
        %v2019 = vsel %vm2006, %v1362, %v1535
        %v2020 = vsel %vm2006, %v1363, %v1537
        %v2021 = vsel %vm2006, %v1364, %v1539
        %v2022 = vsel %vm2006, %v1365, %v1541
        %vm2023 = vcmask 64512
        %v2024 = vsel %vm2023, %v2007, %v1575
        %v2025 = vsel %vm2023, %v2008, %v1577
        %v2026 = vsel %vm2023, %v2009, %v1579
        %v2027 = vsel %vm2023, %v2010, %v1581
        %v2028 = vsel %vm2023, %v2011, %v1583
        %v2029 = vsel %vm2023, %v2012, %v1585
        %v2030 = vsel %vm2023, %v2013, %v1587
        %v2031 = vsel %vm2023, %v2014, %v1589
        %v2032 = vsel %vm2023, %v2015, %v1591
        %v2033 = vsel %vm2023, %v2016, %v1593
        %v2034 = vsel %vm2023, %v2017, %v1595
        %v2035 = vsel %vm2023, %v2018, %v1597
        %v2036 = vsel %vm2023, %v2019, %v1599
        %v2037 = vsel %vm2023, %v2020, %v1601
        %v2038 = vsel %vm2023, %v2021, %v1603
        %v2039 = vsel %vm2023, %v2022, %v1605
        %vm2040 = vcmask 97280
        %v2041 = vsel %vm2040, %v2024, %v1639
        %v2042 = vsel %vm2040, %v2025, %v1641
        %v2043 = vsel %vm2040, %v2026, %v1643
        %v2044 = vsel %vm2040, %v2027, %v1645
        %v2045 = vsel %vm2040, %v2028, %v1647
        %v2046 = vsel %vm2040, %v2029, %v1649
        %v2047 = vsel %vm2040, %v2030, %v1651
        %v2048 = vsel %vm2040, %v2031, %v1653
        %v2049 = vsel %vm2040, %v2032, %v1655
        %v2050 = vsel %vm2040, %v2033, %v1657
        %v2051 = vsel %vm2040, %v2034, %v1659
        %v2052 = vsel %vm2040, %v2035, %v1661
        %v2053 = vsel %vm2040, %v2036, %v1663
        %v2054 = vsel %vm2040, %v2037, %v1665
        %v2055 = vsel %vm2040, %v2038, %v1667
        %v2056 = vsel %vm2040, %v2039, %v1669
        %vm2057 = vcmask 130048
        %v2058 = vsel %vm2057, %v2041, %v1703
        %v2059 = vsel %vm2057, %v2042, %v1705
        %v2060 = vsel %vm2057, %v2043, %v1707
        %v2061 = vsel %vm2057, %v2044, %v1709
        %v2062 = vsel %vm2057, %v2045, %v1711
        %v2063 = vsel %vm2057, %v2046, %v1713
        %v2064 = vsel %vm2057, %v2047, %v1715
        %v2065 = vsel %vm2057, %v2048, %v1717
        %v2066 = vsel %vm2057, %v2049, %v1719
        %v2067 = vsel %vm2057, %v2050, %v1721
        %v2068 = vsel %vm2057, %v2051, %v1723
        %v2069 = vsel %vm2057, %v2052, %v1725
        %v2070 = vsel %vm2057, %v2053, %v1727
        %v2071 = vsel %vm2057, %v2054, %v1729
        %v2072 = vsel %vm2057, %v2055, %v1731
        %v2073 = vsel %vm2057, %v2056, %v1733
        %vm2074 = vcmask 162816
        %v2075 = vsel %vm2074, %v2058, %v1767
        %v2076 = vsel %vm2074, %v2059, %v1769
        %v2077 = vsel %vm2074, %v2060, %v1771
        %v2078 = vsel %vm2074, %v2061, %v1773
        %v2079 = vsel %vm2074, %v2062, %v1775
        %v2080 = vsel %vm2074, %v2063, %v1777
        %v2081 = vsel %vm2074, %v2064, %v1779
        %v2082 = vsel %vm2074, %v2065, %v1781
        %v2083 = vsel %vm2074, %v2066, %v1783
        %v2084 = vsel %vm2074, %v2067, %v1785
        %v2085 = vsel %vm2074, %v2068, %v1787
        %v2086 = vsel %vm2074, %v2069, %v1789
        %v2087 = vsel %vm2074, %v2070, %v1791
        %v2088 = vsel %vm2074, %v2071, %v1793
        %v2089 = vsel %vm2074, %v2072, %v1795
        %v2090 = vsel %vm2074, %v2073, %v1797
        %vm2091 = vcmask 195584
        %v2092 = vsel %vm2091, %v2075, %v1831
        %v2093 = vsel %vm2091, %v2076, %v1833
        %v2094 = vsel %vm2091, %v2077, %v1835
        %v2095 = vsel %vm2091, %v2078, %v1837
        %v2096 = vsel %vm2091, %v2079, %v1839
        %v2097 = vsel %vm2091, %v2080, %v1841
        %v2098 = vsel %vm2091, %v2081, %v1843
        %v2099 = vsel %vm2091, %v2082, %v1845
        %v2100 = vsel %vm2091, %v2083, %v1847
        %v2101 = vsel %vm2091, %v2084, %v1849
        %v2102 = vsel %vm2091, %v2085, %v1851
        %v2103 = vsel %vm2091, %v2086, %v1853
        %v2104 = vsel %vm2091, %v2087, %v1855
        %v2105 = vsel %vm2091, %v2088, %v1857
        %v2106 = vsel %vm2091, %v2089, %v1859
        %v2107 = vsel %vm2091, %v2090, %v1861
        %vm2108 = vcmask 228352
        %v2109 = vsel %vm2108, %v2092, %v1895
        %v2110 = vsel %vm2108, %v2093, %v1897
        %v2111 = vsel %vm2108, %v2094, %v1899
        %v2112 = vsel %vm2108, %v2095, %v1901
        %v2113 = vsel %vm2108, %v2096, %v1903
        %v2114 = vsel %vm2108, %v2097, %v1905
        %v2115 = vsel %vm2108, %v2098, %v1907
        %v2116 = vsel %vm2108, %v2099, %v1909
        %v2117 = vsel %vm2108, %v2100, %v1911
        %v2118 = vsel %vm2108, %v2101, %v1913
        %v2119 = vsel %vm2108, %v2102, %v1915
        %v2120 = vsel %vm2108, %v2103, %v1917
        %v2121 = vsel %vm2108, %v2104, %v1919
        %v2122 = vsel %vm2108, %v2105, %v1921
        %v2123 = vsel %vm2108, %v2106, %v1923
        %v2124 = vsel %vm2108, %v2107, %v1925
        %vm2125 = vcmask 261120
        %v2126 = vsel %vm2125, %v2109, %v1959
        %v2127 = vsel %vm2125, %v2110, %v1961
        %v2128 = vsel %vm2125, %v2111, %v1963
        %v2129 = vsel %vm2125, %v2112, %v1965
        %v2130 = vsel %vm2125, %v2113, %v1967
        %v2131 = vsel %vm2125, %v2114, %v1969
        %v2132 = vsel %vm2125, %v2115, %v1971
        %v2133 = vsel %vm2125, %v2116, %v1973
        %v2134 = vsel %vm2125, %v2117, %v1975
        %v2135 = vsel %vm2125, %v2118, %v1977
        %v2136 = vsel %vm2125, %v2119, %v1979
        %v2137 = vsel %vm2125, %v2120, %v1981
        %v2138 = vsel %vm2125, %v2121, %v1983
        %v2139 = vsel %vm2125, %v2122, %v1985
        %v2140 = vsel %vm2125, %v2123, %v1987
        %v2141 = vsel %vm2125, %v2124, %v1989
        %v2142 = vpack.c.bf16 %v2127, %v2126
        %v2143 = vpack.c.bf16 %v2129, %v2128
        %v2144 = vpack.c.bf16 %v2131, %v2130
        %v2145 = vpack.c.bf16 %v2133, %v2132
        %v2146 = vpack.c.bf16 %v2135, %v2134
        %v2147 = vpack.c.bf16 %v2137, %v2136
        %v2148 = vpack.c.bf16 %v2139, %v2138
        %v2149 = vpack.c.bf16 %v2141, %v2140
        %v2150 = vld [vmem:[%s307] sm:$0xf]
        %v2151 = vld [vmem:[%s318] sm:$0xff]
        %v2152 = vld [vmem:[%s314] sm:$0x1]
        %2154 = vset.pattern.permute.xlu0 0
        %2155 = vperm.xlu0 %2154, %v2151
        %v2156 = vpop.permute.xlu0 %2155
        %v2159 = vlaneseq
        %v2160 = vshrl.u32 %v2159, 7
        %v2161 = vsub.s32 0, %v2160
        %v2162 = vrot.slane %v2152, %v2161
        %v2164 = vmul.f32 %v2156, %v2162
        %vm2165 = vcmask 293888
        %v2167 = vsel %vm2165, %v2150, 0
        %v2170 = vsel %vm2165, %v2142, 0
        %v2173 = vsel %vm2165, %v2143, 0
        %v2176 = vsel %vm2165, %v2144, 0
        %v2179 = vsel %vm2165, %v2145, 0
        %v2182 = vsel %vm2165, %v2146, 0
        %v2185 = vsel %vm2165, %v2147, 0
        %v2188 = vsel %vm2165, %v2148, 0
        %v2191 = vsel %vm2165, %v2149, 0
        %2193 = vmatprep.subr.bf16.mxu0 0
        %2194 = vmatpush1.bf16.xpose.msra.mxu0 %v2191
        %2195 = vmatprep.subr.bf16.mxu0 0
        %2196 = vmatpush1.bf16.xpose.msra.mxu0 %v2188
        %2197 = vmatprep.subr.bf16.mxu0 0
        %2198 = vmatpush1.bf16.xpose.msra.mxu0 %v2185
        %2199 = vmatprep.subr.bf16.mxu0 0
        %2200 = vmatpush1.bf16.xpose.msra.mxu0 %v2182
        %2201 = vmatprep.subr.bf16.mxu0 0
        %2202 = vmatpush1.bf16.xpose.msra.mxu0 %v2179
        %2203 = vmatprep.subr.bf16.mxu0 0
        %2204 = vmatpush1.bf16.xpose.msra.mxu0 %v2176
        %2205 = vmatprep.subr.bf16.mxu0 0
        %2206 = vmatpush1.bf16.xpose.msra.mxu0 %v2173
        %2207 = vmatprep.subr.bf16.mxu0 0
        %2208 = vmatpush1.bf16.xpose.msra.mxu0 %v2170
        %2209 = vmatprep.subr.bf16.mxu0 0
        %2210 = vmatpush2.bf16.xpose.msra.mxu0 0
        %2211 = vmatprep.subr.bf16.mxu0 0
        %2212 = vmatpush2.bf16.xpose.msra.mxu0 0
        %2213 = vmatprep.subr.bf16.mxu0 0
        %2214 = vmatpush2.bf16.xpose.msra.mxu0 0
        %2215 = vmatprep.subr.bf16.mxu0 0
        %2216 = vmatpush2.bf16.xpose.msra.mxu0 0
        %2217 = vmatprep.subr.bf16.mxu0 0
        %2218 = vmatpush2.bf16.xpose.msra.mxu0 0
        %2219 = vmatprep.subr.bf16.mxu0 0
        %2220 = vmatpush2.bf16.xpose.msra.mxu0 0
        %2221 = vmatprep.subr.bf16.mxu0 0
        %2222 = vmatpush2.bf16.xpose.msra.mxu0 0
        %2223 = vmatprep.subr.bf16.mxu0 0
        %2224 = vmatpush2.bf16.xpose.msra.mxu0 0
        %2225 = vmatprep.mubr.bf16.mxu0 0
        %2226 = vmatmul.mubr.bf16.gmra.mxu0 %v2167
        %v2227 = vpop.f32.mrf.mxu0
        %v2228 = vadd.f32 %v2164, %v2227
        %v2229 = vpop.f32.mrf.mxu0
        %v2230 = vpop.f32.mrf.mxu0
        %v2231 = vpop.f32.mrf.mxu0
        %2232 = vdwg.mxu0
        %v2233 = vld [vmem:[%s322] sm:$0xff]
        %2235 = vset.pattern.permute.xlu0 0
        %2236 = vperm.xlu0 %2235, %v2233
        %v2237 = vpop.permute.xlu0 %2236
        %v2239 = vadd.f32 %v2228, %v2237
        %vm2240 = vcmp.gt.f32.partialorder %v2239, 0.0
        %v2241 = vmul.f32 %v2239, 0.2
        %v2242 = vsel %vm2240, %v2239, %v2241
        %s2243 = scalar_lea.vmem [#allocation2], %s324
        %2244 = vst [vmem:[%s2243] sm:$0xff] %v2242
        %p2245 = scmp.eq.s32.totalorder %s26, 1
        // Predicated region
        $region41: #{tpu_custom_call.1} parent=39 // pred_check
          %p2246 = pneg %p2245
        $region42: #{tpu_custom_call.1} parent=39 // pred_check_branch
          %2248 = sbr.rel (%p2246) target = $region44
        $region43: #{tpu_custom_call.1} parent=39 // pred_region
          %v2249 = vld [vmem:[#allocation2] sm:$0xff]
          %s2250 = scalar_lea.vmem [#allocation2], 8
          %v2251 = vld [vmem:[%s2250] sm:$0xff]
          %v2252 = vadd.f32 %v2249, %v2251
          %2253 = vadd.xlane.f32.xlu0 %v2252
          %v2254 = vpop.xlane.xlu0 %2253
          %v2255 = vmul.f32 %v2254, 0.00390625
          %v2256 = vsub.f32 %v2249, %v2255
          %v2257 = vmul.f32 %v2256, %v2256
          %2258 = vadd.xlane.f32.xlu0 %v2257
          %v2259 = vpop.xlane.xlu0 %2258
          %v2260 = vadd.f32 %v2259, 0.0
          %v2261 = vsub.f32 %v2251, %v2255
          %v2262 = vmul.f32 %v2261, %v2261
          %2263 = vadd.xlane.f32.xlu0 %v2262
          %v2264 = vpop.xlane.xlu0 %2263
          %v2265 = vadd.f32 %v2260, %v2264
          %v2266 = vmul.f32 %v2265, 0.00390625
          %v2267 = vadd.f32 %v2266, 1e-05
          %v2268 = vrsqrt.pop %v2267
          %v2269 = vmul.f32 %v2256, %v2268
          %2270 = vst [vmem:[%s298] sm:$0xff] %v2269
          %v2271 = vld [vmem:[%s2250] sm:$0xff]
          %v2272 = vsub.f32 %v2271, %v2255
          %v2273 = vmul.f32 %v2272, %v2268
          %2274 = vst [vmem:[%s298 + $0x8] sm:$0xff] %v2273
        $region44: #{tpu_custom_call.1} parent=39 // pred_fallthru
          _
        %s2275 = sand.u32 %s180, 1
        %s2276 = scalar_lea.sflag [#allocation4], %s2275
        %s2277 = sand.u32 %s180, 1
        %s2278 = smul.addr %s2277, 16
        %s2279 = scalar_lea.vmem [#allocation3], %s2278
        // Predicated region
        $region45: #{tpu_custom_call.1} parent=39 // pred_check
          %p2280 = pneg %p190
        $region46: #{tpu_custom_call.1} parent=39 // pred_check_branch
          %2282 = sbr.rel (%p2280) target = $region48
        $region47: #{tpu_custom_call.1} parent=39 // pred_region
          %s2284 = ssub.s32 256, 256
          %2285 = vsyncadd %s2276, %s2284
          %s2286 = smul.addr %s25, 2
          %s2287 = smul.addr %s24, 4
          %s2288 = sadd.s32 %s2286, %s2287
          %s2289 = smul.addr %s2288, 128
          %s2290 = scalar_lea.hbm %s5, %s2289
          %s2292 = sshll.u32 %s2279, 4
          %s2293 = int_to_ptr.vmem [resolvable:$true] %s2292
          %2295 = dma.vmem_to_hbm [thread:$0]  %s2293, 256, %s2290, %s2276
        $region48: #{tpu_custom_call.1} parent=39 // pred_fallthru
          _
      $region40: #{tpu_custom_call.1} parent=5 // pred_fallthru
        _
      %p2296 = scmp.le.s32.totalorder 2, %s14
      // Predicated region
      $region49: #{tpu_custom_call.1} parent=5 // pred_check
        %p2297 = pneg %p2296
      $region50: #{tpu_custom_call.1} parent=5 // pred_check_branch
        %2299 = sbr.rel (%p2297) target = $region52
      $region51: #{tpu_custom_call.1} parent=5 // pred_region
        %s2300 = ssub.s32 %s14, 2
        // Predicated region
        $region53: #{tpu_custom_call.1} parent=51 // pred_check
          %p2301 = pneg %p196
        $region54: #{tpu_custom_call.1} parent=51 // pred_check_branch
          %2303 = sbr.rel (%p2301) target = $region56
        $region55: #{tpu_custom_call.1} parent=51 // pred_region
          %s2304 = sand.u32 %s181, 1
          %s2305 = scalar_lea.sflag [#allocation4], %s2304
          %s2306 = sand.u32 %s181, 1
          %s2307 = smul.addr %s2306, 16
          %s2308 = scalar_lea.vmem [#allocation3], %s2307
          %2309 = dma.done %s2305, 256
        $region56: #{tpu_custom_call.1} parent=51 // pred_fallthru
          _
      $region52: #{tpu_custom_call.1} parent=5 // pred_fallthru
        _
    $region6: #{tpu_custom_call.1} parent=1 // loop_footer
      %s18 = sadd.s32 1, %s14
    $region7: #{tpu_custom_call.1} parent=1 // loop_footer_branch
      %13 = sbr.rel target = $region3
    $region8: #{tpu_custom_call.1} parent=1 // loop_exit
      _
    %2310 = vsyncpa [#allocation4], 1
    %s2311 = scalar_lea.sflag [#allocation4], 1
    %2312 = vsyncpa %s2311, 1

// kernel: tpu_custom_call.1
$region0: #{tpu_custom_call.1}
  #allocation0 [shape = 'u32[]', space=smem, size = 0x4, offset = 0x4, fixed_abs, tag = 'smem constant byte address 0x4 - core index']
  #allocation1 [shape = 'u32[144,128]{1,0:T(1,128)}', space=vmem, size = 0x12000, scoped, tag = 'internal scratch']
  #allocation2 [shape = 'f32[2,8,128]{2,1,0:T(8,128)}', space=vmem, size = 0x2000, scoped, tag = 'scratch operand']
  %s0 = inlined_call_operand.vmem [shape: bf16[2,18,18,4], index: 0, kind: input, shape index: {}]
  %s1 = inlined_call_operand.vmem [shape: bf16[9,16,4], index: 1, kind: input, shape index: {}]
  %s2 = inlined_call_operand.vmem [shape: f32[2,1,256], index: 2, kind: input, shape index: {}]
  %s3 = inlined_call_operand.vmem [shape: f32[16,1], index: 3, kind: input, shape index: {}]
  %s4 = inlined_call_operand.vmem [shape: f32[16,1], index: 4, kind: input, shape index: {}]
  %s5 = inlined_call_operand.hbm [shape: f32[2,16,256], index: 5, kind: output, shape index: {}]
  %s6 = sld [smem:[#allocation0]]
  $region98: #{tpu_custom_call.1} parent=0
    _
  %s8 = ssub.s32 1, %s6
  %s9 = scalar_select 0, %s8, %s6
  $region1: #{tpu_custom_call.1} parent=0
    #allocation3 [shape = 'u8[36864]{0}', space=vmem, size = 0x9000, scoped, tag = 'input window, operand 1']
    #allocation4 [shape = 'u8[16384]{0}', space=vmem, size = 0x4000, scoped, tag = 'output window, operand 0']
    #allocation5 [shape = 's32[2]{0}', space=sflag, size = 0x8, scoped, tag = 'scoped memory for tpu_custom_call.1']
    %10 = vsyncpa [#allocation5], 0
    %s11 = scalar_lea.sflag [#allocation5], 1
    %12 = vsyncpa %s11, 0
    loop: start=0, step=1, limit=10
    $region2: #{tpu_custom_call.1} parent=1 // loop_pre_header
      _
    $region3: #{tpu_custom_call.1} parent=1 // loop_header
      %s14 = sphi 0, %s18
      %p15 = scmp.ge.s32.totalorder %s14, 10
      %s21 = sphi 0, %s40
      %s22 = sphi 0, %s36
      %s23 = sphi 0, %s32
      %s24 = sphi 0, %s21
      %s25 = sphi 0, %s22
      %s26 = sphi 0, %s23
      %s27 = sphi 0, %s24
      %s28 = sphi 0, %s25
      %s29 = sphi 0, %s26
      %s43 = sphi 0, %s45
      %s46 = sphi 0, %s43
      %s47 = sphi 0, %s46
      %s63 = sphi 0, %s47
      %s69 = sphi 0, %s71
      %s72 = sphi 0, %s69
      %s73 = sphi 0, %s72
      %s89 = sphi 0, %s73
      %s97 = sphi 0, %s99
      %s100 = sphi 0, %s97
      %s101 = sphi 0, %s100
      %s117 = sphi 0, %s101
      %s123 = sphi 0, %s125
      %s126 = sphi 0, %s123
      %s127 = sphi 0, %s126
      %s143 = sphi 0, %s127
      %s149 = sphi 0, %s151
      %s152 = sphi 0, %s149
      %s153 = sphi 0, %s152
      %s169 = sphi 0, %s153
      %s177 = sphi 0, %s179
      %s180 = sphi 0, %s177
      %s181 = sphi 0, %s180
      %s197 = sphi 0, %s181
    $region4: #{tpu_custom_call.1} parent=1 // loop_header_branch
      %17 = sbr.rel (%p15) target = $region8
    $region5: #{tpu_custom_call.1} parent=1 // loop_body
      %s19 = ssub.s32 %s14, 1
      %s20 = ssub.s32 %s14, 2
      %s30 = sadd.s32 1, %s23
      %p31 = scmp.ge.s32.totalorder %s30, 2
      %s32 = scalar_select %p31, 0, %s30
      %s33 = sadd.s32 1, %s22
      %s34 = scalar_select %p31, %s33, %s22
      %p35 = scmp.ge.s32.totalorder %s34, 2
      %s36 = scalar_select %p35, 0, %s34
      %s37 = sadd.s32 1, %s21
      %s38 = scalar_select %p35, %s37, %s21
      %p39 = scmp.ge.s32.totalorder %s38, 2
      %s40 = scalar_select %p39, 0, %s38
      %s41 = ssub.s32 %s21, %s40
      %p42 = scmp.eq.s32.totalorder %s41, 0
      %s44 = sadd.s32 %s43, 1
      %s45 = scalar_select %p42, %s43, %s44
      %p48 = pneg %p42
      %p49 = scmp.eq.s32.totalorder %s14, 7
      %p50 = por %p48, %p49
      %p51 = scmp.ne.s32.totalorder %s43, %s46
      %p52 = scmp.eq.s32.totalorder %s14, 0
      %p53 = por %p51, %p52
      %p54 = scmp.ne.s32.totalorder %s43, %s46
      %p55 = scmp.eq.s32.totalorder %s19, 7
      %p56 = por %p54, %p55
      %p57 = scmp.ne.s32.totalorder %s46, %s47
      %p58 = scmp.eq.s32.totalorder %s19, 0
      %p59 = por %p57, %p58
      %p60 = scmp.ne.s32.totalorder %s46, %s47
      %p61 = scmp.eq.s32.totalorder %s20, 7
      %p62 = por %p60, %p61
      %p64 = scmp.ne.s32.totalorder %s47, %s63
      %p65 = scmp.eq.s32.totalorder %s20, 0
      %p66 = por %p64, %p65
      %s67 = ssub.s32 %s22, %s36
      %p68 = scmp.eq.s32.totalorder %s67, 0
      %s70 = sadd.s32 %s69, 1
      %s71 = scalar_select %p68, %s69, %s70
      %p74 = pneg %p68
      %p75 = scmp.eq.s32.totalorder %s14, 7
      %p76 = por %p74, %p75
      %p77 = scmp.ne.s32.totalorder %s69, %s72
      %p78 = scmp.eq.s32.totalorder %s14, 0
      %p79 = por %p77, %p78
      %p80 = scmp.ne.s32.totalorder %s69, %s72
      %p81 = scmp.eq.s32.totalorder %s19, 7
      %p82 = por %p80, %p81
      %p83 = scmp.ne.s32.totalorder %s72, %s73
      %p84 = scmp.eq.s32.totalorder %s19, 0
      %p85 = por %p83, %p84
      %p86 = scmp.ne.s32.totalorder %s72, %s73
      %p87 = scmp.eq.s32.totalorder %s20, 7
      %p88 = por %p86, %p87
      %p90 = scmp.ne.s32.totalorder %s73, %s89
      %p91 = scmp.eq.s32.totalorder %s20, 0
      %p92 = por %p90, %p91
      %s93 = ssub.s32 %s21, %s40
      %s94 = ssub.s32 %s23, %s32
      %s95 = sor.u32 %s93, %s94
      %p96 = scmp.eq.s32.totalorder %s95, 0
      %s98 = sadd.s32 %s97, 1
      %s99 = scalar_select %p96, %s97, %s98
      %p102 = pneg %p96
      %p103 = scmp.eq.s32.totalorder %s14, 7
      %p104 = por %p102, %p103
      %p105 = scmp.ne.s32.totalorder %s97, %s100
      %p106 = scmp.eq.s32.totalorder %s14, 0
      %p107 = por %p105, %p106
      %p108 = scmp.ne.s32.totalorder %s97, %s100
      %p109 = scmp.eq.s32.totalorder %s19, 7
      %p110 = por %p108, %p109
      %p111 = scmp.ne.s32.totalorder %s100, %s101
      %p112 = scmp.eq.s32.totalorder %s19, 0
      %p113 = por %p111, %p112
      %p114 = scmp.ne.s32.totalorder %s100, %s101
      %p115 = scmp.eq.s32.totalorder %s20, 7
      %p116 = por %p114, %p115
      %p118 = scmp.ne.s32.totalorder %s101, %s117
      %p119 = scmp.eq.s32.totalorder %s20, 0
      %p120 = por %p118, %p119
      %s121 = ssub.s32 %s22, %s36
      %p122 = scmp.eq.s32.totalorder %s121, 0
      %s124 = sadd.s32 %s123, 1
      %s125 = scalar_select %p122, %s123, %s124
      %p128 = pneg %p122
      %p129 = scmp.eq.s32.totalorder %s14, 7
      %p130 = por %p128, %p129
      %p131 = scmp.ne.s32.totalorder %s123, %s126
      %p132 = scmp.eq.s32.totalorder %s14, 0
      %p133 = por %p131, %p132
      %p134 = scmp.ne.s32.totalorder %s123, %s126
      %p135 = scmp.eq.s32.totalorder %s19, 7
      %p136 = por %p134, %p135
      %p137 = scmp.ne.s32.totalorder %s126, %s127
      %p138 = scmp.eq.s32.totalorder %s19, 0
      %p139 = por %p137, %p138
      %p140 = scmp.ne.s32.totalorder %s126, %s127
      %p141 = scmp.eq.s32.totalorder %s20, 7
      %p142 = por %p140, %p141
      %p144 = scmp.ne.s32.totalorder %s127, %s143
      %p145 = scmp.eq.s32.totalorder %s20, 0
      %p146 = por %p144, %p145
      %s147 = ssub.s32 %s22, %s36
      %p148 = scmp.eq.s32.totalorder %s147, 0
      %s150 = sadd.s32 %s149, 1
      %s151 = scalar_select %p148, %s149, %s150
      %p154 = pneg %p148
      %p155 = scmp.eq.s32.totalorder %s14, 7
      %p156 = por %p154, %p155
      %p157 = scmp.ne.s32.totalorder %s149, %s152
      %p158 = scmp.eq.s32.totalorder %s14, 0
      %p159 = por %p157, %p158
      %p160 = scmp.ne.s32.totalorder %s149, %s152
      %p161 = scmp.eq.s32.totalorder %s19, 7
      %p162 = por %p160, %p161
      %p163 = scmp.ne.s32.totalorder %s152, %s153
      %p164 = scmp.eq.s32.totalorder %s19, 0
      %p165 = por %p163, %p164
      %p166 = scmp.ne.s32.totalorder %s152, %s153
      %p167 = scmp.eq.s32.totalorder %s20, 7
      %p168 = por %p166, %p167
      %p170 = scmp.ne.s32.totalorder %s153, %s169
      %p171 = scmp.eq.s32.totalorder %s20, 0
      %p172 = por %p170, %p171
      %s173 = ssub.s32 %s21, %s40
      %s174 = ssub.s32 %s22, %s36
      %s175 = sor.u32 %s173, %s174
      %p176 = scmp.eq.s32.totalorder %s175, 0
      %s178 = sadd.s32 %s177, 1
      %s179 = scalar_select %p176, %s177, %s178
      %p182 = pneg %p176
      %p183 = scmp.eq.s32.totalorder %s14, 7
      %p184 = por %p182, %p183
      %p185 = scmp.ne.s32.totalorder %s177, %s180
      %p186 = scmp.eq.s32.totalorder %s14, 0
      %p187 = por %p185, %p186
      %p188 = scmp.ne.s32.totalorder %s177, %s180
      %p189 = scmp.eq.s32.totalorder %s19, 7
      %p190 = por %p188, %p189
      %p191 = scmp.ne.s32.totalorder %s180, %s181
      %p192 = scmp.eq.s32.totalorder %s19, 0
      %p193 = por %p191, %p192
      %p194 = scmp.ne.s32.totalorder %s180, %s181
      %p195 = scmp.eq.s32.totalorder %s20, 7
      %p196 = por %p194, %p195
      %p198 = scmp.ne.s32.totalorder %s181, %s197
      %p199 = scmp.eq.s32.totalorder %s20, 0
      %p200 = por %p198, %p199
      %p201 = scmp.le.s32.totalorder 1, %s14
      %p202 = scmp.lt.s32.totalorder %s14, 9
      %p203 = pnand %p201, %p202
      %p204 = pneg %p203
      // Predicated region
      $region9: #{tpu_custom_call.1} parent=5 // pred_check
        _
      $region10: #{tpu_custom_call.1} parent=5 // pred_check_branch
        %206 = sbr.rel (%p203) target = $region12
      $region11: #{tpu_custom_call.1} parent=5 // pred_region
        %s207 = ssub.s32 %s14, 1
      $region12: #{tpu_custom_call.1} parent=5 // pred_fallthru
        _
      %p208 = scmp.lt.s32.totalorder %s14, 8
      // Predicated region
      $region13: #{tpu_custom_call.1} parent=5 // pred_check
        %p209 = pneg %p208
      $region14: #{tpu_custom_call.1} parent=5 // pred_check_branch
        %211 = sbr.rel (%p209) target = $region16
      $region15: #{tpu_custom_call.1} parent=5 // pred_region
        // Predicated region
        $region17: #{tpu_custom_call.1} parent=15 // pred_check
          %p212 = pneg %p53
        $region18: #{tpu_custom_call.1} parent=15 // pred_check_branch
          %214 = sbr.rel (%p212) target = $region20
        $region19: #{tpu_custom_call.1} parent=15 // pred_region
          %p215 = scmp.lt.s32.totalorder %s21, 1
          %s216 = scalar_select %p215, %s21, 1
          %s217 = smul.addr %s216, 54
          %s218 = smul.addr %s217, 4
          %s219 = scalar_lea.vmem %s0, %s218
        $region20: #{tpu_custom_call.1} parent=15 // pred_fallthru
          _
        // Predicated region
        $region21: #{tpu_custom_call.1} parent=15 // pred_check
          %p220 = pneg %p79
        $region22: #{tpu_custom_call.1} parent=15 // pred_check_branch
          %222 = sbr.rel (%p220) target = $region24
        $region23: #{tpu_custom_call.1} parent=15 // pred_region
          %s223 = sand.u32 %s69, 1
          %s224 = sand.u32 %s69, 1
          %s225 = smul.addr %s224, 36
          %s226 = scalar_lea.vmem [#allocation3], %s225
          %s227 = smul.addr %s22, 4
          %s228 = scalar_lea.vmem %s1, %s227
          // Predicated region
          $region25: #{tpu_custom_call.1} parent=23 // pred_check
            _
          $region26: #{tpu_custom_call.1} parent=23 // pred_check_branch
            %230 = sbr.rel (0) target = $region28
          $region27: #{tpu_custom_call.1} parent=23 // pred_region
            // Predicated region
            $region29: #{tpu_custom_call.1} parent=27 // pred_check
              _
            $region30: #{tpu_custom_call.1} parent=27 // pred_check_branch
              %232 = sbr.rel target = $region32
            $region31: #{tpu_custom_call.1} parent=27 // pred_region
              // Predicated region
              $region44: #{tpu_custom_call.1} parent=31 // pred_check
                _
              $region45: #{tpu_custom_call.1} parent=31 // pred_check_branch
                %264 = sbr.rel (0) target = $region47
              $region46: #{tpu_custom_call.1} parent=31 // pred_region
                loop: start=0, step=1, limit=1
                $region48: #{tpu_custom_call.1} parent=46 // loop_pre_header
                  _
                $region49: #{tpu_custom_call.1} parent=46 // loop_header
                  %s266 = sphi 0, %s270
                  %p267 = scmp.ge.s32.totalorder %s266, 1
                  %s271 = sphi %s228, %s228
                  %s272 = sphi %s226, %s226
                $region50: #{tpu_custom_call.1} parent=46 // loop_header_branch
                  %269 = sbr.rel (%p267) target = $region54
                $region51: #{tpu_custom_call.1} parent=46 // loop_body
                  _
                $region52: #{tpu_custom_call.1} parent=46 // loop_footer
                  %s270 = sadd.s32 1, %s266
                $region53: #{tpu_custom_call.1} parent=46 // loop_footer_branch
                  %265 = sbr.rel target = $region49
                $region54: #{tpu_custom_call.1} parent=46 // loop_exit
                  _
                %s274 = ssub.s32 16, 1
                loop: start=0, step=1, limit=1
                $region55: #{tpu_custom_call.1} parent=46 // loop_pre_header
                  _
                $region56: #{tpu_custom_call.1} parent=46 // loop_header
                  %s276 = sphi 0, %s280
                  %p277 = scmp.ge.s32.totalorder %s276, 1
                  %s281 = sphi %s228, %s228
                  %s282 = sphi %s226, %s226
                $region57: #{tpu_custom_call.1} parent=46 // loop_header_branch
                  %279 = sbr.rel (%p277) target = $region61
                $region58: #{tpu_custom_call.1} parent=46 // loop_body
                  %v283 = vld [vmem:[%s281] sm:%s274]
                  %284 = vst [vmem:[%s282] sm:%s274] %v283
                  %v285 = vld [vmem:[%s281 + $0x8] sm:%s274]
                  %286 = vst [vmem:[%s282 + $0x4] sm:%s274] %v285
                  %v287 = vld [vmem:[%s281 + $0x10] sm:%s274]
                  %288 = vst [vmem:[%s282 + $0x8] sm:%s274] %v287
                  %v289 = vld [vmem:[%s281 + $0x18] sm:%s274]
                  %290 = vst [vmem:[%s282 + $0xc] sm:%s274] %v289
                  %v291 = vld [vmem:[%s281 + $0x20] sm:%s274]
                  %292 = vst [vmem:[%s282 + $0x10] sm:%s274] %v291
                  %v293 = vld [vmem:[%s281 + $0x28] sm:%s274]
                  %294 = vst [vmem:[%s282 + $0x14] sm:%s274] %v293
                  %v295 = vld [vmem:[%s281 + $0x30] sm:%s274]
                  %296 = vst [vmem:[%s282 + $0x18] sm:%s274] %v295
                  %v297 = vld [vmem:[%s281 + $0x38] sm:%s274]
                  %298 = vst [vmem:[%s282 + $0x1c] sm:%s274] %v297
                  %v299 = vld [vmem:[%s281 + $0x40] sm:%s274]
                  %300 = vst [vmem:[%s282 + $0x20] sm:%s274] %v299
                $region59: #{tpu_custom_call.1} parent=46 // loop_footer
                  %s280 = sadd.s32 1, %s276
                $region60: #{tpu_custom_call.1} parent=46 // loop_footer_branch
                  %275 = sbr.rel target = $region56
                $region61: #{tpu_custom_call.1} parent=46 // loop_exit
                  _
              $region47: #{tpu_custom_call.1} parent=31 // pred_fallthru
                _
            $region32: #{tpu_custom_call.1} parent=27 // pred_fallthru
              _
            // Predicated region
            $region33: #{tpu_custom_call.1} parent=27 // pred_check
              _
            $region34: #{tpu_custom_call.1} parent=27 // pred_check_branch
              %234 = sbr.rel (0) target = $region36
            $region35: #{tpu_custom_call.1} parent=27 // pred_region
              %s236 = ssub.s32 16, 1
              loop: start=0, step=1, limit=1
              $region37: #{tpu_custom_call.1} parent=35 // loop_pre_header
                _
              $region38: #{tpu_custom_call.1} parent=35 // loop_header
                %s238 = sphi 0, %s242
                %p239 = scmp.ge.s32.totalorder %s238, 1
                %s243 = sphi %s228, %s228
                %s244 = sphi %s226, %s226
              $region39: #{tpu_custom_call.1} parent=35 // loop_header_branch
                %241 = sbr.rel (%p239) target = $region43
              $region40: #{tpu_custom_call.1} parent=35 // loop_body
                %v245 = vld [vmem:[%s243] sm:%s236]
                %246 = vst [vmem:[%s244] sm:%s236] %v245
                %v247 = vld [vmem:[%s243 + $0x8] sm:%s236]
                %248 = vst [vmem:[%s244 + $0x4] sm:%s236] %v247
                %v249 = vld [vmem:[%s243 + $0x10] sm:%s236]
                %250 = vst [vmem:[%s244 + $0x8] sm:%s236] %v249
                %v251 = vld [vmem:[%s243 + $0x18] sm:%s236]
                %252 = vst [vmem:[%s244 + $0xc] sm:%s236] %v251
                %v253 = vld [vmem:[%s243 + $0x20] sm:%s236]
                %254 = vst [vmem:[%s244 + $0x10] sm:%s236] %v253
                %v255 = vld [vmem:[%s243 + $0x28] sm:%s236]
                %256 = vst [vmem:[%s244 + $0x14] sm:%s236] %v255
                %v257 = vld [vmem:[%s243 + $0x30] sm:%s236]
                %258 = vst [vmem:[%s244 + $0x18] sm:%s236] %v257
                %v259 = vld [vmem:[%s243 + $0x38] sm:%s236]
                %260 = vst [vmem:[%s244 + $0x1c] sm:%s236] %v259
                %v261 = vld [vmem:[%s243 + $0x40] sm:%s236]
                %262 = vst [vmem:[%s244 + $0x20] sm:%s236] %v261
              $region41: #{tpu_custom_call.1} parent=35 // loop_footer
                %s242 = sadd.s32 1, %s238
              $region42: #{tpu_custom_call.1} parent=35 // loop_footer_branch
                %237 = sbr.rel target = $region38
              $region43: #{tpu_custom_call.1} parent=35 // loop_exit
                _
            $region36: #{tpu_custom_call.1} parent=27 // pred_fallthru
              _
          $region28: #{tpu_custom_call.1} parent=23 // pred_fallthru
            _
          %301 = vnop
        $region24: #{tpu_custom_call.1} parent=15 // pred_fallthru
          _
        // Predicated region
        $region62: #{tpu_custom_call.1} parent=15 // pred_check
          %p302 = pneg %p107
        $region63: #{tpu_custom_call.1} parent=15 // pred_check_branch
          %304 = sbr.rel (%p302) target = $region65
        $region64: #{tpu_custom_call.1} parent=15 // pred_region
          %p305 = scmp.lt.s32.totalorder %s21, 1
          %s306 = scalar_select %p305, %s21, 1
          %p307 = scmp.lt.s32.totalorder %s23, 1
          %s308 = scalar_select %p307, %s23, 1
          %s309 = smul.addr %s306, 2
          %s310 = sadd.s32 %s308, %s309
          %s311 = scalar_lea.vmem %s2, %s310
        $region65: #{tpu_custom_call.1} parent=15 // pred_fallthru
          _
        // Predicated region
        $region66: #{tpu_custom_call.1} parent=15 // pred_check
          %p312 = pneg %p133
        $region67: #{tpu_custom_call.1} parent=15 // pred_check_branch
          %314 = sbr.rel (%p312) target = $region69
        $region68: #{tpu_custom_call.1} parent=15 // pred_region
          %p315 = scmp.lt.s32.totalorder %s22, 1
          %s316 = scalar_select %p315, %s22, 1
          %s317 = smul.addr %s316, 8
          %s318 = scalar_lea.vmem %s3, %s317
        $region69: #{tpu_custom_call.1} parent=15 // pred_fallthru
          _
        // Predicated region
        $region70: #{tpu_custom_call.1} parent=15 // pred_check
          %p319 = pneg %p159
        $region71: #{tpu_custom_call.1} parent=15 // pred_check_branch
          %321 = sbr.rel (%p319) target = $region73
        $region72: #{tpu_custom_call.1} parent=15 // pred_region
          %p322 = scmp.lt.s32.totalorder %s22, 1
          %s323 = scalar_select %p322, %s22, 1
          %s324 = smul.addr %s323, 8
          %s325 = scalar_lea.vmem %s4, %s324
        $region73: #{tpu_custom_call.1} parent=15 // pred_fallthru
          _
      $region16: #{tpu_custom_call.1} parent=5 // pred_fallthru
        _
      %p326 = scmp.le.s32.totalorder 1, %s14
      %p327 = scmp.lt.s32.totalorder %s14, 9
      %p328 = pnand %p326, %p327
      %p329 = pneg %p328
      // Predicated region
      $region74: #{tpu_custom_call.1} parent=5 // pred_check
        _
      $region75: #{tpu_custom_call.1} parent=5 // pred_check_branch
        %331 = sbr.rel (%p328) target = $region77
      $region76: #{tpu_custom_call.1} parent=5 // pred_region
        %s332 = ssub.s32 %s14, 1
        %s333 = sand.u32 %s72, 1
        %s334 = sand.u32 %s72, 1
        %s335 = smul.addr %s334, 36
        %s336 = scalar_lea.vmem [#allocation3], %s335
        // Predicated region
        $region78: #{tpu_custom_call.1} parent=76 // pred_check
          %p337 = pneg %p85
        $region79: #{tpu_custom_call.1} parent=76 // pred_check_branch
          %339 = sbr.rel (%p337) target = $region81
        $region80: #{tpu_custom_call.1} parent=76 // pred_region
          _
        $region81: #{tpu_custom_call.1} parent=76 // pred_fallthru
          _
        %p340 = scmp.lt.s32.totalorder %s24, 1
        %s341 = scalar_select %p340, %s24, 1
        %s342 = smul.addr %s341, 54
        %s343 = smul.addr %s342, 4
        %s344 = scalar_lea.vmem %s0, %s343
        %p345 = pneg %p59
        %p346 = pneg %p56
        %s347 = sand.u32 %s72, 1
        %s348 = sand.u32 %s72, 1
        %s349 = smul.addr %s348, 36
        %s350 = scalar_lea.vmem [#allocation3], %s349
        %p351 = pneg %p85
        %p352 = pneg %p82
        %p353 = scmp.lt.s32.totalorder %s24, 1
        %s354 = scalar_select %p353, %s24, 1
        %p355 = scmp.lt.s32.totalorder %s26, 1
        %s356 = scalar_select %p355, %s26, 1
        %s357 = smul.addr %s354, 2
        %s358 = sadd.s32 %s356, %s357
        %s359 = scalar_lea.vmem %s2, %s358
        %p360 = pneg %p113
        %p361 = pneg %p110
        %p362 = scmp.lt.s32.totalorder %s25, 1
        %s363 = scalar_select %p362, %s25, 1
        %s364 = smul.addr %s363, 8
        %s365 = scalar_lea.vmem %s3, %s364
        %p366 = pneg %p139
        %p367 = pneg %p136
        %p368 = scmp.lt.s32.totalorder %s25, 1
        %s369 = scalar_select %p368, %s25, 1
        %s370 = smul.addr %s369, 8
        %s371 = scalar_lea.vmem %s4, %s370
        %p372 = pneg %p165
        %p373 = pneg %p162
        %p374 = pneg %p193
        %p375 = pneg %p190
        %s376 = sand.u32 %s180, 1
        %s377 = scalar_lea.sflag [#allocation5], %s376
        %s378 = sand.u32 %s180, 1
        %s379 = smul.addr %s378, 16
        %s380 = scalar_lea.vmem [#allocation4], %s379
        %p381 = scmp.lt.s32.totalorder %s24, 1
        %s382 = scalar_select %p381, %s24, 1
        %s383 = smul.addr %s382, 54
        %s384 = smul.addr %s383, 4
        %s385 = scalar_lea.vmem %s0, %s384
        %p386 = scmp.lt.s32.totalorder %s24, 1
        %s387 = scalar_select %p386, %s24, 1
        %p388 = scmp.lt.s32.totalorder %s26, 1
        %s389 = scalar_select %p388, %s26, 1
        %s390 = smul.addr %s387, 2
        %s391 = sadd.s32 %s389, %s390
        %s392 = scalar_lea.vmem %s2, %s391
        %p393 = scmp.lt.s32.totalorder %s25, 1
        %s394 = scalar_select %p393, %s25, 1
        %s395 = smul.addr %s394, 8
        %s396 = scalar_lea.vmem %s3, %s395
        %p397 = scmp.lt.s32.totalorder %s25, 1
        %s398 = scalar_select %p397, %s25, 1
        %s399 = smul.addr %s398, 8
        %s400 = scalar_lea.vmem %s4, %s399
        %s402 = smul.u32 %s26, 8
        %s403 = smul.u32 %s402, 3
        %s404 = smul.addr %s403, 4
        %s405 = scalar_lea.vmem %s385, %s404
        %v406 = vld [vmem:[%s405] sm:$0xf]
        %v407 = vld [vmem:[%s405 + $0x4] sm:$0xf]
        %v408 = vld [vmem:[%s405 + $0xc] sm:$0xf]
        %v409 = vld [vmem:[%s405 + $0x10] sm:$0xf]
        %v410 = vld [vmem:[%s405 + $0x18] sm:$0xf]
        %v411 = vld [vmem:[%s405 + $0x1c] sm:$0xf]
        %v412 = vld [vmem:[%s405 + $0x24] sm:$0xf]
        %v413 = vld [vmem:[%s405 + $0x28] sm:$0xf]
        %v414 = vld [vmem:[%s405 + $0x30] sm:$0xf]
        %v415 = vld [vmem:[%s405 + $0x34] sm:$0xf]
        %v416 = vld [vmem:[%s405 + $0x3c] sm:$0xf]
        %v417 = vld [vmem:[%s405 + $0x40] sm:$0xf]
        %v418 = vld [vmem:[%s405 + $0x48] sm:$0xf]
        %v419 = vld [vmem:[%s405 + $0x4c] sm:$0xf]
        %v420 = vld [vmem:[%s405 + $0x54] sm:$0xf]
        %v421 = vld [vmem:[%s405 + $0x58] sm:$0xf]
        %v422 = vld [vmem:[%s405 + $0x8] sm:$0x1]
        %v423 = vld [vmem:[%s405 + $0x14] sm:$0x1]
        %v424 = vld [vmem:[%s405 + $0x20] sm:$0x1]
        %v425 = vld [vmem:[%s405 + $0x2c] sm:$0x1]
        %v426 = vld [vmem:[%s405 + $0x38] sm:$0x1]
        %v427 = vld [vmem:[%s405 + $0x44] sm:$0x1]
        %v428 = vld [vmem:[%s405 + $0x50] sm:$0x1]
        %v429 = vld [vmem:[%s405 + $0x5c] sm:$0x1]
        %vm430 = vsmask.f32 3328
        %vm431 = vsmask.f32 7440
        %vm432 = vmor %vm430, %vm431
        %v434 = vshrl.u32 %v406, 16
        %v436 = vrot.slane %v434, 4
        %v437 = vshll.u32 %v406, 16
        %v439 = vrot.slane %v437, 5
        %v440 = vor.u32 %v436, %v439
        %v441 = vrot.slane %v440, 4
        %v443 = vshll.u32 %v407, 16
        %v445 = vrot.slane %v443, 5
        %v446 = vsel %vm432, %v441, %v445
        %v447 = vshrl.u32 %v407, 16
        %v449 = vrot.slane %v447, 4
        %v450 = vor.u32 %v449, %v445
        %v451 = vrot.slane %v450, 4
        %v453 = vshll.u32 %v422, 16
        %v455 = vrot.slane %v453, 5
        %v456 = vsel %vm432, %v451, %v455
        %v458 = vshrl.u32 %v408, 16
        %v460 = vrot.slane %v458, 4
        %v461 = vshll.u32 %v408, 16
        %v463 = vrot.slane %v461, 5
        %v464 = vor.u32 %v460, %v463
        %v465 = vrot.slane %v464, 4
        %v467 = vshll.u32 %v409, 16
        %v469 = vrot.slane %v467, 5
        %v470 = vsel %vm432, %v465, %v469
        %v471 = vshrl.u32 %v409, 16
        %v473 = vrot.slane %v471, 4
        %v474 = vor.u32 %v473, %v469
        %v475 = vrot.slane %v474, 4
        %v477 = vshll.u32 %v423, 16
        %v479 = vrot.slane %v477, 5
        %v480 = vsel %vm432, %v475, %v479
        %v482 = vshrl.u32 %v410, 16
        %v484 = vrot.slane %v482, 4
        %v485 = vshll.u32 %v410, 16
        %v487 = vrot.slane %v485, 5
        %v488 = vor.u32 %v484, %v487
        %v489 = vrot.slane %v488, 4
        %v491 = vshll.u32 %v411, 16
        %v493 = vrot.slane %v491, 5
        %v494 = vsel %vm432, %v489, %v493
        %v495 = vshrl.u32 %v411, 16
        %v497 = vrot.slane %v495, 4
        %v498 = vor.u32 %v497, %v493
        %v499 = vrot.slane %v498, 4
        %v501 = vshll.u32 %v424, 16
        %v503 = vrot.slane %v501, 5
        %v504 = vsel %vm432, %v499, %v503
        %v506 = vshrl.u32 %v412, 16
        %v508 = vrot.slane %v506, 4
        %v509 = vshll.u32 %v412, 16
        %v511 = vrot.slane %v509, 5
        %v512 = vor.u32 %v508, %v511
        %v513 = vrot.slane %v512, 4
        %v515 = vshll.u32 %v413, 16
        %v517 = vrot.slane %v515, 5
        %v518 = vsel %vm432, %v513, %v517
        %v519 = vshrl.u32 %v413, 16
        %v521 = vrot.slane %v519, 4
        %v522 = vor.u32 %v521, %v517
        %v523 = vrot.slane %v522, 4
        %v525 = vshll.u32 %v425, 16
        %v527 = vrot.slane %v525, 5
        %v528 = vsel %vm432, %v523, %v527
        %v530 = vshrl.u32 %v414, 16
        %v532 = vrot.slane %v530, 4
        %v533 = vshll.u32 %v414, 16
        %v535 = vrot.slane %v533, 5
        %v536 = vor.u32 %v532, %v535
        %v537 = vrot.slane %v536, 4
        %v539 = vshll.u32 %v415, 16
        %v541 = vrot.slane %v539, 5
        %v542 = vsel %vm432, %v537, %v541
        %v543 = vshrl.u32 %v415, 16
        %v545 = vrot.slane %v543, 4
        %v546 = vor.u32 %v545, %v541
        %v547 = vrot.slane %v546, 4
        %v549 = vshll.u32 %v426, 16
        %v551 = vrot.slane %v549, 5
        %v552 = vsel %vm432, %v547, %v551
        %v554 = vshrl.u32 %v416, 16
        %v556 = vrot.slane %v554, 4
        %v557 = vshll.u32 %v416, 16
        %v559 = vrot.slane %v557, 5
        %v560 = vor.u32 %v556, %v559
        %v561 = vrot.slane %v560, 4
        %v563 = vshll.u32 %v417, 16
        %v565 = vrot.slane %v563, 5
        %v566 = vsel %vm432, %v561, %v565
        %v567 = vshrl.u32 %v417, 16
        %v569 = vrot.slane %v567, 4
        %v570 = vor.u32 %v569, %v565
        %v571 = vrot.slane %v570, 4
        %v573 = vshll.u32 %v427, 16
        %v575 = vrot.slane %v573, 5
        %v576 = vsel %vm432, %v571, %v575
        %v578 = vshrl.u32 %v418, 16
        %v580 = vrot.slane %v578, 4
        %v581 = vshll.u32 %v418, 16
        %v583 = vrot.slane %v581, 5
        %v584 = vor.u32 %v580, %v583
        %v585 = vrot.slane %v584, 4
        %v587 = vshll.u32 %v419, 16
        %v589 = vrot.slane %v587, 5
        %v590 = vsel %vm432, %v585, %v589
        %v591 = vshrl.u32 %v419, 16
        %v593 = vrot.slane %v591, 4
        %v594 = vor.u32 %v593, %v589
        %v595 = vrot.slane %v594, 4
        %v597 = vshll.u32 %v428, 16
        %v599 = vrot.slane %v597, 5
        %v600 = vsel %vm432, %v595, %v599
        %v602 = vshrl.u32 %v420, 16
        %v604 = vrot.slane %v602, 4
        %v605 = vshll.u32 %v420, 16
        %v607 = vrot.slane %v605, 5
        %v608 = vor.u32 %v604, %v607
        %v609 = vrot.slane %v608, 4
        %v611 = vshll.u32 %v421, 16
        %v613 = vrot.slane %v611, 5
        %v614 = vsel %vm432, %v609, %v613
        %v615 = vshrl.u32 %v421, 16
        %v617 = vrot.slane %v615, 4
        %v618 = vor.u32 %v617, %v613
        %v619 = vrot.slane %v618, 4
        %v621 = vshll.u32 %v429, 16
        %v623 = vrot.slane %v621, 5
        %v624 = vsel %vm432, %v619, %v623
        %v625 = vld [vmem:[%s405] sm:$0xe]
        %v626 = vld [vmem:[%s405 + $0xc] sm:$0xe]
        %v627 = vld [vmem:[%s405 + $0x18] sm:$0xe]
        %v628 = vld [vmem:[%s405 + $0x24] sm:$0xe]
        %v629 = vld [vmem:[%s405 + $0x30] sm:$0xe]
        %v630 = vld [vmem:[%s405 + $0x3c] sm:$0xe]
        %v631 = vld [vmem:[%s405 + $0x48] sm:$0xe]
        %v632 = vld [vmem:[%s405 + $0x54] sm:$0xe]
        %vm657 = vcmask 1042432
        %vm658 = vcmask 1046532
        %vm659 = vmor %vm657, %vm658
        %v660 = vrot.slane %v625, 5
        %v661 = vrot.slane %v660, 4
        %v662 = vrot.slane %v407, 5
        %v663 = vsel %vm659, %v661, %v662
        %v664 = vrot.slane %v662, 4
        %v665 = vrot.slane %v422, 5
        %v666 = vsel %vm659, %v664, %v665
        %v667 = vrot.slane %v626, 5
        %v668 = vrot.slane %v667, 4
        %v669 = vrot.slane %v409, 5
        %v670 = vsel %vm659, %v668, %v669
        %v671 = vrot.slane %v669, 4
        %v672 = vrot.slane %v423, 5
        %v673 = vsel %vm659, %v671, %v672
        %v674 = vrot.slane %v627, 5
        %v675 = vrot.slane %v674, 4
        %v676 = vrot.slane %v411, 5
        %v677 = vsel %vm659, %v675, %v676
        %v678 = vrot.slane %v676, 4
        %v679 = vrot.slane %v424, 5
        %v680 = vsel %vm659, %v678, %v679
        %v681 = vrot.slane %v628, 5
        %v682 = vrot.slane %v681, 4
        %v683 = vrot.slane %v413, 5
        %v684 = vsel %vm659, %v682, %v683
        %v685 = vrot.slane %v683, 4
        %v686 = vrot.slane %v425, 5
        %v687 = vsel %vm659, %v685, %v686
        %v688 = vrot.slane %v629, 5
        %v689 = vrot.slane %v688, 4
        %v690 = vrot.slane %v415, 5
        %v691 = vsel %vm659, %v689, %v690
        %v692 = vrot.slane %v690, 4
        %v693 = vrot.slane %v426, 5
        %v694 = vsel %vm659, %v692, %v693
        %v695 = vrot.slane %v630, 5
        %v696 = vrot.slane %v695, 4
        %v697 = vrot.slane %v417, 5
        %v698 = vsel %vm659, %v696, %v697
        %v699 = vrot.slane %v697, 4
        %v700 = vrot.slane %v427, 5
        %v701 = vsel %vm659, %v699, %v700
        %v702 = vrot.slane %v631, 5
        %v703 = vrot.slane %v702, 4
        %v704 = vrot.slane %v419, 5
        %v705 = vsel %vm659, %v703, %v704
        %v706 = vrot.slane %v704, 4
        %v707 = vrot.slane %v428, 5
        %v708 = vsel %vm659, %v706, %v707
        %v709 = vrot.slane %v632, 5
        %v710 = vrot.slane %v709, 4
        %v711 = vrot.slane %v421, 5
        %v712 = vsel %vm659, %v710, %v711
        %v713 = vrot.slane %v711, 4
        %v714 = vrot.slane %v429, 5
        %v715 = vsel %vm659, %v713, %v714
        %s716 = sadd.s32 %s402, 1
        %s717 = smul.u32 %s716, 3
        %s718 = smul.addr %s717, 4
        %s719 = scalar_lea.vmem %s385, %s718
        %v720 = vld [vmem:[%s719] sm:$0xf]
        %v721 = vld [vmem:[%s719 + $0x4] sm:$0xf]
        %v722 = vld [vmem:[%s719 + $0xc] sm:$0xf]
        %v723 = vld [vmem:[%s719 + $0x10] sm:$0xf]
        %v724 = vld [vmem:[%s719 + $0x18] sm:$0xf]
        %v725 = vld [vmem:[%s719 + $0x1c] sm:$0xf]
        %v726 = vld [vmem:[%s719 + $0x24] sm:$0xf]
        %v727 = vld [vmem:[%s719 + $0x28] sm:$0xf]
        %v728 = vld [vmem:[%s719 + $0x30] sm:$0xf]
        %v729 = vld [vmem:[%s719 + $0x34] sm:$0xf]
        %v730 = vld [vmem:[%s719 + $0x3c] sm:$0xf]
        %v731 = vld [vmem:[%s719 + $0x40] sm:$0xf]
        %v732 = vld [vmem:[%s719 + $0x48] sm:$0xf]
        %v733 = vld [vmem:[%s719 + $0x4c] sm:$0xf]
        %v734 = vld [vmem:[%s719 + $0x54] sm:$0xf]
        %v735 = vld [vmem:[%s719 + $0x58] sm:$0xf]
        %v736 = vld [vmem:[%s719 + $0x8] sm:$0x1]
        %v737 = vld [vmem:[%s719 + $0x14] sm:$0x1]
        %v738 = vld [vmem:[%s719 + $0x20] sm:$0x1]
        %v739 = vld [vmem:[%s719 + $0x2c] sm:$0x1]
        %v740 = vld [vmem:[%s719 + $0x38] sm:$0x1]
        %v741 = vld [vmem:[%s719 + $0x44] sm:$0x1]
        %v742 = vld [vmem:[%s719 + $0x50] sm:$0x1]
        %v743 = vld [vmem:[%s719 + $0x5c] sm:$0x1]
        %v745 = vshrl.u32 %v720, 16
        %v747 = vrot.slane %v745, 4
        %v748 = vshll.u32 %v720, 16
        %v750 = vrot.slane %v748, 5
        %v751 = vor.u32 %v747, %v750
        %v752 = vrot.slane %v751, 4
        %v754 = vshll.u32 %v721, 16
        %v756 = vrot.slane %v754, 5
        %v757 = vsel %vm432, %v752, %v756
        %v758 = vshrl.u32 %v721, 16
        %v760 = vrot.slane %v758, 4
        %v761 = vor.u32 %v760, %v756
        %v762 = vrot.slane %v761, 4
        %v764 = vshll.u32 %v736, 16
        %v766 = vrot.slane %v764, 5
        %v767 = vsel %vm432, %v762, %v766
        %v769 = vshrl.u32 %v722, 16
        %v771 = vrot.slane %v769, 4
        %v772 = vshll.u32 %v722, 16
        %v774 = vrot.slane %v772, 5
        %v775 = vor.u32 %v771, %v774
        %v776 = vrot.slane %v775, 4
        %v778 = vshll.u32 %v723, 16
        %v780 = vrot.slane %v778, 5
        %v781 = vsel %vm432, %v776, %v780
        %v782 = vshrl.u32 %v723, 16
        %v784 = vrot.slane %v782, 4
        %v785 = vor.u32 %v784, %v780
        %v786 = vrot.slane %v785, 4
        %v788 = vshll.u32 %v737, 16
        %v790 = vrot.slane %v788, 5
        %v791 = vsel %vm432, %v786, %v790
        %v793 = vshrl.u32 %v724, 16
        %v795 = vrot.slane %v793, 4
        %v796 = vshll.u32 %v724, 16
        %v798 = vrot.slane %v796, 5
        %v799 = vor.u32 %v795, %v798
        %v800 = vrot.slane %v799, 4
        %v802 = vshll.u32 %v725, 16
        %v804 = vrot.slane %v802, 5
        %v805 = vsel %vm432, %v800, %v804
        %v806 = vshrl.u32 %v725, 16
        %v808 = vrot.slane %v806, 4
        %v809 = vor.u32 %v808, %v804
        %v810 = vrot.slane %v809, 4
        %v812 = vshll.u32 %v738, 16
        %v814 = vrot.slane %v812, 5
        %v815 = vsel %vm432, %v810, %v814
        %v817 = vshrl.u32 %v726, 16
        %v819 = vrot.slane %v817, 4
        %v820 = vshll.u32 %v726, 16
        %v822 = vrot.slane %v820, 5
        %v823 = vor.u32 %v819, %v822
        %v824 = vrot.slane %v823, 4
        %v826 = vshll.u32 %v727, 16
        %v828 = vrot.slane %v826, 5
        %v829 = vsel %vm432, %v824, %v828
        %v830 = vshrl.u32 %v727, 16
        %v832 = vrot.slane %v830, 4
        %v833 = vor.u32 %v832, %v828
        %v834 = vrot.slane %v833, 4
        %v836 = vshll.u32 %v739, 16
        %v838 = vrot.slane %v836, 5
        %v839 = vsel %vm432, %v834, %v838
        %v841 = vshrl.u32 %v728, 16
        %v843 = vrot.slane %v841, 4
        %v844 = vshll.u32 %v728, 16
        %v846 = vrot.slane %v844, 5
        %v847 = vor.u32 %v843, %v846
        %v848 = vrot.slane %v847, 4
        %v850 = vshll.u32 %v729, 16
        %v852 = vrot.slane %v850, 5
        %v853 = vsel %vm432, %v848, %v852
        %v854 = vshrl.u32 %v729, 16
        %v856 = vrot.slane %v854, 4
        %v857 = vor.u32 %v856, %v852
        %v858 = vrot.slane %v857, 4
        %v860 = vshll.u32 %v740, 16
        %v862 = vrot.slane %v860, 5
        %v863 = vsel %vm432, %v858, %v862
        %v865 = vshrl.u32 %v730, 16
        %v867 = vrot.slane %v865, 4
        %v868 = vshll.u32 %v730, 16
        %v870 = vrot.slane %v868, 5
        %v871 = vor.u32 %v867, %v870
        %v872 = vrot.slane %v871, 4
        %v874 = vshll.u32 %v731, 16
        %v876 = vrot.slane %v874, 5
        %v877 = vsel %vm432, %v872, %v876
        %v878 = vshrl.u32 %v731, 16
        %v880 = vrot.slane %v878, 4
        %v881 = vor.u32 %v880, %v876
        %v882 = vrot.slane %v881, 4
        %v884 = vshll.u32 %v741, 16
        %v886 = vrot.slane %v884, 5
        %v887 = vsel %vm432, %v882, %v886
        %v889 = vshrl.u32 %v732, 16
        %v891 = vrot.slane %v889, 4
        %v892 = vshll.u32 %v732, 16
        %v894 = vrot.slane %v892, 5
        %v895 = vor.u32 %v891, %v894
        %v896 = vrot.slane %v895, 4
        %v898 = vshll.u32 %v733, 16
        %v900 = vrot.slane %v898, 5
        %v901 = vsel %vm432, %v896, %v900
        %v902 = vshrl.u32 %v733, 16
        %v904 = vrot.slane %v902, 4
        %v905 = vor.u32 %v904, %v900
        %v906 = vrot.slane %v905, 4
        %v908 = vshll.u32 %v742, 16
        %v910 = vrot.slane %v908, 5
        %v911 = vsel %vm432, %v906, %v910
        %v913 = vshrl.u32 %v734, 16
        %v915 = vrot.slane %v913, 4
        %v916 = vshll.u32 %v734, 16
        %v918 = vrot.slane %v916, 5
        %v919 = vor.u32 %v915, %v918
        %v920 = vrot.slane %v919, 4
        %v922 = vshll.u32 %v735, 16
        %v924 = vrot.slane %v922, 5
        %v925 = vsel %vm432, %v920, %v924
        %v926 = vshrl.u32 %v735, 16
        %v928 = vrot.slane %v926, 4
        %v929 = vor.u32 %v928, %v924
        %v930 = vrot.slane %v929, 4
        %v932 = vshll.u32 %v743, 16
        %v934 = vrot.slane %v932, 5
        %v935 = vsel %vm432, %v930, %v934
        %v936 = vld [vmem:[%s719] sm:$0xe]
        %v937 = vld [vmem:[%s719 + $0xc] sm:$0xe]
        %v938 = vld [vmem:[%s719 + $0x18] sm:$0xe]
        %v939 = vld [vmem:[%s719 + $0x24] sm:$0xe]
        %v940 = vld [vmem:[%s719 + $0x30] sm:$0xe]
        %v941 = vld [vmem:[%s719 + $0x3c] sm:$0xe]
        %v942 = vld [vmem:[%s719 + $0x48] sm:$0xe]
        %v943 = vld [vmem:[%s719 + $0x54] sm:$0xe]
        %v968 = vrot.slane %v936, 5
        %v969 = vrot.slane %v968, 4
        %v970 = vrot.slane %v721, 5
        %v971 = vsel %vm659, %v969, %v970
        %v972 = vrot.slane %v970, 4
        %v973 = vrot.slane %v736, 5
        %v974 = vsel %vm659, %v972, %v973
        %v975 = vrot.slane %v937, 5
        %v976 = vrot.slane %v975, 4
        %v977 = vrot.slane %v723, 5
        %v978 = vsel %vm659, %v976, %v977
        %v979 = vrot.slane %v977, 4
        %v980 = vrot.slane %v737, 5
        %v981 = vsel %vm659, %v979, %v980
        %v982 = vrot.slane %v938, 5
        %v983 = vrot.slane %v982, 4
        %v984 = vrot.slane %v725, 5
        %v985 = vsel %vm659, %v983, %v984
        %v986 = vrot.slane %v984, 4
        %v987 = vrot.slane %v738, 5
        %v988 = vsel %vm659, %v986, %v987
        %v989 = vrot.slane %v939, 5
        %v990 = vrot.slane %v989, 4
        %v991 = vrot.slane %v727, 5
        %v992 = vsel %vm659, %v990, %v991
        %v993 = vrot.slane %v991, 4
        %v994 = vrot.slane %v739, 5
        %v995 = vsel %vm659, %v993, %v994
        %v996 = vrot.slane %v940, 5
        %v997 = vrot.slane %v996, 4
        %v998 = vrot.slane %v729, 5
        %v999 = vsel %vm659, %v997, %v998
        %v1000 = vrot.slane %v998, 4
        %v1001 = vrot.slane %v740, 5
        %v1002 = vsel %vm659, %v1000, %v1001
        %v1003 = vrot.slane %v941, 5
        %v1004 = vrot.slane %v1003, 4
        %v1005 = vrot.slane %v731, 5
        %v1006 = vsel %vm659, %v1004, %v1005
        %v1007 = vrot.slane %v1005, 4
        %v1008 = vrot.slane %v741, 5
        %v1009 = vsel %vm659, %v1007, %v1008
        %v1010 = vrot.slane %v942, 5
        %v1011 = vrot.slane %v1010, 4
        %v1012 = vrot.slane %v733, 5
        %v1013 = vsel %vm659, %v1011, %v1012
        %v1014 = vrot.slane %v1012, 4
        %v1015 = vrot.slane %v742, 5
        %v1016 = vsel %vm659, %v1014, %v1015
        %v1017 = vrot.slane %v943, 5
        %v1018 = vrot.slane %v1017, 4
        %v1019 = vrot.slane %v735, 5
        %v1020 = vsel %vm659, %v1018, %v1019
        %v1021 = vrot.slane %v1019, 4
        %v1022 = vrot.slane %v743, 5
        %v1023 = vsel %vm659, %v1021, %v1022
        %s1024 = sadd.s32 %s402, 2
        %s1025 = smul.u32 %s1024, 3
        %s1026 = smul.addr %s1025, 4
        %s1027 = scalar_lea.vmem %s385, %s1026
        %v1028 = vld [vmem:[%s1027] sm:$0xf]
        %v1029 = vld [vmem:[%s1027 + $0x4] sm:$0xf]
        %v1030 = vld [vmem:[%s1027 + $0xc] sm:$0xf]
        %v1031 = vld [vmem:[%s1027 + $0x10] sm:$0xf]
        %v1032 = vld [vmem:[%s1027 + $0x18] sm:$0xf]
        %v1033 = vld [vmem:[%s1027 + $0x1c] sm:$0xf]
        %v1034 = vld [vmem:[%s1027 + $0x24] sm:$0xf]
        %v1035 = vld [vmem:[%s1027 + $0x28] sm:$0xf]
        %v1036 = vld [vmem:[%s1027 + $0x30] sm:$0xf]
        %v1037 = vld [vmem:[%s1027 + $0x34] sm:$0xf]
        %v1038 = vld [vmem:[%s1027 + $0x3c] sm:$0xf]
        %v1039 = vld [vmem:[%s1027 + $0x40] sm:$0xf]
        %v1040 = vld [vmem:[%s1027 + $0x48] sm:$0xf]
        %v1041 = vld [vmem:[%s1027 + $0x4c] sm:$0xf]
        %v1042 = vld [vmem:[%s1027 + $0x54] sm:$0xf]
        %v1043 = vld [vmem:[%s1027 + $0x58] sm:$0xf]
        %v1044 = vld [vmem:[%s1027 + $0x8] sm:$0x1]
        %v1045 = vld [vmem:[%s1027 + $0x14] sm:$0x1]
        %v1046 = vld [vmem:[%s1027 + $0x20] sm:$0x1]
        %v1047 = vld [vmem:[%s1027 + $0x2c] sm:$0x1]
        %v1048 = vld [vmem:[%s1027 + $0x38] sm:$0x1]
        %v1049 = vld [vmem:[%s1027 + $0x44] sm:$0x1]
        %v1050 = vld [vmem:[%s1027 + $0x50] sm:$0x1]
        %v1051 = vld [vmem:[%s1027 + $0x5c] sm:$0x1]
        %v1053 = vshrl.u32 %v1028, 16
        %v1055 = vrot.slane %v1053, 4
        %v1056 = vshll.u32 %v1028, 16
        %v1058 = vrot.slane %v1056, 5
        %v1059 = vor.u32 %v1055, %v1058
        %v1060 = vrot.slane %v1059, 4
        %v1062 = vshll.u32 %v1029, 16
        %v1064 = vrot.slane %v1062, 5
        %v1065 = vsel %vm432, %v1060, %v1064
        %v1066 = vshrl.u32 %v1029, 16
        %v1068 = vrot.slane %v1066, 4
        %v1069 = vor.u32 %v1068, %v1064
        %v1070 = vrot.slane %v1069, 4
        %v1072 = vshll.u32 %v1044, 16
        %v1074 = vrot.slane %v1072, 5
        %v1075 = vsel %vm432, %v1070, %v1074
        %v1077 = vshrl.u32 %v1030, 16
        %v1079 = vrot.slane %v1077, 4
        %v1080 = vshll.u32 %v1030, 16
        %v1082 = vrot.slane %v1080, 5
        %v1083 = vor.u32 %v1079, %v1082
        %v1084 = vrot.slane %v1083, 4
        %v1086 = vshll.u32 %v1031, 16
        %v1088 = vrot.slane %v1086, 5
        %v1089 = vsel %vm432, %v1084, %v1088
        %v1090 = vshrl.u32 %v1031, 16
        %v1092 = vrot.slane %v1090, 4
        %v1093 = vor.u32 %v1092, %v1088
        %v1094 = vrot.slane %v1093, 4
        %v1096 = vshll.u32 %v1045, 16
        %v1098 = vrot.slane %v1096, 5
        %v1099 = vsel %vm432, %v1094, %v1098
        %v1101 = vshrl.u32 %v1032, 16
        %v1103 = vrot.slane %v1101, 4
        %v1104 = vshll.u32 %v1032, 16
        %v1106 = vrot.slane %v1104, 5
        %v1107 = vor.u32 %v1103, %v1106
        %v1108 = vrot.slane %v1107, 4
        %v1110 = vshll.u32 %v1033, 16
        %v1112 = vrot.slane %v1110, 5
        %v1113 = vsel %vm432, %v1108, %v1112
        %v1114 = vshrl.u32 %v1033, 16
        %v1116 = vrot.slane %v1114, 4
        %v1117 = vor.u32 %v1116, %v1112
        %v1118 = vrot.slane %v1117, 4
        %v1120 = vshll.u32 %v1046, 16
        %v1122 = vrot.slane %v1120, 5
        %v1123 = vsel %vm432, %v1118, %v1122
        %v1125 = vshrl.u32 %v1034, 16
        %v1127 = vrot.slane %v1125, 4
        %v1128 = vshll.u32 %v1034, 16
        %v1130 = vrot.slane %v1128, 5
        %v1131 = vor.u32 %v1127, %v1130
        %v1132 = vrot.slane %v1131, 4
        %v1134 = vshll.u32 %v1035, 16
        %v1136 = vrot.slane %v1134, 5
        %v1137 = vsel %vm432, %v1132, %v1136
        %v1138 = vshrl.u32 %v1035, 16
        %v1140 = vrot.slane %v1138, 4
        %v1141 = vor.u32 %v1140, %v1136
        %v1142 = vrot.slane %v1141, 4
        %v1144 = vshll.u32 %v1047, 16
        %v1146 = vrot.slane %v1144, 5
        %v1147 = vsel %vm432, %v1142, %v1146
        %v1149 = vshrl.u32 %v1036, 16
        %v1151 = vrot.slane %v1149, 4
        %v1152 = vshll.u32 %v1036, 16
        %v1154 = vrot.slane %v1152, 5
        %v1155 = vor.u32 %v1151, %v1154
        %v1156 = vrot.slane %v1155, 4
        %v1158 = vshll.u32 %v1037, 16
        %v1160 = vrot.slane %v1158, 5
        %v1161 = vsel %vm432, %v1156, %v1160
        %v1162 = vshrl.u32 %v1037, 16
        %v1164 = vrot.slane %v1162, 4
        %v1165 = vor.u32 %v1164, %v1160
        %v1166 = vrot.slane %v1165, 4
        %v1168 = vshll.u32 %v1048, 16
        %v1170 = vrot.slane %v1168, 5
        %v1171 = vsel %vm432, %v1166, %v1170
        %v1173 = vshrl.u32 %v1038, 16
        %v1175 = vrot.slane %v1173, 4
        %v1176 = vshll.u32 %v1038, 16
        %v1178 = vrot.slane %v1176, 5
        %v1179 = vor.u32 %v1175, %v1178
        %v1180 = vrot.slane %v1179, 4
        %v1182 = vshll.u32 %v1039, 16
        %v1184 = vrot.slane %v1182, 5
        %v1185 = vsel %vm432, %v1180, %v1184
        %v1186 = vshrl.u32 %v1039, 16
        %v1188 = vrot.slane %v1186, 4
        %v1189 = vor.u32 %v1188, %v1184
        %v1190 = vrot.slane %v1189, 4
        %v1192 = vshll.u32 %v1049, 16
        %v1194 = vrot.slane %v1192, 5
        %v1195 = vsel %vm432, %v1190, %v1194
        %v1197 = vshrl.u32 %v1040, 16
        %v1199 = vrot.slane %v1197, 4
        %v1200 = vshll.u32 %v1040, 16
        %v1202 = vrot.slane %v1200, 5
        %v1203 = vor.u32 %v1199, %v1202
        %v1204 = vrot.slane %v1203, 4
        %v1206 = vshll.u32 %v1041, 16
        %v1208 = vrot.slane %v1206, 5
        %v1209 = vsel %vm432, %v1204, %v1208
        %v1210 = vshrl.u32 %v1041, 16
        %v1212 = vrot.slane %v1210, 4
        %v1213 = vor.u32 %v1212, %v1208
        %v1214 = vrot.slane %v1213, 4
        %v1216 = vshll.u32 %v1050, 16
        %v1218 = vrot.slane %v1216, 5
        %v1219 = vsel %vm432, %v1214, %v1218
        %v1221 = vshrl.u32 %v1042, 16
        %v1223 = vrot.slane %v1221, 4
        %v1224 = vshll.u32 %v1042, 16
        %v1226 = vrot.slane %v1224, 5
        %v1227 = vor.u32 %v1223, %v1226
        %v1228 = vrot.slane %v1227, 4
        %v1230 = vshll.u32 %v1043, 16
        %v1232 = vrot.slane %v1230, 5
        %v1233 = vsel %vm432, %v1228, %v1232
        %v1234 = vshrl.u32 %v1043, 16
        %v1236 = vrot.slane %v1234, 4
        %v1237 = vor.u32 %v1236, %v1232
        %v1238 = vrot.slane %v1237, 4
        %v1240 = vshll.u32 %v1051, 16
        %v1242 = vrot.slane %v1240, 5
        %v1243 = vsel %vm432, %v1238, %v1242
        %v1244 = vld [vmem:[%s1027] sm:$0xe]
        %v1245 = vld [vmem:[%s1027 + $0xc] sm:$0xe]
        %v1246 = vld [vmem:[%s1027 + $0x18] sm:$0xe]
        %v1247 = vld [vmem:[%s1027 + $0x24] sm:$0xe]
        %v1248 = vld [vmem:[%s1027 + $0x30] sm:$0xe]
        %v1249 = vld [vmem:[%s1027 + $0x3c] sm:$0xe]
        %v1250 = vld [vmem:[%s1027 + $0x48] sm:$0xe]
        %v1251 = vld [vmem:[%s1027 + $0x54] sm:$0xe]
        %v1276 = vrot.slane %v1244, 5
        %v1277 = vrot.slane %v1276, 4
        %v1278 = vrot.slane %v1029, 5
        %v1279 = vsel %vm659, %v1277, %v1278
        %v1280 = vrot.slane %v1278, 4
        %v1281 = vrot.slane %v1044, 5
        %v1282 = vsel %vm659, %v1280, %v1281
        %v1283 = vrot.slane %v1245, 5
        %v1284 = vrot.slane %v1283, 4
        %v1285 = vrot.slane %v1031, 5
        %v1286 = vsel %vm659, %v1284, %v1285
        %v1287 = vrot.slane %v1285, 4
        %v1288 = vrot.slane %v1045, 5
        %v1289 = vsel %vm659, %v1287, %v1288
        %v1290 = vrot.slane %v1246, 5
        %v1291 = vrot.slane %v1290, 4
        %v1292 = vrot.slane %v1033, 5
        %v1293 = vsel %vm659, %v1291, %v1292
        %v1294 = vrot.slane %v1292, 4
        %v1295 = vrot.slane %v1046, 5
        %v1296 = vsel %vm659, %v1294, %v1295
        %v1297 = vrot.slane %v1247, 5
        %v1298 = vrot.slane %v1297, 4
        %v1299 = vrot.slane %v1035, 5
        %v1300 = vsel %vm659, %v1298, %v1299
        %v1301 = vrot.slane %v1299, 4
        %v1302 = vrot.slane %v1047, 5
        %v1303 = vsel %vm659, %v1301, %v1302
        %v1304 = vrot.slane %v1248, 5
        %v1305 = vrot.slane %v1304, 4
        %v1306 = vrot.slane %v1037, 5
        %v1307 = vsel %vm659, %v1305, %v1306
        %v1308 = vrot.slane %v1306, 4
        %v1309 = vrot.slane %v1048, 5
        %v1310 = vsel %vm659, %v1308, %v1309
        %v1311 = vrot.slane %v1249, 5
        %v1312 = vrot.slane %v1311, 4
        %v1313 = vrot.slane %v1039, 5
        %v1314 = vsel %vm659, %v1312, %v1313
        %v1315 = vrot.slane %v1313, 4
        %v1316 = vrot.slane %v1049, 5
        %v1317 = vsel %vm659, %v1315, %v1316
        %v1318 = vrot.slane %v1250, 5
        %v1319 = vrot.slane %v1318, 4
        %v1320 = vrot.slane %v1041, 5
        %v1321 = vsel %vm659, %v1319, %v1320
        %v1322 = vrot.slane %v1320, 4
        %v1323 = vrot.slane %v1050, 5
        %v1324 = vsel %vm659, %v1322, %v1323
        %v1325 = vrot.slane %v1251, 5
        %v1326 = vrot.slane %v1325, 4
        %v1327 = vrot.slane %v1043, 5
        %v1328 = vsel %vm659, %v1326, %v1327
        %v1329 = vrot.slane %v1327, 4
        %v1330 = vrot.slane %v1051, 5
        %v1331 = vsel %vm659, %v1329, %v1330
        %v1332 = vld [vmem:[%s336] sm:$0xf]
        %s1333 = scalar_lea.vmem %s336, 4 [#allocation3]
        %v1334 = vld [vmem:[%s1333] sm:$0xf]
        %v1335 = vunpack.c.l.b16 %v446
        %v1336 = vunpack.c.l.b16 %v456
        %v1337 = vunpack.c.l.b16 %v470
        %v1338 = vunpack.c.l.b16 %v480
        %v1339 = vunpack.c.l.b16 %v494
        %v1340 = vunpack.c.l.b16 %v504
        %v1341 = vunpack.c.l.b16 %v518
        %v1342 = vunpack.c.l.b16 %v528
        %v1343 = vunpack.c.l.b16 %v542
        %v1344 = vunpack.c.l.b16 %v552
        %v1345 = vunpack.c.l.b16 %v566
        %v1346 = vunpack.c.l.b16 %v576
        %v1347 = vunpack.c.l.b16 %v590
        %v1348 = vunpack.c.l.b16 %v600
        %v1349 = vunpack.c.l.b16 %v614
        %v1350 = vunpack.c.l.b16 %v624
        %v1351 = vpack.c.b16 %v1336, %v1335
        %v1352 = vpack.c.b16 %v1338, %v1337
        %v1353 = vpack.c.b16 %v1340, %v1339
        %v1354 = vpack.c.b16 %v1342, %v1341
        %v1355 = vpack.c.b16 %v1344, %v1343
        %v1356 = vpack.c.b16 %v1346, %v1345
        %v1357 = vpack.c.b16 %v1348, %v1347
        %v1358 = vpack.c.b16 %v1350, %v1349
        %vm1359 = vcmask 31744
        %v1361 = vsel %vm1359, %v1334, 0
        %v1364 = vsel %vm1359, %v1351, 0
        %v1367 = vsel %vm1359, %v1352, 0
        %v1370 = vsel %vm1359, %v1353, 0
        %v1373 = vsel %vm1359, %v1354, 0
        %v1376 = vsel %vm1359, %v1355, 0
        %v1379 = vsel %vm1359, %v1356, 0
        %v1382 = vsel %vm1359, %v1357, 0
        %v1385 = vsel %vm1359, %v1358, 0
        %1387 = vmatprep.subr.bf16.mxu0 0
        %1388 = vmatpush1.bf16.xpose.msra.mxu0 %v1385
        %1389 = vmatprep.subr.bf16.mxu0 0
        %1390 = vmatpush1.bf16.xpose.msra.mxu0 %v1382
        %1391 = vmatprep.subr.bf16.mxu0 0
        %1392 = vmatpush1.bf16.xpose.msra.mxu0 %v1379
        %1393 = vmatprep.subr.bf16.mxu0 0
        %1394 = vmatpush1.bf16.xpose.msra.mxu0 %v1376
        %1395 = vmatprep.subr.bf16.mxu0 0
        %1396 = vmatpush1.bf16.xpose.msra.mxu0 %v1373
        %1397 = vmatprep.subr.bf16.mxu0 0
        %1398 = vmatpush1.bf16.xpose.msra.mxu0 %v1370
        %1399 = vmatprep.subr.bf16.mxu0 0
        %1400 = vmatpush1.bf16.xpose.msra.mxu0 %v1367
        %1401 = vmatprep.subr.bf16.mxu0 0
        %1402 = vmatpush1.bf16.xpose.msra.mxu0 %v1364
        %1403 = vmatprep.subr.bf16.mxu0 0
        %1404 = vmatpush2.bf16.xpose.msra.mxu0 0
        %1405 = vmatprep.subr.bf16.mxu0 0
        %1406 = vmatpush2.bf16.xpose.msra.mxu0 0
        %1407 = vmatprep.subr.bf16.mxu0 0
        %1408 = vmatpush2.bf16.xpose.msra.mxu0 0
        %1409 = vmatprep.subr.bf16.mxu0 0
        %1410 = vmatpush2.bf16.xpose.msra.mxu0 0
        %1411 = vmatprep.subr.bf16.mxu0 0
        %1412 = vmatpush2.bf16.xpose.msra.mxu0 0
        %1413 = vmatprep.subr.bf16.mxu0 0
        %1414 = vmatpush2.bf16.xpose.msra.mxu0 0
        %1415 = vmatprep.subr.bf16.mxu0 0
        %1416 = vmatpush2.bf16.xpose.msra.mxu0 0
        %1417 = vmatprep.subr.bf16.mxu0 0
        %1418 = vmatpush2.bf16.xpose.msra.mxu0 0
        %1419 = vmatprep.mubr.bf16.mxu0 0
        %1420 = vmatmul.mubr.bf16.gmra.mxu0 %v1361
        %v1421 = vpop.f32.mrf.mxu0
        %v1422 = vadd.f32 0.0, %v1421
        %v1423 = vpop.f32.mrf.mxu0
        %v1424 = vpop.f32.mrf.mxu0
        %v1425 = vpop.f32.mrf.mxu0
        %1426 = vdwg.mxu0
        %v1435 = vunpack.c.l.b16 %v406
        %v1436 = vunpack.c.l.b16 %v407
        %v1437 = vunpack.c.l.b16 %v408
        %v1438 = vunpack.c.l.b16 %v409
        %v1439 = vunpack.c.l.b16 %v410
        %v1440 = vunpack.c.l.b16 %v411
        %v1441 = vunpack.c.l.b16 %v412
        %v1442 = vunpack.c.l.b16 %v413
        %v1443 = vunpack.c.l.b16 %v414
        %v1444 = vunpack.c.l.b16 %v415
        %v1445 = vunpack.c.l.b16 %v416
        %v1446 = vunpack.c.l.b16 %v417
        %v1447 = vunpack.c.l.b16 %v418
        %v1448 = vunpack.c.l.b16 %v419
        %v1449 = vunpack.c.l.b16 %v420
        %v1450 = vunpack.c.l.b16 %v421
        %v1451 = vpack.c.b16 %v1436, %v1435
        %v1452 = vpack.c.b16 %v1438, %v1437
        %v1453 = vpack.c.b16 %v1440, %v1439
        %v1454 = vpack.c.b16 %v1442, %v1441
        %v1455 = vpack.c.b16 %v1444, %v1443
        %v1456 = vpack.c.b16 %v1446, %v1445
        %v1457 = vpack.c.b16 %v1448, %v1447
        %v1458 = vpack.c.b16 %v1450, %v1449
        %v1460 = vsel %vm1359, %v1332, 0
        %v1463 = vsel %vm1359, %v1451, 0
        %v1466 = vsel %vm1359, %v1452, 0
        %v1469 = vsel %vm1359, %v1453, 0
        %v1472 = vsel %vm1359, %v1454, 0
        %v1475 = vsel %vm1359, %v1455, 0
        %v1478 = vsel %vm1359, %v1456, 0
        %v1481 = vsel %vm1359, %v1457, 0
        %v1484 = vsel %vm1359, %v1458, 0
        %1486 = vmatprep.subr.bf16.mxu0 0
        %1487 = vmatpush1.bf16.xpose.msra.mxu0 %v1484
        %1488 = vmatprep.subr.bf16.mxu0 0
        %1489 = vmatpush1.bf16.xpose.msra.mxu0 %v1481
        %1490 = vmatprep.subr.bf16.mxu0 0
        %1491 = vmatpush1.bf16.xpose.msra.mxu0 %v1478
        %1492 = vmatprep.subr.bf16.mxu0 0
        %1493 = vmatpush1.bf16.xpose.msra.mxu0 %v1475
        %1494 = vmatprep.subr.bf16.mxu0 0
        %1495 = vmatpush1.bf16.xpose.msra.mxu0 %v1472
        %1496 = vmatprep.subr.bf16.mxu0 0
        %1497 = vmatpush1.bf16.xpose.msra.mxu0 %v1469
        %1498 = vmatprep.subr.bf16.mxu0 0
        %1499 = vmatpush1.bf16.xpose.msra.mxu0 %v1466
        %1500 = vmatprep.subr.bf16.mxu0 0
        %1501 = vmatpush1.bf16.xpose.msra.mxu0 %v1463
        %1502 = vmatprep.subr.bf16.mxu0 0
        %1503 = vmatpush2.bf16.xpose.msra.mxu0 0
        %1504 = vmatprep.subr.bf16.mxu0 0
        %1505 = vmatpush2.bf16.xpose.msra.mxu0 0
        %1506 = vmatprep.subr.bf16.mxu0 0
        %1507 = vmatpush2.bf16.xpose.msra.mxu0 0
        %1508 = vmatprep.subr.bf16.mxu0 0
        %1509 = vmatpush2.bf16.xpose.msra.mxu0 0
        %1510 = vmatprep.subr.bf16.mxu0 0
        %1511 = vmatpush2.bf16.xpose.msra.mxu0 0
        %1512 = vmatprep.subr.bf16.mxu0 0
        %1513 = vmatpush2.bf16.xpose.msra.mxu0 0
        %1514 = vmatprep.subr.bf16.mxu0 0
        %1515 = vmatpush2.bf16.xpose.msra.mxu0 0
        %1516 = vmatprep.subr.bf16.mxu0 0
        %1517 = vmatpush2.bf16.xpose.msra.mxu0 0
        %1518 = vmatprep.mubr.bf16.mxu0 0
        %1519 = vmatmul.mubr.bf16.gmra.mxu0 %v1460
        %v1520 = vpop.f32.mrf.mxu0
        %v1521 = vadd.f32 %v1422, %v1520
        %v1522 = vpop.f32.mrf.mxu0
        %v1523 = vpop.f32.mrf.mxu0
        %v1524 = vpop.f32.mrf.mxu0
        %1525 = vdwg.mxu0
        %s1526 = scalar_lea.vmem %s336, 8 [#allocation3]
        %v1527 = vld [vmem:[%s1526] sm:$0xf]
        %v1528 = vunpack.c.l.b16 %v663
        %v1529 = vunpack.c.l.b16 %v666
        %v1530 = vunpack.c.l.b16 %v670
        %v1531 = vunpack.c.l.b16 %v673
        %v1532 = vunpack.c.l.b16 %v677
        %v1533 = vunpack.c.l.b16 %v680
        %v1534 = vunpack.c.l.b16 %v684
        %v1535 = vunpack.c.l.b16 %v687
        %v1536 = vunpack.c.l.b16 %v691
        %v1537 = vunpack.c.l.b16 %v694
        %v1538 = vunpack.c.l.b16 %v698
        %v1539 = vunpack.c.l.b16 %v701
        %v1540 = vunpack.c.l.b16 %v705
        %v1541 = vunpack.c.l.b16 %v708
        %v1542 = vunpack.c.l.b16 %v712
        %v1543 = vunpack.c.l.b16 %v715
        %v1544 = vpack.c.b16 %v1529, %v1528
        %v1545 = vpack.c.b16 %v1531, %v1530
        %v1546 = vpack.c.b16 %v1533, %v1532
        %v1547 = vpack.c.b16 %v1535, %v1534
        %v1548 = vpack.c.b16 %v1537, %v1536
        %v1549 = vpack.c.b16 %v1539, %v1538
        %v1550 = vpack.c.b16 %v1541, %v1540
        %v1551 = vpack.c.b16 %v1543, %v1542
        %v1553 = vsel %vm1359, %v1527, 0
        %v1556 = vsel %vm1359, %v1544, 0
        %v1559 = vsel %vm1359, %v1545, 0
        %v1562 = vsel %vm1359, %v1546, 0
        %v1565 = vsel %vm1359, %v1547, 0
        %v1568 = vsel %vm1359, %v1548, 0
        %v1571 = vsel %vm1359, %v1549, 0
        %v1574 = vsel %vm1359, %v1550, 0
        %v1577 = vsel %vm1359, %v1551, 0
        %1579 = vmatprep.subr.bf16.mxu0 0
        %1580 = vmatpush1.bf16.xpose.msra.mxu0 %v1577
        %1581 = vmatprep.subr.bf16.mxu0 0
        %1582 = vmatpush1.bf16.xpose.msra.mxu0 %v1574
        %1583 = vmatprep.subr.bf16.mxu0 0
        %1584 = vmatpush1.bf16.xpose.msra.mxu0 %v1571
        %1585 = vmatprep.subr.bf16.mxu0 0
        %1586 = vmatpush1.bf16.xpose.msra.mxu0 %v1568
        %1587 = vmatprep.subr.bf16.mxu0 0
        %1588 = vmatpush1.bf16.xpose.msra.mxu0 %v1565
        %1589 = vmatprep.subr.bf16.mxu0 0
        %1590 = vmatpush1.bf16.xpose.msra.mxu0 %v1562
        %1591 = vmatprep.subr.bf16.mxu0 0
        %1592 = vmatpush1.bf16.xpose.msra.mxu0 %v1559
        %1593 = vmatprep.subr.bf16.mxu0 0
        %1594 = vmatpush1.bf16.xpose.msra.mxu0 %v1556
        %1595 = vmatprep.subr.bf16.mxu0 0
        %1596 = vmatpush2.bf16.xpose.msra.mxu0 0
        %1597 = vmatprep.subr.bf16.mxu0 0
        %1598 = vmatpush2.bf16.xpose.msra.mxu0 0
        %1599 = vmatprep.subr.bf16.mxu0 0
        %1600 = vmatpush2.bf16.xpose.msra.mxu0 0
        %1601 = vmatprep.subr.bf16.mxu0 0
        %1602 = vmatpush2.bf16.xpose.msra.mxu0 0
        %1603 = vmatprep.subr.bf16.mxu0 0
        %1604 = vmatpush2.bf16.xpose.msra.mxu0 0
        %1605 = vmatprep.subr.bf16.mxu0 0
        %1606 = vmatpush2.bf16.xpose.msra.mxu0 0
        %1607 = vmatprep.subr.bf16.mxu0 0
        %1608 = vmatpush2.bf16.xpose.msra.mxu0 0
        %1609 = vmatprep.subr.bf16.mxu0 0
        %1610 = vmatpush2.bf16.xpose.msra.mxu0 0
        %1611 = vmatprep.mubr.bf16.mxu0 0
        %1612 = vmatmul.mubr.bf16.gmra.mxu0 %v1553
        %v1613 = vpop.f32.mrf.mxu0
        %v1614 = vadd.f32 0.0, %v1613
        %v1615 = vpop.f32.mrf.mxu0
        %v1616 = vpop.f32.mrf.mxu0
        %v1617 = vpop.f32.mrf.mxu0
        %1618 = vdwg.mxu0
        %v1619 = vadd.f32 %v1521, %v1614
        %s1620 = scalar_lea.vmem %s336, 12 [#allocation3]
        %v1621 = vld [vmem:[%s1620] sm:$0xf]
        %v1630 = vunpack.c.l.b16 %v720
        %v1631 = vunpack.c.l.b16 %v721
        %v1632 = vunpack.c.l.b16 %v722
        %v1633 = vunpack.c.l.b16 %v723
        %v1634 = vunpack.c.l.b16 %v724
        %v1635 = vunpack.c.l.b16 %v725
        %v1636 = vunpack.c.l.b16 %v726
        %v1637 = vunpack.c.l.b16 %v727
        %v1638 = vunpack.c.l.b16 %v728
        %v1639 = vunpack.c.l.b16 %v729
        %v1640 = vunpack.c.l.b16 %v730
        %v1641 = vunpack.c.l.b16 %v731
        %v1642 = vunpack.c.l.b16 %v732
        %v1643 = vunpack.c.l.b16 %v733
        %v1644 = vunpack.c.l.b16 %v734
        %v1645 = vunpack.c.l.b16 %v735
        %v1646 = vpack.c.b16 %v1631, %v1630
        %v1647 = vpack.c.b16 %v1633, %v1632
        %v1648 = vpack.c.b16 %v1635, %v1634
        %v1649 = vpack.c.b16 %v1637, %v1636
        %v1650 = vpack.c.b16 %v1639, %v1638
        %v1651 = vpack.c.b16 %v1641, %v1640
        %v1652 = vpack.c.b16 %v1643, %v1642
        %v1653 = vpack.c.b16 %v1645, %v1644
        %v1655 = vsel %vm1359, %v1621, 0
        %v1658 = vsel %vm1359, %v1646, 0
        %v1661 = vsel %vm1359, %v1647, 0
        %v1664 = vsel %vm1359, %v1648, 0
        %v1667 = vsel %vm1359, %v1649, 0
        %v1670 = vsel %vm1359, %v1650, 0
        %v1673 = vsel %vm1359, %v1651, 0
        %v1676 = vsel %vm1359, %v1652, 0
        %v1679 = vsel %vm1359, %v1653, 0
        %1681 = vmatprep.subr.bf16.mxu0 0
        %1682 = vmatpush1.bf16.xpose.msra.mxu0 %v1679
        %1683 = vmatprep.subr.bf16.mxu0 0
        %1684 = vmatpush1.bf16.xpose.msra.mxu0 %v1676
        %1685 = vmatprep.subr.bf16.mxu0 0
        %1686 = vmatpush1.bf16.xpose.msra.mxu0 %v1673
        %1687 = vmatprep.subr.bf16.mxu0 0
        %1688 = vmatpush1.bf16.xpose.msra.mxu0 %v1670
        %1689 = vmatprep.subr.bf16.mxu0 0
        %1690 = vmatpush1.bf16.xpose.msra.mxu0 %v1667
        %1691 = vmatprep.subr.bf16.mxu0 0
        %1692 = vmatpush1.bf16.xpose.msra.mxu0 %v1664
        %1693 = vmatprep.subr.bf16.mxu0 0
        %1694 = vmatpush1.bf16.xpose.msra.mxu0 %v1661
        %1695 = vmatprep.subr.bf16.mxu0 0
        %1696 = vmatpush1.bf16.xpose.msra.mxu0 %v1658
        %1697 = vmatprep.subr.bf16.mxu0 0
        %1698 = vmatpush2.bf16.xpose.msra.mxu0 0
        %1699 = vmatprep.subr.bf16.mxu0 0
        %1700 = vmatpush2.bf16.xpose.msra.mxu0 0
        %1701 = vmatprep.subr.bf16.mxu0 0
        %1702 = vmatpush2.bf16.xpose.msra.mxu0 0
        %1703 = vmatprep.subr.bf16.mxu0 0
        %1704 = vmatpush2.bf16.xpose.msra.mxu0 0
        %1705 = vmatprep.subr.bf16.mxu0 0
        %1706 = vmatpush2.bf16.xpose.msra.mxu0 0
        %1707 = vmatprep.subr.bf16.mxu0 0
        %1708 = vmatpush2.bf16.xpose.msra.mxu0 0
        %1709 = vmatprep.subr.bf16.mxu0 0
        %1710 = vmatpush2.bf16.xpose.msra.mxu0 0
        %1711 = vmatprep.subr.bf16.mxu0 0
        %1712 = vmatpush2.bf16.xpose.msra.mxu0 0
        %1713 = vmatprep.mubr.bf16.mxu0 0
        %1714 = vmatmul.mubr.bf16.gmra.mxu0 %v1655
        %v1715 = vpop.f32.mrf.mxu0
        %v1716 = vadd.f32 0.0, %v1715
        %v1717 = vpop.f32.mrf.mxu0
        %v1718 = vpop.f32.mrf.mxu0
        %v1719 = vpop.f32.mrf.mxu0
        %1720 = vdwg.mxu0
        %v1721 = vadd.f32 %v1619, %v1716
        %s1722 = scalar_lea.vmem %s336, 16 [#allocation3]
        %v1723 = vld [vmem:[%s1722] sm:$0xf]
        %v1724 = vunpack.c.l.b16 %v757
        %v1725 = vunpack.c.l.b16 %v767
        %v1726 = vunpack.c.l.b16 %v781
        %v1727 = vunpack.c.l.b16 %v791
        %v1728 = vunpack.c.l.b16 %v805
        %v1729 = vunpack.c.l.b16 %v815
        %v1730 = vunpack.c.l.b16 %v829
        %v1731 = vunpack.c.l.b16 %v839
        %v1732 = vunpack.c.l.b16 %v853
        %v1733 = vunpack.c.l.b16 %v863
        %v1734 = vunpack.c.l.b16 %v877
        %v1735 = vunpack.c.l.b16 %v887
        %v1736 = vunpack.c.l.b16 %v901
        %v1737 = vunpack.c.l.b16 %v911
        %v1738 = vunpack.c.l.b16 %v925
        %v1739 = vunpack.c.l.b16 %v935
        %v1740 = vpack.c.b16 %v1725, %v1724
        %v1741 = vpack.c.b16 %v1727, %v1726
        %v1742 = vpack.c.b16 %v1729, %v1728
        %v1743 = vpack.c.b16 %v1731, %v1730
        %v1744 = vpack.c.b16 %v1733, %v1732
        %v1745 = vpack.c.b16 %v1735, %v1734
        %v1746 = vpack.c.b16 %v1737, %v1736
        %v1747 = vpack.c.b16 %v1739, %v1738
        %v1749 = vsel %vm1359, %v1723, 0
        %v1752 = vsel %vm1359, %v1740, 0
        %v1755 = vsel %vm1359, %v1741, 0
        %v1758 = vsel %vm1359, %v1742, 0
        %v1761 = vsel %vm1359, %v1743, 0
        %v1764 = vsel %vm1359, %v1744, 0
        %v1767 = vsel %vm1359, %v1745, 0
        %v1770 = vsel %vm1359, %v1746, 0
        %v1773 = vsel %vm1359, %v1747, 0
        %1775 = vmatprep.subr.bf16.mxu0 0
        %1776 = vmatpush1.bf16.xpose.msra.mxu0 %v1773
        %1777 = vmatprep.subr.bf16.mxu0 0
        %1778 = vmatpush1.bf16.xpose.msra.mxu0 %v1770
        %1779 = vmatprep.subr.bf16.mxu0 0
        %1780 = vmatpush1.bf16.xpose.msra.mxu0 %v1767
        %1781 = vmatprep.subr.bf16.mxu0 0
        %1782 = vmatpush1.bf16.xpose.msra.mxu0 %v1764
        %1783 = vmatprep.subr.bf16.mxu0 0
        %1784 = vmatpush1.bf16.xpose.msra.mxu0 %v1761
        %1785 = vmatprep.subr.bf16.mxu0 0
        %1786 = vmatpush1.bf16.xpose.msra.mxu0 %v1758
        %1787 = vmatprep.subr.bf16.mxu0 0
        %1788 = vmatpush1.bf16.xpose.msra.mxu0 %v1755
        %1789 = vmatprep.subr.bf16.mxu0 0
        %1790 = vmatpush1.bf16.xpose.msra.mxu0 %v1752
        %1791 = vmatprep.subr.bf16.mxu0 0
        %1792 = vmatpush2.bf16.xpose.msra.mxu0 0
        %1793 = vmatprep.subr.bf16.mxu0 0
        %1794 = vmatpush2.bf16.xpose.msra.mxu0 0
        %1795 = vmatprep.subr.bf16.mxu0 0
        %1796 = vmatpush2.bf16.xpose.msra.mxu0 0
        %1797 = vmatprep.subr.bf16.mxu0 0
        %1798 = vmatpush2.bf16.xpose.msra.mxu0 0
        %1799 = vmatprep.subr.bf16.mxu0 0
        %1800 = vmatpush2.bf16.xpose.msra.mxu0 0
        %1801 = vmatprep.subr.bf16.mxu0 0
        %1802 = vmatpush2.bf16.xpose.msra.mxu0 0
        %1803 = vmatprep.subr.bf16.mxu0 0
        %1804 = vmatpush2.bf16.xpose.msra.mxu0 0
        %1805 = vmatprep.subr.bf16.mxu0 0
        %1806 = vmatpush2.bf16.xpose.msra.mxu0 0
        %1807 = vmatprep.mubr.bf16.mxu0 0
        %1808 = vmatmul.mubr.bf16.gmra.mxu0 %v1749
        %v1809 = vpop.f32.mrf.mxu0
        %v1810 = vadd.f32 0.0, %v1809
        %v1811 = vpop.f32.mrf.mxu0
        %v1812 = vpop.f32.mrf.mxu0
        %v1813 = vpop.f32.mrf.mxu0
        %1814 = vdwg.mxu0
        %v1815 = vadd.f32 %v1721, %v1810
        %s1816 = scalar_lea.vmem %s336, 20 [#allocation3]
        %v1817 = vld [vmem:[%s1816] sm:$0xf]
        %v1818 = vunpack.c.l.b16 %v971
        %v1819 = vunpack.c.l.b16 %v974
        %v1820 = vunpack.c.l.b16 %v978
        %v1821 = vunpack.c.l.b16 %v981
        %v1822 = vunpack.c.l.b16 %v985
        %v1823 = vunpack.c.l.b16 %v988
        %v1824 = vunpack.c.l.b16 %v992
        %v1825 = vunpack.c.l.b16 %v995
        %v1826 = vunpack.c.l.b16 %v999
        %v1827 = vunpack.c.l.b16 %v1002
        %v1828 = vunpack.c.l.b16 %v1006
        %v1829 = vunpack.c.l.b16 %v1009
        %v1830 = vunpack.c.l.b16 %v1013
        %v1831 = vunpack.c.l.b16 %v1016
        %v1832 = vunpack.c.l.b16 %v1020
        %v1833 = vunpack.c.l.b16 %v1023
        %v1834 = vpack.c.b16 %v1819, %v1818
        %v1835 = vpack.c.b16 %v1821, %v1820
        %v1836 = vpack.c.b16 %v1823, %v1822
        %v1837 = vpack.c.b16 %v1825, %v1824
        %v1838 = vpack.c.b16 %v1827, %v1826
        %v1839 = vpack.c.b16 %v1829, %v1828
        %v1840 = vpack.c.b16 %v1831, %v1830
        %v1841 = vpack.c.b16 %v1833, %v1832
        %v1843 = vsel %vm1359, %v1817, 0
        %v1846 = vsel %vm1359, %v1834, 0
        %v1849 = vsel %vm1359, %v1835, 0
        %v1852 = vsel %vm1359, %v1836, 0
        %v1855 = vsel %vm1359, %v1837, 0
        %v1858 = vsel %vm1359, %v1838, 0
        %v1861 = vsel %vm1359, %v1839, 0
        %v1864 = vsel %vm1359, %v1840, 0
        %v1867 = vsel %vm1359, %v1841, 0
        %1869 = vmatprep.subr.bf16.mxu0 0
        %1870 = vmatpush1.bf16.xpose.msra.mxu0 %v1867
        %1871 = vmatprep.subr.bf16.mxu0 0
        %1872 = vmatpush1.bf16.xpose.msra.mxu0 %v1864
        %1873 = vmatprep.subr.bf16.mxu0 0
        %1874 = vmatpush1.bf16.xpose.msra.mxu0 %v1861
        %1875 = vmatprep.subr.bf16.mxu0 0
        %1876 = vmatpush1.bf16.xpose.msra.mxu0 %v1858
        %1877 = vmatprep.subr.bf16.mxu0 0
        %1878 = vmatpush1.bf16.xpose.msra.mxu0 %v1855
        %1879 = vmatprep.subr.bf16.mxu0 0
        %1880 = vmatpush1.bf16.xpose.msra.mxu0 %v1852
        %1881 = vmatprep.subr.bf16.mxu0 0
        %1882 = vmatpush1.bf16.xpose.msra.mxu0 %v1849
        %1883 = vmatprep.subr.bf16.mxu0 0
        %1884 = vmatpush1.bf16.xpose.msra.mxu0 %v1846
        %1885 = vmatprep.subr.bf16.mxu0 0
        %1886 = vmatpush2.bf16.xpose.msra.mxu0 0
        %1887 = vmatprep.subr.bf16.mxu0 0
        %1888 = vmatpush2.bf16.xpose.msra.mxu0 0
        %1889 = vmatprep.subr.bf16.mxu0 0
        %1890 = vmatpush2.bf16.xpose.msra.mxu0 0
        %1891 = vmatprep.subr.bf16.mxu0 0
        %1892 = vmatpush2.bf16.xpose.msra.mxu0 0
        %1893 = vmatprep.subr.bf16.mxu0 0
        %1894 = vmatpush2.bf16.xpose.msra.mxu0 0
        %1895 = vmatprep.subr.bf16.mxu0 0
        %1896 = vmatpush2.bf16.xpose.msra.mxu0 0
        %1897 = vmatprep.subr.bf16.mxu0 0
        %1898 = vmatpush2.bf16.xpose.msra.mxu0 0
        %1899 = vmatprep.subr.bf16.mxu0 0
        %1900 = vmatpush2.bf16.xpose.msra.mxu0 0
        %1901 = vmatprep.mubr.bf16.mxu0 0
        %1902 = vmatmul.mubr.bf16.gmra.mxu0 %v1843
        %v1903 = vpop.f32.mrf.mxu0
        %v1904 = vadd.f32 0.0, %v1903
        %v1905 = vpop.f32.mrf.mxu0
        %v1906 = vpop.f32.mrf.mxu0
        %v1907 = vpop.f32.mrf.mxu0
        %1908 = vdwg.mxu0
        %v1909 = vadd.f32 %v1815, %v1904
        %s1910 = scalar_lea.vmem %s336, 24 [#allocation3]
        %v1911 = vld [vmem:[%s1910] sm:$0xf]
        %v1920 = vunpack.c.l.b16 %v1028
        %v1921 = vunpack.c.l.b16 %v1029
        %v1922 = vunpack.c.l.b16 %v1030
        %v1923 = vunpack.c.l.b16 %v1031
        %v1924 = vunpack.c.l.b16 %v1032
        %v1925 = vunpack.c.l.b16 %v1033
        %v1926 = vunpack.c.l.b16 %v1034
        %v1927 = vunpack.c.l.b16 %v1035
        %v1928 = vunpack.c.l.b16 %v1036
        %v1929 = vunpack.c.l.b16 %v1037
        %v1930 = vunpack.c.l.b16 %v1038
        %v1931 = vunpack.c.l.b16 %v1039
        %v1932 = vunpack.c.l.b16 %v1040
        %v1933 = vunpack.c.l.b16 %v1041
        %v1934 = vunpack.c.l.b16 %v1042
        %v1935 = vunpack.c.l.b16 %v1043
        %v1936 = vpack.c.b16 %v1921, %v1920
        %v1937 = vpack.c.b16 %v1923, %v1922
        %v1938 = vpack.c.b16 %v1925, %v1924
        %v1939 = vpack.c.b16 %v1927, %v1926
        %v1940 = vpack.c.b16 %v1929, %v1928
        %v1941 = vpack.c.b16 %v1931, %v1930
        %v1942 = vpack.c.b16 %v1933, %v1932
        %v1943 = vpack.c.b16 %v1935, %v1934
        %v1945 = vsel %vm1359, %v1911, 0
        %v1948 = vsel %vm1359, %v1936, 0
        %v1951 = vsel %vm1359, %v1937, 0
        %v1954 = vsel %vm1359, %v1938, 0
        %v1957 = vsel %vm1359, %v1939, 0
        %v1960 = vsel %vm1359, %v1940, 0
        %v1963 = vsel %vm1359, %v1941, 0
        %v1966 = vsel %vm1359, %v1942, 0
        %v1969 = vsel %vm1359, %v1943, 0
        %1971 = vmatprep.subr.bf16.mxu0 0
        %1972 = vmatpush1.bf16.xpose.msra.mxu0 %v1969
        %1973 = vmatprep.subr.bf16.mxu0 0
        %1974 = vmatpush1.bf16.xpose.msra.mxu0 %v1966
        %1975 = vmatprep.subr.bf16.mxu0 0
        %1976 = vmatpush1.bf16.xpose.msra.mxu0 %v1963
        %1977 = vmatprep.subr.bf16.mxu0 0
        %1978 = vmatpush1.bf16.xpose.msra.mxu0 %v1960
        %1979 = vmatprep.subr.bf16.mxu0 0
        %1980 = vmatpush1.bf16.xpose.msra.mxu0 %v1957
        %1981 = vmatprep.subr.bf16.mxu0 0
        %1982 = vmatpush1.bf16.xpose.msra.mxu0 %v1954
        %1983 = vmatprep.subr.bf16.mxu0 0
        %1984 = vmatpush1.bf16.xpose.msra.mxu0 %v1951
        %1985 = vmatprep.subr.bf16.mxu0 0
        %1986 = vmatpush1.bf16.xpose.msra.mxu0 %v1948
        %1987 = vmatprep.subr.bf16.mxu0 0
        %1988 = vmatpush2.bf16.xpose.msra.mxu0 0
        %1989 = vmatprep.subr.bf16.mxu0 0
        %1990 = vmatpush2.bf16.xpose.msra.mxu0 0
        %1991 = vmatprep.subr.bf16.mxu0 0
        %1992 = vmatpush2.bf16.xpose.msra.mxu0 0
        %1993 = vmatprep.subr.bf16.mxu0 0
        %1994 = vmatpush2.bf16.xpose.msra.mxu0 0
        %1995 = vmatprep.subr.bf16.mxu0 0
        %1996 = vmatpush2.bf16.xpose.msra.mxu0 0
        %1997 = vmatprep.subr.bf16.mxu0 0
        %1998 = vmatpush2.bf16.xpose.msra.mxu0 0
        %1999 = vmatprep.subr.bf16.mxu0 0
        %2000 = vmatpush2.bf16.xpose.msra.mxu0 0
        %2001 = vmatprep.subr.bf16.mxu0 0
        %2002 = vmatpush2.bf16.xpose.msra.mxu0 0
        %2003 = vmatprep.mubr.bf16.mxu0 0
        %2004 = vmatmul.mubr.bf16.gmra.mxu0 %v1945
        %v2005 = vpop.f32.mrf.mxu0
        %v2006 = vadd.f32 0.0, %v2005
        %v2007 = vpop.f32.mrf.mxu0
        %v2008 = vpop.f32.mrf.mxu0
        %v2009 = vpop.f32.mrf.mxu0
        %2010 = vdwg.mxu0
        %v2011 = vadd.f32 %v1909, %v2006
        %s2012 = scalar_lea.vmem %s336, 28 [#allocation3]
        %v2013 = vld [vmem:[%s2012] sm:$0xf]
        %v2014 = vunpack.c.l.b16 %v1065
        %v2015 = vunpack.c.l.b16 %v1075
        %v2016 = vunpack.c.l.b16 %v1089
        %v2017 = vunpack.c.l.b16 %v1099
        %v2018 = vunpack.c.l.b16 %v1113
        %v2019 = vunpack.c.l.b16 %v1123
        %v2020 = vunpack.c.l.b16 %v1137
        %v2021 = vunpack.c.l.b16 %v1147
        %v2022 = vunpack.c.l.b16 %v1161
        %v2023 = vunpack.c.l.b16 %v1171
        %v2024 = vunpack.c.l.b16 %v1185
        %v2025 = vunpack.c.l.b16 %v1195
        %v2026 = vunpack.c.l.b16 %v1209
        %v2027 = vunpack.c.l.b16 %v1219
        %v2028 = vunpack.c.l.b16 %v1233
        %v2029 = vunpack.c.l.b16 %v1243
        %v2030 = vpack.c.b16 %v2015, %v2014
        %v2031 = vpack.c.b16 %v2017, %v2016
        %v2032 = vpack.c.b16 %v2019, %v2018
        %v2033 = vpack.c.b16 %v2021, %v2020
        %v2034 = vpack.c.b16 %v2023, %v2022
        %v2035 = vpack.c.b16 %v2025, %v2024
        %v2036 = vpack.c.b16 %v2027, %v2026
        %v2037 = vpack.c.b16 %v2029, %v2028
        %v2039 = vsel %vm1359, %v2013, 0
        %v2042 = vsel %vm1359, %v2030, 0
        %v2045 = vsel %vm1359, %v2031, 0
        %v2048 = vsel %vm1359, %v2032, 0
        %v2051 = vsel %vm1359, %v2033, 0
        %v2054 = vsel %vm1359, %v2034, 0
        %v2057 = vsel %vm1359, %v2035, 0
        %v2060 = vsel %vm1359, %v2036, 0
        %v2063 = vsel %vm1359, %v2037, 0
        %2065 = vmatprep.subr.bf16.mxu0 0
        %2066 = vmatpush1.bf16.xpose.msra.mxu0 %v2063
        %2067 = vmatprep.subr.bf16.mxu0 0
        %2068 = vmatpush1.bf16.xpose.msra.mxu0 %v2060
        %2069 = vmatprep.subr.bf16.mxu0 0
        %2070 = vmatpush1.bf16.xpose.msra.mxu0 %v2057
        %2071 = vmatprep.subr.bf16.mxu0 0
        %2072 = vmatpush1.bf16.xpose.msra.mxu0 %v2054
        %2073 = vmatprep.subr.bf16.mxu0 0
        %2074 = vmatpush1.bf16.xpose.msra.mxu0 %v2051
        %2075 = vmatprep.subr.bf16.mxu0 0
        %2076 = vmatpush1.bf16.xpose.msra.mxu0 %v2048
        %2077 = vmatprep.subr.bf16.mxu0 0
        %2078 = vmatpush1.bf16.xpose.msra.mxu0 %v2045
        %2079 = vmatprep.subr.bf16.mxu0 0
        %2080 = vmatpush1.bf16.xpose.msra.mxu0 %v2042
        %2081 = vmatprep.subr.bf16.mxu0 0
        %2082 = vmatpush2.bf16.xpose.msra.mxu0 0
        %2083 = vmatprep.subr.bf16.mxu0 0
        %2084 = vmatpush2.bf16.xpose.msra.mxu0 0
        %2085 = vmatprep.subr.bf16.mxu0 0
        %2086 = vmatpush2.bf16.xpose.msra.mxu0 0
        %2087 = vmatprep.subr.bf16.mxu0 0
        %2088 = vmatpush2.bf16.xpose.msra.mxu0 0
        %2089 = vmatprep.subr.bf16.mxu0 0
        %2090 = vmatpush2.bf16.xpose.msra.mxu0 0
        %2091 = vmatprep.subr.bf16.mxu0 0
        %2092 = vmatpush2.bf16.xpose.msra.mxu0 0
        %2093 = vmatprep.subr.bf16.mxu0 0
        %2094 = vmatpush2.bf16.xpose.msra.mxu0 0
        %2095 = vmatprep.subr.bf16.mxu0 0
        %2096 = vmatpush2.bf16.xpose.msra.mxu0 0
        %2097 = vmatprep.mubr.bf16.mxu0 0
        %2098 = vmatmul.mubr.bf16.gmra.mxu0 %v2039
        %v2099 = vpop.f32.mrf.mxu0
        %v2100 = vadd.f32 0.0, %v2099
        %v2101 = vpop.f32.mrf.mxu0
        %v2102 = vpop.f32.mrf.mxu0
        %v2103 = vpop.f32.mrf.mxu0
        %2104 = vdwg.mxu0
        %v2105 = vadd.f32 %v2011, %v2100
        %s2106 = scalar_lea.vmem %s336, 32 [#allocation3]
        %v2107 = vld [vmem:[%s2106] sm:$0xf]
        %v2108 = vunpack.c.l.b16 %v1279
        %v2109 = vunpack.c.l.b16 %v1282
        %v2110 = vunpack.c.l.b16 %v1286
        %v2111 = vunpack.c.l.b16 %v1289
        %v2112 = vunpack.c.l.b16 %v1293
        %v2113 = vunpack.c.l.b16 %v1296
        %v2114 = vunpack.c.l.b16 %v1300
        %v2115 = vunpack.c.l.b16 %v1303
        %v2116 = vunpack.c.l.b16 %v1307
        %v2117 = vunpack.c.l.b16 %v1310
        %v2118 = vunpack.c.l.b16 %v1314
        %v2119 = vunpack.c.l.b16 %v1317
        %v2120 = vunpack.c.l.b16 %v1321
        %v2121 = vunpack.c.l.b16 %v1324
        %v2122 = vunpack.c.l.b16 %v1328
        %v2123 = vunpack.c.l.b16 %v1331
        %v2124 = vpack.c.b16 %v2109, %v2108
        %v2125 = vpack.c.b16 %v2111, %v2110
        %v2126 = vpack.c.b16 %v2113, %v2112
        %v2127 = vpack.c.b16 %v2115, %v2114
        %v2128 = vpack.c.b16 %v2117, %v2116
        %v2129 = vpack.c.b16 %v2119, %v2118
        %v2130 = vpack.c.b16 %v2121, %v2120
        %v2131 = vpack.c.b16 %v2123, %v2122
        %v2133 = vsel %vm1359, %v2107, 0
        %v2136 = vsel %vm1359, %v2124, 0
        %v2139 = vsel %vm1359, %v2125, 0
        %v2142 = vsel %vm1359, %v2126, 0
        %v2145 = vsel %vm1359, %v2127, 0
        %v2148 = vsel %vm1359, %v2128, 0
        %v2151 = vsel %vm1359, %v2129, 0
        %v2154 = vsel %vm1359, %v2130, 0
        %v2157 = vsel %vm1359, %v2131, 0
        %2159 = vmatprep.subr.bf16.mxu0 0
        %2160 = vmatpush1.bf16.xpose.msra.mxu0 %v2157
        %2161 = vmatprep.subr.bf16.mxu0 0
        %2162 = vmatpush1.bf16.xpose.msra.mxu0 %v2154
        %2163 = vmatprep.subr.bf16.mxu0 0
        %2164 = vmatpush1.bf16.xpose.msra.mxu0 %v2151
        %2165 = vmatprep.subr.bf16.mxu0 0
        %2166 = vmatpush1.bf16.xpose.msra.mxu0 %v2148
        %2167 = vmatprep.subr.bf16.mxu0 0
        %2168 = vmatpush1.bf16.xpose.msra.mxu0 %v2145
        %2169 = vmatprep.subr.bf16.mxu0 0
        %2170 = vmatpush1.bf16.xpose.msra.mxu0 %v2142
        %2171 = vmatprep.subr.bf16.mxu0 0
        %2172 = vmatpush1.bf16.xpose.msra.mxu0 %v2139
        %2173 = vmatprep.subr.bf16.mxu0 0
        %2174 = vmatpush1.bf16.xpose.msra.mxu0 %v2136
        %2175 = vmatprep.subr.bf16.mxu0 0
        %2176 = vmatpush2.bf16.xpose.msra.mxu0 0
        %2177 = vmatprep.subr.bf16.mxu0 0
        %2178 = vmatpush2.bf16.xpose.msra.mxu0 0
        %2179 = vmatprep.subr.bf16.mxu0 0
        %2180 = vmatpush2.bf16.xpose.msra.mxu0 0
        %2181 = vmatprep.subr.bf16.mxu0 0
        %2182 = vmatpush2.bf16.xpose.msra.mxu0 0
        %2183 = vmatprep.subr.bf16.mxu0 0
        %2184 = vmatpush2.bf16.xpose.msra.mxu0 0
        %2185 = vmatprep.subr.bf16.mxu0 0
        %2186 = vmatpush2.bf16.xpose.msra.mxu0 0
        %2187 = vmatprep.subr.bf16.mxu0 0
        %2188 = vmatpush2.bf16.xpose.msra.mxu0 0
        %2189 = vmatprep.subr.bf16.mxu0 0
        %2190 = vmatpush2.bf16.xpose.msra.mxu0 0
        %2191 = vmatprep.mubr.bf16.mxu0 0
        %2192 = vmatmul.mubr.bf16.gmra.mxu0 %v2133
        %v2193 = vpop.f32.mrf.mxu0
        %v2194 = vadd.f32 0.0, %v2193
        %v2195 = vpop.f32.mrf.mxu0
        %v2196 = vpop.f32.mrf.mxu0
        %v2197 = vpop.f32.mrf.mxu0
        %2198 = vdwg.mxu0
        %v2199 = vadd.f32 %v2105, %v2194
        %v2200 = vld [vmem:[%s396] sm:$0xff]
        %v2201 = vld [vmem:[%s392] sm:$0x1]
        %2203 = vset.pattern.permute.xlu0 0
        %2204 = vperm.xlu0 %2203, %v2200
        %v2205 = vpop.permute.xlu0 %2204
        %v2208 = vlaneseq
        %v2209 = vshrl.u32 %v2208, 7
        %v2210 = vsub.s32 0, %v2209
        %v2211 = vrot.slane %v2201, %v2210
        %v2213 = vmul.f32 %v2205, %v2211
        %v2214 = vadd.f32 %v2199, %v2213
        %v2215 = vld [vmem:[%s400] sm:$0xff]
        %2217 = vset.pattern.permute.xlu0 0
        %2218 = vperm.xlu0 %2217, %v2215
        %v2219 = vpop.permute.xlu0 %2218
        %v2221 = vadd.f32 %v2214, %v2219
        %vm2222 = vcmp.gt.f32.partialorder %v2221, 0.0
        %v2223 = vmul.f32 %v2221, 0.2
        %v2224 = vsel %vm2222, %v2221, %v2223
        %s2225 = scalar_lea.vmem [#allocation2], %s402
        %2226 = vst [vmem:[%s2225] sm:$0xff] %v2224
        %p2227 = scmp.eq.s32.totalorder %s26, 1
        // Predicated region
        $region82: #{tpu_custom_call.1} parent=76 // pred_check
          %p2228 = pneg %p2227
        $region83: #{tpu_custom_call.1} parent=76 // pred_check_branch
          %2230 = sbr.rel (%p2228) target = $region85
        $region84: #{tpu_custom_call.1} parent=76 // pred_region
          %v2231 = vld [vmem:[#allocation2] sm:$0xff]
          %s2232 = scalar_lea.vmem [#allocation2], 8
          %v2233 = vld [vmem:[%s2232] sm:$0xff]
          %v2234 = vadd.f32 %v2231, %v2233
          %2235 = vadd.xlane.f32.xlu0 %v2234
          %v2236 = vpop.xlane.xlu0 %2235
          %v2237 = vmul.f32 %v2236, 0.00390625
          %v2238 = vsub.f32 %v2231, %v2237
          %v2239 = vmul.f32 %v2238, %v2238
          %2240 = vadd.xlane.f32.xlu0 %v2239
          %v2241 = vpop.xlane.xlu0 %2240
          %v2242 = vadd.f32 %v2241, 0.0
          %v2243 = vsub.f32 %v2233, %v2237
          %v2244 = vmul.f32 %v2243, %v2243
          %2245 = vadd.xlane.f32.xlu0 %v2244
          %v2246 = vpop.xlane.xlu0 %2245
          %v2247 = vadd.f32 %v2242, %v2246
          %v2248 = vmul.f32 %v2247, 0.00390625
          %v2249 = vadd.f32 %v2248, 1e-05
          %v2250 = vrsqrt.pop %v2249
          %v2251 = vmul.f32 %v2238, %v2250
          %2252 = vst [vmem:[%s380] sm:$0xff] %v2251
          %v2253 = vld [vmem:[%s2232] sm:$0xff]
          %v2254 = vsub.f32 %v2253, %v2237
          %v2255 = vmul.f32 %v2254, %v2250
          %2256 = vst [vmem:[%s380 + $0x8] sm:$0xff] %v2255
        $region85: #{tpu_custom_call.1} parent=76 // pred_fallthru
          _
        %s2257 = sand.u32 %s180, 1
        %s2258 = scalar_lea.sflag [#allocation5], %s2257
        %s2259 = sand.u32 %s180, 1
        %s2260 = smul.addr %s2259, 16
        %s2261 = scalar_lea.vmem [#allocation4], %s2260
        // Predicated region
        $region86: #{tpu_custom_call.1} parent=76 // pred_check
          %p2262 = pneg %p190
        $region87: #{tpu_custom_call.1} parent=76 // pred_check_branch
          %2264 = sbr.rel (%p2262) target = $region89
        $region88: #{tpu_custom_call.1} parent=76 // pred_region
          %s2266 = ssub.s32 256, 256
          %2267 = vsyncadd %s2258, %s2266
          %s2268 = smul.addr %s25, 2
          %s2269 = smul.addr %s24, 4
          %s2270 = sadd.s32 %s2268, %s2269
          %s2271 = smul.addr %s2270, 128
          %s2272 = scalar_lea.hbm %s5, %s2271
          %s2274 = sshll.u32 %s2261, 4
          %s2275 = int_to_ptr.vmem [resolvable:$true] %s2274
          %2277 = dma.vmem_to_hbm [thread:$0]  %s2275, 256, %s2272, %s2258
        $region89: #{tpu_custom_call.1} parent=76 // pred_fallthru
          _
      $region77: #{tpu_custom_call.1} parent=5 // pred_fallthru
        _
      %p2278 = scmp.le.s32.totalorder 2, %s14
      // Predicated region
      $region90: #{tpu_custom_call.1} parent=5 // pred_check
        %p2279 = pneg %p2278
      $region91: #{tpu_custom_call.1} parent=5 // pred_check_branch
        %2281 = sbr.rel (%p2279) target = $region93
      $region92: #{tpu_custom_call.1} parent=5 // pred_region
        %s2282 = ssub.s32 %s14, 2
        // Predicated region
        $region94: #{tpu_custom_call.1} parent=92 // pred_check
          %p2283 = pneg %p196
        $region95: #{tpu_custom_call.1} parent=92 // pred_check_branch
          %2285 = sbr.rel (%p2283) target = $region97
        $region96: #{tpu_custom_call.1} parent=92 // pred_region
          %s2286 = sand.u32 %s181, 1
          %s2287 = scalar_lea.sflag [#allocation5], %s2286
          %s2288 = sand.u32 %s181, 1
          %s2289 = smul.addr %s2288, 16
          %s2290 = scalar_lea.vmem [#allocation4], %s2289
          %2291 = dma.done %s2287, 256
        $region97: #{tpu_custom_call.1} parent=92 // pred_fallthru
          _
      $region93: #{tpu_custom_call.1} parent=5 // pred_fallthru
        _
    $region6: #{tpu_custom_call.1} parent=1 // loop_footer
      %s18 = sadd.s32 1, %s14
    $region7: #{tpu_custom_call.1} parent=1 // loop_footer_branch
      %13 = sbr.rel target = $region3
    $region8: #{tpu_custom_call.1} parent=1 // loop_exit
      _
    %2292 = vsyncpa [#allocation5], 1
    %s2293 = scalar_lea.sflag [#allocation5], 1
    %2294 = vsyncpa %s2293, 1

</llo_original>
